<compile_context>
chip_gen: v6e
topology: v6e:2x2x1
jax: 0.10.0
libtpu: 0.0.40
codegen_flags: <defaults>
</compile_context>

<pallas_src>
import functools

import jax
import jax.numpy as jnp
from jax.experimental import pallas as pl
from jax.experimental.pallas import tpu as pltpu


def lstm_recurrence_kernel(gx_ref, whh_ref, h_out_ref, c_out_ref,
                           h_scr, c_scr,
                           *, time_chunk, seq_len, hidden):
    """Runs `time_chunk` LSTM timesteps per grid iteration.

    gx_ref:   (TC, B, 4H)  precomputed x @ W_ih^T + b_ih + b_hh for this chunk,
                           gate columns permuted to [i, f, o, g]
    whh_ref:  (H, 4H)      W_hh^T (gate-permuted).  Constant-index BlockSpec:
                           DMAed once during the pipeline prologue, no refetch.
    h_out_ref, c_out_ref: (1, B, H) final states (written at the last chunk)
    h_scr, c_scr: (B, H)   VMEM-resident recurrent state
    """
    chunk = pl.program_id(0)

    @pl.when(chunk == 0)
    def _init():
        h_scr[...] = jnp.zeros_like(h_scr)
        c_scr[...] = jnp.zeros_like(c_scr)

    whh = whh_ref[...]                           # (H, 4H), read once per chunk
    needs_mask = (seq_len % time_chunk) != 0     # only the padded tail chunk

    def step(s, carry):
        h, c = carry
        # Only the recurrent matmul remains in the serial loop; the input
        # projection and bias are already folded into gx_ref.
        gates = gx_ref[s] + jnp.dot(h, whh, preferred_element_type=jnp.float32)
        # Gate order [i, f, o, g]: one sigmoid over a contiguous (B, 3H) slab
        # and one tanh over (B, H) -> 2 transcendental launches per step.
        ifo = jax.nn.sigmoid(gates[:, 0:3 * hidden])
        g = jnp.tanh(gates[:, 3 * hidden:4 * hidden])
        i = ifo[:, 0:hidden]
        f = ifo[:, hidden:2 * hidden]
        o = ifo[:, 2 * hidden:3 * hidden]
        c_new = f * c + i * g
        h_new = o * jnp.tanh(c_new)
        if needs_mask:
            # Padded tail timesteps: the wrapper zero-pads gates_x, so running
            # the activations is safe (no NaNs); we simply discard the update.
            valid = (chunk * time_chunk + s) < seq_len
            h_new = jnp.where(valid, h_new, h)
            c_new = jnp.where(valid, c_new, c)
        return h_new, c_new

    # Bounded unroll: keeps LLO scheduling visibility without vreg blow-up
    # when time_chunk is raised for long sequences.
    h, c = jax.lax.fori_loop(0, time_chunk, step,
                             (h_scr[...], c_scr[...]),
                             unroll=min(8, time_chunk))
    h_scr[...] = h
    c_scr[...] = c

    @pl.when(chunk == pl.num_programs(0) - 1)
    def _finalize():
        h_out_ref[0] = h
        c_out_ref[0] = c


def _permute_gates_ifgo_to_ifog(w, axis=0):
    """PyTorch LSTM packs gates as [i, f, g, o]; reorder to [i, f, o, g]."""
    i, f, g, o = jnp.split(w, 4, axis=axis)
    return jnp.concatenate([i, f, o, g], axis=axis)


def encoder_forward(tokens, emb_matrix, w_ih, w_hh, b_ih, b_hh, *, time_chunk=32):
    """tokens: (B, T) int32.  Returns (h, c) each (1, B, H) float32."""
    B, T = tokens.shape
    E = emb_matrix.shape[1]
    H = w_hh.shape[1]
    if T == 0:
        raise ValueError("sequence length must be >= 1")

    # Reorder gate columns once so the kernel can fuse the three sigmoids.
    w_ih_p = _permute_gates_ifgo_to_ifog(w_ih)
    w_hh_p = _permute_gates_ifgo_to_ifog(w_hh)
    bias_p = _permute_gates_ifgo_to_ifog(b_ih + b_hh)

    # --- Glue in plain JAX (large, non-recurrent, MXU-friendly) -------------
    # Embedding lookup directly in (T, B, E) order (only the tiny id matrix is
    # transposed, not the embedded activations).
    x_tbe = jnp.take(emb_matrix, tokens.T, axis=0)                  # (T, B, E)
    # Hoisted input projection with fused bias: one (T*B, E) x (E, 4H) matmul.
    # TODO(synk): at production T*B, drop Precision.HIGHEST / go bf16 with f32
    # accumulation and loosen tolerances accordingly.
    gates_x = (jnp.dot(x_tbe.reshape(T * B, E), w_ih_p.T,
                       precision=jax.lax.Precision.HIGHEST)
               + bias_p).reshape(T, B, 4 * H)                       # (T, B, 4H)

    tc = max(1, min(time_chunk, T))
    n_chunks = pl.cdiv(T, tc)
    t_pad = n_chunks * tc
    if t_pad != T:
        # Padded timesteps must be ZERO (the kernel relies on this for safe
        # masked execution of the tail chunk).
        gates_x = jnp.pad(gates_x, ((0, t_pad - T), (0, 0), (0, 0)))

    kernel = functools.partial(lstm_recurrence_kernel,
                               time_chunk=tc, seq_len=T, hidden=H)

    # Explicit VMEM budget: double-buffered gate slab + once-fetched weight +
    # states/outputs, plus headroom.  Clamped to stay under v7x's 64 MiB.
    vmem_bytes = (2 * tc * B * 4 * H * 4      # gates_x blocks (double-buffered)
                  + 2 * H * 4 * H * 4         # W_hh^T block
                  + 4 * B * H * 4             # h/c scratch + output blocks
                  + (4 << 20))                # headroom
    vmem_bytes = int(min(max(vmem_bytes, 16 << 20), 48 << 20))

    h, c = pl.pallas_call(
        kernel,
        out_shape=(jax.ShapeDtypeStruct((1, B, H), jnp.float32),
                   jax.ShapeDtypeStruct((1, B, H), jnp.float32)),
        grid_spec=pltpu.PrefetchScalarGridSpec(
            num_scalar_prefetch=0,
            grid=(n_chunks,),
            in_specs=[
                # Lane-dense precomputed gate slab (last dim 4H, multiple of 128).
                pl.BlockSpec((tc, B, 4 * H), lambda t: (t, 0, 0)),
                # Constant block index => prefetched in the prologue, never
                # refetched across chunks; no manual DMA / chunk-0 stall.
                pl.BlockSpec((H, 4 * H), lambda t: (0, 0)),
            ],
            out_specs=[
                pl.BlockSpec((1, B, H), lambda t: (0, 0, 0)),
                pl.BlockSpec((1, B, H), lambda t: (0, 0, 0)),
            ],
            scratch_shapes=[
                pltpu.VMEM((B, H), jnp.float32),       # h state
                pltpu.VMEM((B, H), jnp.float32),       # c state
            ],
        ),
        compiler_params=pltpu.CompilerParams(
            # Time recurrence is serial across chunks.
            dimension_semantics=("arbitrary",),
            vmem_limit_bytes=vmem_bytes),
    )(gates_x, w_hh_p.T)
    return h, c


def reference_forward(tokens, emb_matrix, w_ih, w_hh, b_ih, b_hh):
    """Pure-JAX reference reproducing nn.Embedding + nn.LSTM(batch_first)."""
    B, T = tokens.shape
    H = w_hh.shape[1]
    x_emb = jnp.take(emb_matrix, tokens, axis=0)        # (B, T, E)

    def step(carry, x_t):
        h, c = carry
        gates = (jnp.dot(x_t, w_ih.T, precision=jax.lax.Precision.HIGHEST)
                 + jnp.dot(h, w_hh.T, precision=jax.lax.Precision.HIGHEST)
                 + b_ih + b_hh)
        i, f, g, o = jnp.split(gates, 4, axis=-1)
        i = jax.nn.sigmoid(i)
        f = jax.nn.sigmoid(f)
        g = jnp.tanh(g)
        o = jax.nn.sigmoid(o)
        c = f * c + i * g
        h = o * jnp.tanh(c)
        return (h, c), None

    h0 = jnp.zeros((B, H), jnp.float32)
    c0 = jnp.zeros((B, H), jnp.float32)
    (h, c), _ = jax.lax.scan(step, (h0, c0), jnp.transpose(x_emb, (1, 0, 2)))
    return h[None], c[None]


if __name__ == "__main__":
    # Small shapes consistent with the module (embedding_dim=100, latent_dim=256),
    # with a scaled-down vocabulary.
    B, T = 2, 8            # batch, sequence length
    VOCAB = 1000           # num_words_eng (scaled down from 10000)
    E = 100                # embedding_dim
    H = 256                # latent_dim

    key = jax.random.PRNGKey(0)
    k_emb, k_wih, k_whh, k_bih, k_bhh, k_tok = jax.random.split(key, 6)

    scale = 1.0 / jnp.sqrt(jnp.float32(H))
    emb_matrix = jax.random.uniform(k_emb, (VOCAB, E), jnp.float32)           # like np.random.rand
    w_ih = jax.random.uniform(k_wih, (4 * H, E), jnp.float32, -scale, scale)  # PyTorch LSTM init
    w_hh = jax.random.uniform(k_whh, (4 * H, H), jnp.float32, -scale, scale)
    b_ih = jax.random.uniform(k_bih, (4 * H,), jnp.float32, -scale, scale)
    b_hh = jax.random.uniform(k_bhh, (4 * H,), jnp.float32, -scale, scale)

    tokens = jax.random.randint(k_tok, (B, T), 0, VOCAB, dtype=jnp.int32)

    h, c = encoder_forward(tokens, emb_matrix, w_ih, w_hh, b_ih, b_hh)
    h = jax.block_until_ready(h)
    c = jax.block_until_ready(c)

    h_ref, c_ref = reference_forward(tokens, emb_matrix, w_ih, w_hh, b_ih, b_hh)
    assert h.shape == (1, B, H) and c.shape == (1, B, H)
    assert jnp.allclose(h, h_ref, atol=1e-4, rtol=1e-4)
    assert jnp.allclose(c, c_ref, atol=1e-4, rtol=1e-4)

    print("KERNEL_OK")
</pallas_src>

<mosaic_0001>
module attributes {stable_mosaic.version = 11 : i64} {
  func.func @lstm_recurrence_kernel(%arg0: i32, %arg1: memref<8x2x1024xf32, #tpu.memory_space<vmem>>, %arg2: memref<256x1024xf32, #tpu.memory_space<vmem>>, %arg3: memref<1x2x256xf32, #tpu.memory_space<vmem>>, %arg4: memref<1x2x256xf32, #tpu.memory_space<vmem>>, %arg5: memref<2x256xf32, #tpu.memory_space<vmem>>, %arg6: memref<2x256xf32, #tpu.memory_space<vmem>>) attributes {dimension_semantics = [#tpu.dimension_semantics<arbitrary>], iteration_bounds = array<i64: 1>, scalar_prefetch = 0 : i64, scratch_operands = 2 : i64, tpu.core_type = #tpu.core_type<tc>, window_params = [{transform_indices = @transform_0, window_bounds = array<i64: 8, 2, 1024>}, {pipeline_mode = #tpu.pipeline_mode<synchronous>, transform_indices = @transform_1, window_bounds = array<i64: 256, 1024>}, {pipeline_mode = #tpu.pipeline_mode<synchronous>, transform_indices = @transform_2, window_bounds = array<i64: 1, 2, 256>}, {pipeline_mode = #tpu.pipeline_mode<synchronous>, transform_indices = @transform_3, window_bounds = array<i64: 1, 2, 256>}]} {
    %c0_i32 = arith.constant 0 : i32
    %0 = arith.cmpi eq, %arg0, %c0_i32 : i32
    %1 = arith.extui %0 : i1 to i32
    %c0_i32_0 = arith.constant 0 : i32
    %2 = arith.cmpi ne, %1, %c0_i32_0 : i32
    scf.if %2 {
      %cst_44 = arith.constant 0.000000e+00 : f32
      %179 = vector.broadcast %cst_44 : f32 to vector<2x256xf32>
      %c0_45 = arith.constant 0 : index
      %c0_46 = arith.constant 0 : index
      %180 = vector.load %arg5[%c0_45, %c0_46] : memref<2x256xf32, #tpu.memory_space<vmem>>, vector<2x256xf32>
      tpu.vector_store %arg5[%c0_45, %c0_46], %179 {strides = array<i32>} : memref<2x256xf32, #tpu.memory_space<vmem>>, vector<2x256xf32>,
      %cst_47 = arith.constant 0.000000e+00 : f32
      %181 = vector.broadcast %cst_47 : f32 to vector<2x256xf32>
      %c0_48 = arith.constant 0 : index
      %c0_49 = arith.constant 0 : index
      %182 = vector.load %arg6[%c0_48, %c0_49] : memref<2x256xf32, #tpu.memory_space<vmem>>, vector<2x256xf32>
      tpu.vector_store %arg6[%c0_48, %c0_49], %181 {strides = array<i32>} : memref<2x256xf32, #tpu.memory_space<vmem>>, vector<2x256xf32>,
    } else {
    }
    %c0 = arith.constant 0 : index
    %c0_1 = arith.constant 0 : index
    %3 = vector.load %arg2[%c0, %c0_1] : memref<256x1024xf32, #tpu.memory_space<vmem>>, vector<256x1024xf32>
    %c0_2 = arith.constant 0 : index
    %c0_3 = arith.constant 0 : index
    %4 = vector.load %arg5[%c0_2, %c0_3] : memref<2x256xf32, #tpu.memory_space<vmem>>, vector<2x256xf32>
    %c0_4 = arith.constant 0 : index
    %c0_5 = arith.constant 0 : index
    %5 = vector.load %arg6[%c0_4, %c0_5] : memref<2x256xf32, #tpu.memory_space<vmem>>, vector<2x256xf32>
    %c0_i32_6 = arith.constant 0 : i32
    %6 = arith.index_cast %c0_i32_6 : i32 to index
    %c0_7 = arith.constant 0 : index
    %c0_8 = arith.constant 0 : index
    %7 = vector.load %arg1[%6, %c0_7, %c0_8] : memref<8x2x1024xf32, #tpu.memory_space<vmem>>, vector<1x2x1024xf32>
    %8 = vector.shape_cast %7 : vector<1x2x1024xf32> to vector<2x1024xf32>
    %cst = arith.constant dense<0.000000e+00> : vector<2x1024xf32>
    %9 = tpu.matmul %4, %3, %cst {dimension_numbers = #tpu.dot_dimension_numbers<[1], [0], [0], [1], [0, 0, 1, 1], [], []>} : vector<2x256xf32>, vector<256x1024xf32>, vector<2x1024xf32> -> vector<2x1024xf32>
    %10 = arith.addf %8, %9 : vector<2x1024xf32>
    %11 = vector.extract_strided_slice %10 {offsets = [0, 0], sizes = [2, 768], strides = [1, 1]} : vector<2x1024xf32> to vector<2x768xf32>
    %12 = arith.negf %11 : vector<2x768xf32>
    %13 = math.exp %12 : vector<2x768xf32>
    %cst_9 = arith.constant 1.000000e+00 : f32
    %14 = vector.broadcast %cst_9 : f32 to vector<2x768xf32>
    %15 = arith.addf %14, %13 : vector<2x768xf32>
    %16 = arith.divf %14, %15 : vector<2x768xf32>
    %17 = vector.extract_strided_slice %10 {offsets = [0, 768], sizes = [2, 256], strides = [1, 1]} : vector<2x1024xf32> to vector<2x256xf32>
    %18 = math.tanh %17 : vector<2x256xf32>
    %19 = vector.extract_strided_slice %16 {offsets = [0, 0], sizes = [2, 256], strides = [1, 1]} : vector<2x768xf32> to vector<2x256xf32>
    %20 = vector.extract_strided_slice %16 {offsets = [0, 256], sizes = [2, 256], strides = [1, 1]} : vector<2x768xf32> to vector<2x256xf32>
    %21 = vector.extract_strided_slice %16 {offsets = [0, 512], sizes = [2, 256], strides = [1, 1]} : vector<2x768xf32> to vector<2x256xf32>
    %22 = arith.mulf %20, %5 : vector<2x256xf32>
    %23 = arith.mulf %19, %18 : vector<2x256xf32>
    %24 = arith.addf %22, %23 : vector<2x256xf32>
    %25 = math.tanh %24 : vector<2x256xf32>
    %26 = arith.mulf %21, %25 : vector<2x256xf32>
    %c1_i32 = arith.constant 1 : i32
    %27 = arith.index_cast %c1_i32 : i32 to index
    %c0_10 = arith.constant 0 : index
    %c0_11 = arith.constant 0 : index
    %28 = vector.load %arg1[%27, %c0_10, %c0_11] : memref<8x2x1024xf32, #tpu.memory_space<vmem>>, vector<1x2x1024xf32>
    %29 = vector.shape_cast %28 : vector<1x2x1024xf32> to vector<2x1024xf32>
    %cst_12 = arith.constant dense<0.000000e+00> : vector<2x1024xf32>
    %30 = tpu.matmul %26, %3, %cst_12 {dimension_numbers = #tpu.dot_dimension_numbers<[1], [0], [0], [1], [0, 0, 1, 1], [], []>} : vector<2x256xf32>, vector<256x1024xf32>, vector<2x1024xf32> -> vector<2x1024xf32>
    %31 = arith.addf %29, %30 : vector<2x1024xf32>
    %32 = vector.extract_strided_slice %31 {offsets = [0, 0], sizes = [2, 768], strides = [1, 1]} : vector<2x1024xf32> to vector<2x768xf32>
    %33 = arith.negf %32 : vector<2x768xf32>
    %34 = math.exp %33 : vector<2x768xf32>
    %cst_13 = arith.constant 1.000000e+00 : f32
    %35 = vector.broadcast %cst_13 : f32 to vector<2x768xf32>
    %36 = arith.addf %35, %34 : vector<2x768xf32>
    %37 = arith.divf %35, %36 : vector<2x768xf32>
    %38 = vector.extract_strided_slice %31 {offsets = [0, 768], sizes = [2, 256], strides = [1, 1]} : vector<2x1024xf32> to vector<2x256xf32>
    %39 = math.tanh %38 : vector<2x256xf32>
    %40 = vector.extract_strided_slice %37 {offsets = [0, 0], sizes = [2, 256], strides = [1, 1]} : vector<2x768xf32> to vector<2x256xf32>
    %41 = vector.extract_strided_slice %37 {offsets = [0, 256], sizes = [2, 256], strides = [1, 1]} : vector<2x768xf32> to vector<2x256xf32>
    %42 = vector.extract_strided_slice %37 {offsets = [0, 512], sizes = [2, 256], strides = [1, 1]} : vector<2x768xf32> to vector<2x256xf32>
    %43 = arith.mulf %41, %24 : vector<2x256xf32>
    %44 = arith.mulf %40, %39 : vector<2x256xf32>
    %45 = arith.addf %43, %44 : vector<2x256xf32>
    %46 = math.tanh %45 : vector<2x256xf32>
    %47 = arith.mulf %42, %46 : vector<2x256xf32>
    %c2_i32 = arith.constant 2 : i32
    %48 = arith.index_cast %c2_i32 : i32 to index
    %c0_14 = arith.constant 0 : index
    %c0_15 = arith.constant 0 : index
    %49 = vector.load %arg1[%48, %c0_14, %c0_15] : memref<8x2x1024xf32, #tpu.memory_space<vmem>>, vector<1x2x1024xf32>
    %50 = vector.shape_cast %49 : vector<1x2x1024xf32> to vector<2x1024xf32>
    %cst_16 = arith.constant dense<0.000000e+00> : vector<2x1024xf32>
    %51 = tpu.matmul %47, %3, %cst_16 {dimension_numbers = #tpu.dot_dimension_numbers<[1], [0], [0], [1], [0, 0, 1, 1], [], []>} : vector<2x256xf32>, vector<256x1024xf32>, vector<2x1024xf32> -> vector<2x1024xf32>
    %52 = arith.addf %50, %51 : vector<2x1024xf32>
    %53 = vector.extract_strided_slice %52 {offsets = [0, 0], sizes = [2, 768], strides = [1, 1]} : vector<2x1024xf32> to vector<2x768xf32>
    %54 = arith.negf %53 : vector<2x768xf32>
    %55 = math.exp %54 : vector<2x768xf32>
    %cst_17 = arith.constant 1.000000e+00 : f32
    %56 = vector.broadcast %cst_17 : f32 to vector<2x768xf32>
    %57 = arith.addf %56, %55 : vector<2x768xf32>
    %58 = arith.divf %56, %57 : vector<2x768xf32>
    %59 = vector.extract_strided_slice %52 {offsets = [0, 768], sizes = [2, 256], strides = [1, 1]} : vector<2x1024xf32> to vector<2x256xf32>
    %60 = math.tanh %59 : vector<2x256xf32>
    %61 = vector.extract_strided_slice %58 {offsets = [0, 0], sizes = [2, 256], strides = [1, 1]} : vector<2x768xf32> to vector<2x256xf32>
    %62 = vector.extract_strided_slice %58 {offsets = [0, 256], sizes = [2, 256], strides = [1, 1]} : vector<2x768xf32> to vector<2x256xf32>
    %63 = vector.extract_strided_slice %58 {offsets = [0, 512], sizes = [2, 256], strides = [1, 1]} : vector<2x768xf32> to vector<2x256xf32>
    %64 = arith.mulf %62, %45 : vector<2x256xf32>
    %65 = arith.mulf %61, %60 : vector<2x256xf32>
    %66 = arith.addf %64, %65 : vector<2x256xf32>
    %67 = math.tanh %66 : vector<2x256xf32>
    %68 = arith.mulf %63, %67 : vector<2x256xf32>
    %c3_i32 = arith.constant 3 : i32
    %69 = arith.index_cast %c3_i32 : i32 to index
    %c0_18 = arith.constant 0 : index
    %c0_19 = arith.constant 0 : index
    %70 = vector.load %arg1[%69, %c0_18, %c0_19] : memref<8x2x1024xf32, #tpu.memory_space<vmem>>, vector<1x2x1024xf32>
    %71 = vector.shape_cast %70 : vector<1x2x1024xf32> to vector<2x1024xf32>
    %cst_20 = arith.constant dense<0.000000e+00> : vector<2x1024xf32>
    %72 = tpu.matmul %68, %3, %cst_20 {dimension_numbers = #tpu.dot_dimension_numbers<[1], [0], [0], [1], [0, 0, 1, 1], [], []>} : vector<2x256xf32>, vector<256x1024xf32>, vector<2x1024xf32> -> vector<2x1024xf32>
    %73 = arith.addf %71, %72 : vector<2x1024xf32>
    %74 = vector.extract_strided_slice %73 {offsets = [0, 0], sizes = [2, 768], strides = [1, 1]} : vector<2x1024xf32> to vector<2x768xf32>
    %75 = arith.negf %74 : vector<2x768xf32>
    %76 = math.exp %75 : vector<2x768xf32>
    %cst_21 = arith.constant 1.000000e+00 : f32
    %77 = vector.broadcast %cst_21 : f32 to vector<2x768xf32>
    %78 = arith.addf %77, %76 : vector<2x768xf32>
    %79 = arith.divf %77, %78 : vector<2x768xf32>
    %80 = vector.extract_strided_slice %73 {offsets = [0, 768], sizes = [2, 256], strides = [1, 1]} : vector<2x1024xf32> to vector<2x256xf32>
    %81 = math.tanh %80 : vector<2x256xf32>
    %82 = vector.extract_strided_slice %79 {offsets = [0, 0], sizes = [2, 256], strides = [1, 1]} : vector<2x768xf32> to vector<2x256xf32>
    %83 = vector.extract_strided_slice %79 {offsets = [0, 256], sizes = [2, 256], strides = [1, 1]} : vector<2x768xf32> to vector<2x256xf32>
    %84 = vector.extract_strided_slice %79 {offsets = [0, 512], sizes = [2, 256], strides = [1, 1]} : vector<2x768xf32> to vector<2x256xf32>
    %85 = arith.mulf %83, %66 : vector<2x256xf32>
    %86 = arith.mulf %82, %81 : vector<2x256xf32>
    %87 = arith.addf %85, %86 : vector<2x256xf32>
    %88 = math.tanh %87 : vector<2x256xf32>
    %89 = arith.mulf %84, %88 : vector<2x256xf32>
    %c4_i32 = arith.constant 4 : i32
    %90 = arith.index_cast %c4_i32 : i32 to index
    %c0_22 = arith.constant 0 : index
    %c0_23 = arith.constant 0 : index
    %91 = vector.load %arg1[%90, %c0_22, %c0_23] : memref<8x2x1024xf32, #tpu.memory_space<vmem>>, vector<1x2x1024xf32>
    %92 = vector.shape_cast %91 : vector<1x2x1024xf32> to vector<2x1024xf32>
    %cst_24 = arith.constant dense<0.000000e+00> : vector<2x1024xf32>
    %93 = tpu.matmul %89, %3, %cst_24 {dimension_numbers = #tpu.dot_dimension_numbers<[1], [0], [0], [1], [0, 0, 1, 1], [], []>} : vector<2x256xf32>, vector<256x1024xf32>, vector<2x1024xf32> -> vector<2x1024xf32>
    %94 = arith.addf %92, %93 : vector<2x1024xf32>
    %95 = vector.extract_strided_slice %94 {offsets = [0, 0], sizes = [2, 768], strides = [1, 1]} : vector<2x1024xf32> to vector<2x768xf32>
    %96 = arith.negf %95 : vector<2x768xf32>
    %97 = math.exp %96 : vector<2x768xf32>
    %cst_25 = arith.constant 1.000000e+00 : f32
    %98 = vector.broadcast %cst_25 : f32 to vector<2x768xf32>
    %99 = arith.addf %98, %97 : vector<2x768xf32>
    %100 = arith.divf %98, %99 : vector<2x768xf32>
    %101 = vector.extract_strided_slice %94 {offsets = [0, 768], sizes = [2, 256], strides = [1, 1]} : vector<2x1024xf32> to vector<2x256xf32>
    %102 = math.tanh %101 : vector<2x256xf32>
    %103 = vector.extract_strided_slice %100 {offsets = [0, 0], sizes = [2, 256], strides = [1, 1]} : vector<2x768xf32> to vector<2x256xf32>
    %104 = vector.extract_strided_slice %100 {offsets = [0, 256], sizes = [2, 256], strides = [1, 1]} : vector<2x768xf32> to vector<2x256xf32>
    %105 = vector.extract_strided_slice %100 {offsets = [0, 512], sizes = [2, 256], strides = [1, 1]} : vector<2x768xf32> to vector<2x256xf32>
    %106 = arith.mulf %104, %87 : vector<2x256xf32>
    %107 = arith.mulf %103, %102 : vector<2x256xf32>
    %108 = arith.addf %106, %107 : vector<2x256xf32>
    %109 = math.tanh %108 : vector<2x256xf32>
    %110 = arith.mulf %105, %109 : vector<2x256xf32>
    %c5_i32 = arith.constant 5 : i32
    %111 = arith.index_cast %c5_i32 : i32 to index
    %c0_26 = arith.constant 0 : index
    %c0_27 = arith.constant 0 : index
    %112 = vector.load %arg1[%111, %c0_26, %c0_27] : memref<8x2x1024xf32, #tpu.memory_space<vmem>>, vector<1x2x1024xf32>
    %113 = vector.shape_cast %112 : vector<1x2x1024xf32> to vector<2x1024xf32>
    %cst_28 = arith.constant dense<0.000000e+00> : vector<2x1024xf32>
    %114 = tpu.matmul %110, %3, %cst_28 {dimension_numbers = #tpu.dot_dimension_numbers<[1], [0], [0], [1], [0, 0, 1, 1], [], []>} : vector<2x256xf32>, vector<256x1024xf32>, vector<2x1024xf32> -> vector<2x1024xf32>
    %115 = arith.addf %113, %114 : vector<2x1024xf32>
    %116 = vector.extract_strided_slice %115 {offsets = [0, 0], sizes = [2, 768], strides = [1, 1]} : vector<2x1024xf32> to vector<2x768xf32>
    %117 = arith.negf %116 : vector<2x768xf32>
    %118 = math.exp %117 : vector<2x768xf32>
    %cst_29 = arith.constant 1.000000e+00 : f32
    %119 = vector.broadcast %cst_29 : f32 to vector<2x768xf32>
    %120 = arith.addf %119, %118 : vector<2x768xf32>
    %121 = arith.divf %119, %120 : vector<2x768xf32>
    %122 = vector.extract_strided_slice %115 {offsets = [0, 768], sizes = [2, 256], strides = [1, 1]} : vector<2x1024xf32> to vector<2x256xf32>
    %123 = math.tanh %122 : vector<2x256xf32>
    %124 = vector.extract_strided_slice %121 {offsets = [0, 0], sizes = [2, 256], strides = [1, 1]} : vector<2x768xf32> to vector<2x256xf32>
    %125 = vector.extract_strided_slice %121 {offsets = [0, 256], sizes = [2, 256], strides = [1, 1]} : vector<2x768xf32> to vector<2x256xf32>
    %126 = vector.extract_strided_slice %121 {offsets = [0, 512], sizes = [2, 256], strides = [1, 1]} : vector<2x768xf32> to vector<2x256xf32>
    %127 = arith.mulf %125, %108 : vector<2x256xf32>
    %128 = arith.mulf %124, %123 : vector<2x256xf32>
    %129 = arith.addf %127, %128 : vector<2x256xf32>
    %130 = math.tanh %129 : vector<2x256xf32>
    %131 = arith.mulf %126, %130 : vector<2x256xf32>
    %c6_i32 = arith.constant 6 : i32
    %132 = arith.index_cast %c6_i32 : i32 to index
    %c0_30 = arith.constant 0 : index
    %c0_31 = arith.constant 0 : index
    %133 = vector.load %arg1[%132, %c0_30, %c0_31] : memref<8x2x1024xf32, #tpu.memory_space<vmem>>, vector<1x2x1024xf32>
    %134 = vector.shape_cast %133 : vector<1x2x1024xf32> to vector<2x1024xf32>
    %cst_32 = arith.constant dense<0.000000e+00> : vector<2x1024xf32>
    %135 = tpu.matmul %131, %3, %cst_32 {dimension_numbers = #tpu.dot_dimension_numbers<[1], [0], [0], [1], [0, 0, 1, 1], [], []>} : vector<2x256xf32>, vector<256x1024xf32>, vector<2x1024xf32> -> vector<2x1024xf32>
    %136 = arith.addf %134, %135 : vector<2x1024xf32>
    %137 = vector.extract_strided_slice %136 {offsets = [0, 0], sizes = [2, 768], strides = [1, 1]} : vector<2x1024xf32> to vector<2x768xf32>
    %138 = arith.negf %137 : vector<2x768xf32>
    %139 = math.exp %138 : vector<2x768xf32>
    %cst_33 = arith.constant 1.000000e+00 : f32
    %140 = vector.broadcast %cst_33 : f32 to vector<2x768xf32>
    %141 = arith.addf %140, %139 : vector<2x768xf32>
    %142 = arith.divf %140, %141 : vector<2x768xf32>
    %143 = vector.extract_strided_slice %136 {offsets = [0, 768], sizes = [2, 256], strides = [1, 1]} : vector<2x1024xf32> to vector<2x256xf32>
    %144 = math.tanh %143 : vector<2x256xf32>
    %145 = vector.extract_strided_slice %142 {offsets = [0, 0], sizes = [2, 256], strides = [1, 1]} : vector<2x768xf32> to vector<2x256xf32>
    %146 = vector.extract_strided_slice %142 {offsets = [0, 256], sizes = [2, 256], strides = [1, 1]} : vector<2x768xf32> to vector<2x256xf32>
    %147 = vector.extract_strided_slice %142 {offsets = [0, 512], sizes = [2, 256], strides = [1, 1]} : vector<2x768xf32> to vector<2x256xf32>
    %148 = arith.mulf %146, %129 : vector<2x256xf32>
    %149 = arith.mulf %145, %144 : vector<2x256xf32>
    %150 = arith.addf %148, %149 : vector<2x256xf32>
    %151 = math.tanh %150 : vector<2x256xf32>
    %152 = arith.mulf %147, %151 : vector<2x256xf32>
    %c7_i32 = arith.constant 7 : i32
    %153 = arith.index_cast %c7_i32 : i32 to index
    %c0_34 = arith.constant 0 : index
    %c0_35 = arith.constant 0 : index
    %154 = vector.load %arg1[%153, %c0_34, %c0_35] : memref<8x2x1024xf32, #tpu.memory_space<vmem>>, vector<1x2x1024xf32>
    %155 = vector.shape_cast %154 : vector<1x2x1024xf32> to vector<2x1024xf32>
    %cst_36 = arith.constant dense<0.000000e+00> : vector<2x1024xf32>
    %156 = tpu.matmul %152, %3, %cst_36 {dimension_numbers = #tpu.dot_dimension_numbers<[1], [0], [0], [1], [0, 0, 1, 1], [], []>} : vector<2x256xf32>, vector<256x1024xf32>, vector<2x1024xf32> -> vector<2x1024xf32>
    %157 = arith.addf %155, %156 : vector<2x1024xf32>
    %158 = vector.extract_strided_slice %157 {offsets = [0, 0], sizes = [2, 768], strides = [1, 1]} : vector<2x1024xf32> to vector<2x768xf32>
    %159 = arith.negf %158 : vector<2x768xf32>
    %160 = math.exp %159 : vector<2x768xf32>
    %cst_37 = arith.constant 1.000000e+00 : f32
    %161 = vector.broadcast %cst_37 : f32 to vector<2x768xf32>
    %162 = arith.addf %161, %160 : vector<2x768xf32>
    %163 = arith.divf %161, %162 : vector<2x768xf32>
    %164 = vector.extract_strided_slice %157 {offsets = [0, 768], sizes = [2, 256], strides = [1, 1]} : vector<2x1024xf32> to vector<2x256xf32>
    %165 = math.tanh %164 : vector<2x256xf32>
    %166 = vector.extract_strided_slice %163 {offsets = [0, 0], sizes = [2, 256], strides = [1, 1]} : vector<2x768xf32> to vector<2x256xf32>
    %167 = vector.extract_strided_slice %163 {offsets = [0, 256], sizes = [2, 256], strides = [1, 1]} : vector<2x768xf32> to vector<2x256xf32>
    %168 = vector.extract_strided_slice %163 {offsets = [0, 512], sizes = [2, 256], strides = [1, 1]} : vector<2x768xf32> to vector<2x256xf32>
    %169 = arith.mulf %167, %150 : vector<2x256xf32>
    %170 = arith.mulf %166, %165 : vector<2x256xf32>
    %171 = arith.addf %169, %170 : vector<2x256xf32>
    %172 = math.tanh %171 : vector<2x256xf32>
    %173 = arith.mulf %168, %172 : vector<2x256xf32>
    %c8_i32 = arith.constant 8 : i32
    %c0_38 = arith.constant 0 : index
    %c0_39 = arith.constant 0 : index
    %174 = vector.load %arg5[%c0_38, %c0_39] : memref<2x256xf32, #tpu.memory_space<vmem>>, vector<2x256xf32>
    tpu.vector_store %arg5[%c0_38, %c0_39], %173 {strides = array<i32>} : memref<2x256xf32, #tpu.memory_space<vmem>>, vector<2x256xf32>,
    %c0_40 = arith.constant 0 : index
    %c0_41 = arith.constant 0 : index
    %175 = vector.load %arg6[%c0_40, %c0_41] : memref<2x256xf32, #tpu.memory_space<vmem>>, vector<2x256xf32>
    tpu.vector_store %arg6[%c0_40, %c0_41], %171 {strides = array<i32>} : memref<2x256xf32, #tpu.memory_space<vmem>>, vector<2x256xf32>,
    %c0_i32_42 = arith.constant 0 : i32
    %176 = arith.cmpi eq, %arg0, %c0_i32_42 : i32
    %177 = arith.extui %176 : i1 to i32
    %c0_i32_43 = arith.constant 0 : i32
    %178 = arith.cmpi ne, %177, %c0_i32_43 : i32
    scf.if %178 {
      %c0_44 = arith.constant 0 : index
      %c0_45 = arith.constant 0 : index
      %c0_46 = arith.constant 0 : index
      %179 = vector.load %arg3[%c0_44, %c0_45, %c0_46] : memref<1x2x256xf32, #tpu.memory_space<vmem>>, vector<1x2x256xf32>
      %180 = vector.shape_cast %179 : vector<1x2x256xf32> to vector<2x256xf32>
      %181 = vector.shape_cast %173 : vector<2x256xf32> to vector<1x2x256xf32>
      tpu.vector_store %arg3[%c0_44, %c0_45, %c0_46], %181 {strides = array<i32>} : memref<1x2x256xf32, #tpu.memory_space<vmem>>, vector<1x2x256xf32>,
      %c0_47 = arith.constant 0 : index
      %c0_48 = arith.constant 0 : index
      %c0_49 = arith.constant 0 : index
      %182 = vector.load %arg4[%c0_47, %c0_48, %c0_49] : memref<1x2x256xf32, #tpu.memory_space<vmem>>, vector<1x2x256xf32>
      %183 = vector.shape_cast %182 : vector<1x2x256xf32> to vector<2x256xf32>
      %184 = vector.shape_cast %171 : vector<2x256xf32> to vector<1x2x256xf32>
      tpu.vector_store %arg4[%c0_47, %c0_48, %c0_49], %184 {strides = array<i32>} : memref<1x2x256xf32, #tpu.memory_space<vmem>>, vector<1x2x256xf32>,
    } else {
    }
    return
  }
  func.func @transform_0(%arg0: i32) -> (i32, i32, i32) {
    %c0_i32 = arith.constant 0 : i32
    %c0_i32_0 = arith.constant 0 : i32
    %c0_i32_1 = arith.constant 0 : i32
    return %arg0, %c0_i32, %c0_i32_0 : i32, i32, i32
  }
  func.func @transform_1(%arg0: i32) -> (i32, i32) {
    %c0_i32 = arith.constant 0 : i32
    %c0_i32_0 = arith.constant 0 : i32
    %c0_i32_1 = arith.constant 0 : i32
    return %c0_i32, %c0_i32_0 : i32, i32
  }
  func.func @transform_2(%arg0: i32) -> (i32, i32, i32) {
    %c0_i32 = arith.constant 0 : i32
    %c0_i32_0 = arith.constant 0 : i32
    %c0_i32_1 = arith.constant 0 : i32
    %c0_i32_2 = arith.constant 0 : i32
    return %c0_i32, %c0_i32_0, %c0_i32_1 : i32, i32, i32
  }
  func.func @transform_3(%arg0: i32) -> (i32, i32, i32) {
    %c0_i32 = arith.constant 0 : i32
    %c0_i32_0 = arith.constant 0 : i32
    %c0_i32_1 = arith.constant 0 : i32
    %c0_i32_2 = arith.constant 0 : i32
    return %c0_i32, %c0_i32_0, %c0_i32_1 : i32, i32, i32
  }
}

</mosaic_0001>

<llo_original>
// kernel: tpu_custom_call.1
$region0: #{tpu_custom_call.1}
  #allocation0 [shape = 'u32[]', space=smem, size = 0x4, offset = 0x4, fixed_abs, tag = 'smem constant byte address 0x4 - core index']
  #allocation1 [shape = 'u32[144,128]{1,0:T(1,128)}', space=vmem, size = 0x12000, scoped, tag = 'internal scratch']
  #allocation2 [shape = 'f32[2,256]{1,0:T(2,128)}', space=vmem, size = 0x800, scoped, tag = 'scratch operand']
  #allocation3 [shape = 'f32[2,256]{1,0:T(2,128)}', space=vmem, size = 0x800, scoped, tag = 'scratch operand']
  %s0 = inlined_call_operand.hbm [shape: f32[8,2,1024], index: 0, kind: input, shape index: {}]
  %s1 = inlined_call_operand.hbm [shape: f32[256,1024], index: 1, kind: input, shape index: {}]
  %s2 = inlined_call_operand.hbm [shape: f32[1,2,256], index: 2, kind: output, shape index: {0}]
  %s3 = inlined_call_operand.hbm [shape: f32[1,2,256], index: 3, kind: output, shape index: {1}]
  %4 = xla_tuple %s2, %s3
  %s5 = sld [smem:[#allocation0]]
  $region42: #{tpu_custom_call.1} parent=0
    _
  %s7 = ssub.s32 1, %s5
  %s8 = scalar_select 0, %s7, %s5
  $region1: #{tpu_custom_call.1} parent=0
    #allocation4 [shape = 'u8[65536]{0}', space=vmem, size = 0x10000, scoped, tag = 'input window, operand 0, single buffered']
    #allocation5 [shape = 's32[1]{0}', space=sflag, size = 0x4, scoped, tag = 'scoped memory for tpu_custom_call.1']
    #allocation6 [shape = 's32[1]{0}', space=sflag, size = 0x4, scoped, tag = 'scoped memory for tpu_custom_call.1']
    #allocation7 [shape = 'u8[1048576]{0}', space=vmem, size = 0x100000, scoped, tag = 'input window, operand 1, single buffered']
    #allocation8 [shape = 's32[1]{0}', space=sflag, size = 0x4, scoped, tag = 'scoped memory for tpu_custom_call.1']
    #allocation9 [shape = 'u8[2048]{0}', space=vmem, size = 0x800, scoped, tag = 'output window, operand 0, single buffered']
    #allocation10 [shape = 'u8[2048]{0}', space=vmem, size = 0x800, scoped, tag = 'output window, operand 1, single buffered']
    #allocation11 [shape = 's32[1]{0}', space=sflag, size = 0x4, scoped, tag = 'scoped memory for tpu_custom_call.1']
    %9 = vsyncpa [#allocation5], 0
    %10 = vsyncpa [#allocation8], 0
    %11 = vsyncpa [#allocation6], 0
    %12 = vsyncpa [#allocation11], 0
    // Predicated region
    $region2: #{tpu_custom_call.1} parent=1 // pred_check
      _
    $region3: #{tpu_custom_call.1} parent=1 // pred_check_branch
      %14 = sbr.rel (0) target = $region5
    $region4: #{tpu_custom_call.1} parent=1 // pred_region
      %s16 = ssub.s32 2048, 2048
      %17 = vsyncadd [#allocation5], %s16
      %s18 = sshll.u32 [#allocation4], 4
      %s19 = int_to_ptr.vmem [resolvable:$true] %s18
      %24 = dma.hbm_to_vmem [thread:$0]  %s0, 2048, %s19, [#allocation5], 256, 256, 16
    $region5: #{tpu_custom_call.1} parent=1 // pred_fallthru
      _
    // Predicated region
    $region6: #{tpu_custom_call.1} parent=1 // pred_check
      _
    $region7: #{tpu_custom_call.1} parent=1 // pred_check_branch
      %26 = sbr.rel (0) target = $region9
    $region8: #{tpu_custom_call.1} parent=1 // pred_region
      %s28 = ssub.s32 32768, 32768
      %29 = vsyncadd [#allocation8], %s28
      %s30 = sshll.u32 [#allocation7], 4
      %s31 = int_to_ptr.vmem [resolvable:$true] %s30
      %36 = dma.hbm_to_vmem [thread:$0]  %s1, 32768, %s31, [#allocation8], 1024, 1024, 64
    $region9: #{tpu_custom_call.1} parent=1 // pred_fallthru
      _
    // Predicated region
    $region10: #{tpu_custom_call.1} parent=1 // pred_check
      _
    $region11: #{tpu_custom_call.1} parent=1 // pred_check_branch
      %38 = sbr.rel (0) target = $region13
    $region12: #{tpu_custom_call.1} parent=1 // pred_region
      %39 = dma.done [#allocation5], 2048
    $region13: #{tpu_custom_call.1} parent=1 // pred_fallthru
      _
    // Predicated region
    $region14: #{tpu_custom_call.1} parent=1 // pred_check
      _
    $region15: #{tpu_custom_call.1} parent=1 // pred_check_branch
      %41 = sbr.rel (0) target = $region17
    $region16: #{tpu_custom_call.1} parent=1 // pred_region
      %42 = dma.done [#allocation8], 32768
    $region17: #{tpu_custom_call.1} parent=1 // pred_fallthru
      _
    %p43 = scmp.eq.s32.totalorder 0, 0
    // Predicated region
    $region18: #{tpu_custom_call.1} parent=1 // pred_check
      %p44 = pneg %p43
    $region19: #{tpu_custom_call.1} parent=1 // pred_check_branch
      %46 = sbr.rel (%p44) target = $region21
    $region20: #{tpu_custom_call.1} parent=1 // pred_region
      %47 = vst [vmem:[#allocation2] sm:$0xf] 0.0
      %48 = vst [vmem:[#allocation3] sm:$0xf] 0.0
    $region21: #{tpu_custom_call.1} parent=1 // pred_fallthru
      _
    %v49 = vld [vmem:[#allocation7] sm:$0xff]
    %v50 = vld [vmem:[#allocation7 + $0x8] sm:$0xff]
    %v51 = vld [vmem:[#allocation7 + $0x10] sm:$0xff]
    %v52 = vld [vmem:[#allocation7 + $0x18] sm:$0xff]
    %v53 = vld [vmem:[#allocation7 + $0x20] sm:$0xff]
    %v54 = vld [vmem:[#allocation7 + $0x28] sm:$0xff]
    %v55 = vld [vmem:[#allocation7 + $0x30] sm:$0xff]
    %v56 = vld [vmem:[#allocation7 + $0x38] sm:$0xff]
    %v57 = vld [vmem:[#allocation7 + $0x40] sm:$0xff]
    %v58 = vld [vmem:[#allocation7 + $0x48] sm:$0xff]
    %v59 = vld [vmem:[#allocation7 + $0x50] sm:$0xff]
    %v60 = vld [vmem:[#allocation7 + $0x58] sm:$0xff]
    %v61 = vld [vmem:[#allocation7 + $0x60] sm:$0xff]
    %v62 = vld [vmem:[#allocation7 + $0x68] sm:$0xff]
    %v63 = vld [vmem:[#allocation7 + $0x70] sm:$0xff]
    %v64 = vld [vmem:[#allocation7 + $0x78] sm:$0xff]
    %v65 = vld [vmem:[#allocation7 + $0x80] sm:$0xff]
    %v66 = vld [vmem:[#allocation7 + $0x88] sm:$0xff]
    %v67 = vld [vmem:[#allocation7 + $0x90] sm:$0xff]
    %v68 = vld [vmem:[#allocation7 + $0x98] sm:$0xff]
    %v69 = vld [vmem:[#allocation7 + $0xa0] sm:$0xff]
    %v70 = vld [vmem:[#allocation7 + $0xa8] sm:$0xff]
    %v71 = vld [vmem:[#allocation7 + $0xb0] sm:$0xff]
    %v72 = vld [vmem:[#allocation7 + $0xb8] sm:$0xff]
    %v73 = vld [vmem:[#allocation7 + $0xc0] sm:$0xff]
    %v74 = vld [vmem:[#allocation7 + $0xc8] sm:$0xff]
    %v75 = vld [vmem:[#allocation7 + $0xd0] sm:$0xff]
    %v76 = vld [vmem:[#allocation7 + $0xd8] sm:$0xff]
    %v77 = vld [vmem:[#allocation7 + $0xe0] sm:$0xff]
    %v78 = vld [vmem:[#allocation7 + $0xe8] sm:$0xff]
    %v79 = vld [vmem:[#allocation7 + $0xf0] sm:$0xff]
    %v80 = vld [vmem:[#allocation7 + $0xf8] sm:$0xff]
    %v81 = vld [vmem:[#allocation7 + $0x100] sm:$0xff]
    %v82 = vld [vmem:[#allocation7 + $0x108] sm:$0xff]
    %v83 = vld [vmem:[#allocation7 + $0x110] sm:$0xff]
    %v84 = vld [vmem:[#allocation7 + $0x118] sm:$0xff]
    %v85 = vld [vmem:[#allocation7 + $0x120] sm:$0xff]
    %v86 = vld [vmem:[#allocation7 + $0x128] sm:$0xff]
    %v87 = vld [vmem:[#allocation7 + $0x130] sm:$0xff]
    %v88 = vld [vmem:[#allocation7 + $0x138] sm:$0xff]
    %v89 = vld [vmem:[#allocation7 + $0x140] sm:$0xff]
    %v90 = vld [vmem:[#allocation7 + $0x148] sm:$0xff]
    %v91 = vld [vmem:[#allocation7 + $0x150] sm:$0xff]
    %v92 = vld [vmem:[#allocation7 + $0x158] sm:$0xff]
    %v93 = vld [vmem:[#allocation7 + $0x160] sm:$0xff]
    %v94 = vld [vmem:[#allocation7 + $0x168] sm:$0xff]
    %v95 = vld [vmem:[#allocation7 + $0x170] sm:$0xff]
    %v96 = vld [vmem:[#allocation7 + $0x178] sm:$0xff]
    %v97 = vld [vmem:[#allocation7 + $0x180] sm:$0xff]
    %v98 = vld [vmem:[#allocation7 + $0x188] sm:$0xff]
    %v99 = vld [vmem:[#allocation7 + $0x190] sm:$0xff]
    %v100 = vld [vmem:[#allocation7 + $0x198] sm:$0xff]
    %v101 = vld [vmem:[#allocation7 + $0x1a0] sm:$0xff]
    %v102 = vld [vmem:[#allocation7 + $0x1a8] sm:$0xff]
    %v103 = vld [vmem:[#allocation7 + $0x1b0] sm:$0xff]
    %v104 = vld [vmem:[#allocation7 + $0x1b8] sm:$0xff]
    %v105 = vld [vmem:[#allocation7 + $0x1c0] sm:$0xff]
    %v106 = vld [vmem:[#allocation7 + $0x1c8] sm:$0xff]
    %v107 = vld [vmem:[#allocation7 + $0x1d0] sm:$0xff]
    %v108 = vld [vmem:[#allocation7 + $0x1d8] sm:$0xff]
    %v109 = vld [vmem:[#allocation7 + $0x1e0] sm:$0xff]
    %v110 = vld [vmem:[#allocation7 + $0x1e8] sm:$0xff]
    %v111 = vld [vmem:[#allocation7 + $0x1f0] sm:$0xff]
    %v112 = vld [vmem:[#allocation7 + $0x1f8] sm:$0xff]
    %v113 = vld [vmem:[#allocation7 + $0x200] sm:$0xff]
    %v114 = vld [vmem:[#allocation7 + $0x208] sm:$0xff]
    %v115 = vld [vmem:[#allocation7 + $0x210] sm:$0xff]
    %v116 = vld [vmem:[#allocation7 + $0x218] sm:$0xff]
    %v117 = vld [vmem:[#allocation7 + $0x220] sm:$0xff]
    %v118 = vld [vmem:[#allocation7 + $0x228] sm:$0xff]
    %v119 = vld [vmem:[#allocation7 + $0x230] sm:$0xff]
    %v120 = vld [vmem:[#allocation7 + $0x238] sm:$0xff]
    %v121 = vld [vmem:[#allocation7 + $0x240] sm:$0xff]
    %v122 = vld [vmem:[#allocation7 + $0x248] sm:$0xff]
    %v123 = vld [vmem:[#allocation7 + $0x250] sm:$0xff]
    %v124 = vld [vmem:[#allocation7 + $0x258] sm:$0xff]
    %v125 = vld [vmem:[#allocation7 + $0x260] sm:$0xff]
    %v126 = vld [vmem:[#allocation7 + $0x268] sm:$0xff]
    %v127 = vld [vmem:[#allocation7 + $0x270] sm:$0xff]
    %v128 = vld [vmem:[#allocation7 + $0x278] sm:$0xff]
    %v129 = vld [vmem:[#allocation7 + $0x280] sm:$0xff]
    %v130 = vld [vmem:[#allocation7 + $0x288] sm:$0xff]
    %v131 = vld [vmem:[#allocation7 + $0x290] sm:$0xff]
    %v132 = vld [vmem:[#allocation7 + $0x298] sm:$0xff]
    %v133 = vld [vmem:[#allocation7 + $0x2a0] sm:$0xff]
    %v134 = vld [vmem:[#allocation7 + $0x2a8] sm:$0xff]
    %v135 = vld [vmem:[#allocation7 + $0x2b0] sm:$0xff]
    %v136 = vld [vmem:[#allocation7 + $0x2b8] sm:$0xff]
    %v137 = vld [vmem:[#allocation7 + $0x2c0] sm:$0xff]
    %v138 = vld [vmem:[#allocation7 + $0x2c8] sm:$0xff]
    %v139 = vld [vmem:[#allocation7 + $0x2d0] sm:$0xff]
    %v140 = vld [vmem:[#allocation7 + $0x2d8] sm:$0xff]
    %v141 = vld [vmem:[#allocation7 + $0x2e0] sm:$0xff]
    %v142 = vld [vmem:[#allocation7 + $0x2e8] sm:$0xff]
    %v143 = vld [vmem:[#allocation7 + $0x2f0] sm:$0xff]
    %v144 = vld [vmem:[#allocation7 + $0x2f8] sm:$0xff]
    %v145 = vld [vmem:[#allocation7 + $0x300] sm:$0xff]
    %v146 = vld [vmem:[#allocation7 + $0x308] sm:$0xff]
    %v147 = vld [vmem:[#allocation7 + $0x310] sm:$0xff]
    %v148 = vld [vmem:[#allocation7 + $0x318] sm:$0xff]
    %v149 = vld [vmem:[#allocation7 + $0x320] sm:$0xff]
    %v150 = vld [vmem:[#allocation7 + $0x328] sm:$0xff]
    %v151 = vld [vmem:[#allocation7 + $0x330] sm:$0xff]
    %v152 = vld [vmem:[#allocation7 + $0x338] sm:$0xff]
    %v153 = vld [vmem:[#allocation7 + $0x340] sm:$0xff]
    %v154 = vld [vmem:[#allocation7 + $0x348] sm:$0xff]
    %v155 = vld [vmem:[#allocation7 + $0x350] sm:$0xff]
    %v156 = vld [vmem:[#allocation7 + $0x358] sm:$0xff]
    %v157 = vld [vmem:[#allocation7 + $0x360] sm:$0xff]
    %v158 = vld [vmem:[#allocation7 + $0x368] sm:$0xff]
    %v159 = vld [vmem:[#allocation7 + $0x370] sm:$0xff]
    %v160 = vld [vmem:[#allocation7 + $0x378] sm:$0xff]
    %v161 = vld [vmem:[#allocation7 + $0x380] sm:$0xff]
    %v162 = vld [vmem:[#allocation7 + $0x388] sm:$0xff]
    %v163 = vld [vmem:[#allocation7 + $0x390] sm:$0xff]
    %v164 = vld [vmem:[#allocation7 + $0x398] sm:$0xff]
    %v165 = vld [vmem:[#allocation7 + $0x3a0] sm:$0xff]
    %v166 = vld [vmem:[#allocation7 + $0x3a8] sm:$0xff]
    %v167 = vld [vmem:[#allocation7 + $0x3b0] sm:$0xff]
    %v168 = vld [vmem:[#allocation7 + $0x3b8] sm:$0xff]
    %v169 = vld [vmem:[#allocation7 + $0x3c0] sm:$0xff]
    %v170 = vld [vmem:[#allocation7 + $0x3c8] sm:$0xff]
    %v171 = vld [vmem:[#allocation7 + $0x3d0] sm:$0xff]
    %v172 = vld [vmem:[#allocation7 + $0x3d8] sm:$0xff]
    %v173 = vld [vmem:[#allocation7 + $0x3e0] sm:$0xff]
    %v174 = vld [vmem:[#allocation7 + $0x3e8] sm:$0xff]
    %v175 = vld [vmem:[#allocation7 + $0x3f0] sm:$0xff]
    %v176 = vld [vmem:[#allocation7 + $0x3f8] sm:$0xff]
    %v177 = vld [vmem:[#allocation7 + $0x400] sm:$0xff]
    %v178 = vld [vmem:[#allocation7 + $0x408] sm:$0xff]
    %v179 = vld [vmem:[#allocation7 + $0x410] sm:$0xff]
    %v180 = vld [vmem:[#allocation7 + $0x418] sm:$0xff]
    %v181 = vld [vmem:[#allocation7 + $0x420] sm:$0xff]
    %v182 = vld [vmem:[#allocation7 + $0x428] sm:$0xff]
    %v183 = vld [vmem:[#allocation7 + $0x430] sm:$0xff]
    %v184 = vld [vmem:[#allocation7 + $0x438] sm:$0xff]
    %v185 = vld [vmem:[#allocation7 + $0x440] sm:$0xff]
    %v186 = vld [vmem:[#allocation7 + $0x448] sm:$0xff]
    %v187 = vld [vmem:[#allocation7 + $0x450] sm:$0xff]
    %v188 = vld [vmem:[#allocation7 + $0x458] sm:$0xff]
    %v189 = vld [vmem:[#allocation7 + $0x460] sm:$0xff]
    %v190 = vld [vmem:[#allocation7 + $0x468] sm:$0xff]
    %v191 = vld [vmem:[#allocation7 + $0x470] sm:$0xff]
    %v192 = vld [vmem:[#allocation7 + $0x478] sm:$0xff]
    %v193 = vld [vmem:[#allocation7 + $0x480] sm:$0xff]
    %v194 = vld [vmem:[#allocation7 + $0x488] sm:$0xff]
    %v195 = vld [vmem:[#allocation7 + $0x490] sm:$0xff]
    %v196 = vld [vmem:[#allocation7 + $0x498] sm:$0xff]
    %v197 = vld [vmem:[#allocation7 + $0x4a0] sm:$0xff]
    %v198 = vld [vmem:[#allocation7 + $0x4a8] sm:$0xff]
    %v199 = vld [vmem:[#allocation7 + $0x4b0] sm:$0xff]
    %v200 = vld [vmem:[#allocation7 + $0x4b8] sm:$0xff]
    %v201 = vld [vmem:[#allocation7 + $0x4c0] sm:$0xff]
    %v202 = vld [vmem:[#allocation7 + $0x4c8] sm:$0xff]
    %v203 = vld [vmem:[#allocation7 + $0x4d0] sm:$0xff]
    %v204 = vld [vmem:[#allocation7 + $0x4d8] sm:$0xff]
    %v205 = vld [vmem:[#allocation7 + $0x4e0] sm:$0xff]
    %v206 = vld [vmem:[#allocation7 + $0x4e8] sm:$0xff]
    %v207 = vld [vmem:[#allocation7 + $0x4f0] sm:$0xff]
    %v208 = vld [vmem:[#allocation7 + $0x4f8] sm:$0xff]
    %v209 = vld [vmem:[#allocation7 + $0x500] sm:$0xff]
    %v210 = vld [vmem:[#allocation7 + $0x508] sm:$0xff]
    %v211 = vld [vmem:[#allocation7 + $0x510] sm:$0xff]
    %v212 = vld [vmem:[#allocation7 + $0x518] sm:$0xff]
    %v213 = vld [vmem:[#allocation7 + $0x520] sm:$0xff]
    %v214 = vld [vmem:[#allocation7 + $0x528] sm:$0xff]
    %v215 = vld [vmem:[#allocation7 + $0x530] sm:$0xff]
    %v216 = vld [vmem:[#allocation7 + $0x538] sm:$0xff]
    %v217 = vld [vmem:[#allocation7 + $0x540] sm:$0xff]
    %v218 = vld [vmem:[#allocation7 + $0x548] sm:$0xff]
    %v219 = vld [vmem:[#allocation7 + $0x550] sm:$0xff]
    %v220 = vld [vmem:[#allocation7 + $0x558] sm:$0xff]
    %v221 = vld [vmem:[#allocation7 + $0x560] sm:$0xff]
    %v222 = vld [vmem:[#allocation7 + $0x568] sm:$0xff]
    %v223 = vld [vmem:[#allocation7 + $0x570] sm:$0xff]
    %v224 = vld [vmem:[#allocation7 + $0x578] sm:$0xff]
    %v225 = vld [vmem:[#allocation7 + $0x580] sm:$0xff]
    %v226 = vld [vmem:[#allocation7 + $0x588] sm:$0xff]
    %v227 = vld [vmem:[#allocation7 + $0x590] sm:$0xff]
    %v228 = vld [vmem:[#allocation7 + $0x598] sm:$0xff]
    %v229 = vld [vmem:[#allocation7 + $0x5a0] sm:$0xff]
    %v230 = vld [vmem:[#allocation7 + $0x5a8] sm:$0xff]
    %v231 = vld [vmem:[#allocation7 + $0x5b0] sm:$0xff]
    %v232 = vld [vmem:[#allocation7 + $0x5b8] sm:$0xff]
    %v233 = vld [vmem:[#allocation7 + $0x5c0] sm:$0xff]
    %v234 = vld [vmem:[#allocation7 + $0x5c8] sm:$0xff]
    %v235 = vld [vmem:[#allocation7 + $0x5d0] sm:$0xff]
    %v236 = vld [vmem:[#allocation7 + $0x5d8] sm:$0xff]
    %v237 = vld [vmem:[#allocation7 + $0x5e0] sm:$0xff]
    %v238 = vld [vmem:[#allocation7 + $0x5e8] sm:$0xff]
    %v239 = vld [vmem:[#allocation7 + $0x5f0] sm:$0xff]
    %v240 = vld [vmem:[#allocation7 + $0x5f8] sm:$0xff]
    %v241 = vld [vmem:[#allocation7 + $0x600] sm:$0xff]
    %v242 = vld [vmem:[#allocation7 + $0x608] sm:$0xff]
    %v243 = vld [vmem:[#allocation7 + $0x610] sm:$0xff]
    %v244 = vld [vmem:[#allocation7 + $0x618] sm:$0xff]
    %v245 = vld [vmem:[#allocation7 + $0x620] sm:$0xff]
    %v246 = vld [vmem:[#allocation7 + $0x628] sm:$0xff]
    %v247 = vld [vmem:[#allocation7 + $0x630] sm:$0xff]
    %v248 = vld [vmem:[#allocation7 + $0x638] sm:$0xff]
    %v249 = vld [vmem:[#allocation7 + $0x640] sm:$0xff]
    %v250 = vld [vmem:[#allocation7 + $0x648] sm:$0xff]
    %v251 = vld [vmem:[#allocation7 + $0x650] sm:$0xff]
    %v252 = vld [vmem:[#allocation7 + $0x658] sm:$0xff]
    %v253 = vld [vmem:[#allocation7 + $0x660] sm:$0xff]
    %v254 = vld [vmem:[#allocation7 + $0x668] sm:$0xff]
    %v255 = vld [vmem:[#allocation7 + $0x670] sm:$0xff]
    %v256 = vld [vmem:[#allocation7 + $0x678] sm:$0xff]
    %v257 = vld [vmem:[#allocation7 + $0x680] sm:$0xff]
    %v258 = vld [vmem:[#allocation7 + $0x688] sm:$0xff]
    %v259 = vld [vmem:[#allocation7 + $0x690] sm:$0xff]
    %v260 = vld [vmem:[#allocation7 + $0x698] sm:$0xff]
    %v261 = vld [vmem:[#allocation7 + $0x6a0] sm:$0xff]
    %v262 = vld [vmem:[#allocation7 + $0x6a8] sm:$0xff]
    %v263 = vld [vmem:[#allocation7 + $0x6b0] sm:$0xff]
    %v264 = vld [vmem:[#allocation7 + $0x6b8] sm:$0xff]
    %v265 = vld [vmem:[#allocation7 + $0x6c0] sm:$0xff]
    %v266 = vld [vmem:[#allocation7 + $0x6c8] sm:$0xff]
    %v267 = vld [vmem:[#allocation7 + $0x6d0] sm:$0xff]
    %v268 = vld [vmem:[#allocation7 + $0x6d8] sm:$0xff]
    %v269 = vld [vmem:[#allocation7 + $0x6e0] sm:$0xff]
    %v270 = vld [vmem:[#allocation7 + $0x6e8] sm:$0xff]
    %v271 = vld [vmem:[#allocation7 + $0x6f0] sm:$0xff]
    %v272 = vld [vmem:[#allocation7 + $0x6f8] sm:$0xff]
    %v273 = vld [vmem:[#allocation7 + $0x700] sm:$0xff]
    %v274 = vld [vmem:[#allocation7 + $0x708] sm:$0xff]
    %v275 = vld [vmem:[#allocation7 + $0x710] sm:$0xff]
    %v276 = vld [vmem:[#allocation7 + $0x718] sm:$0xff]
    %v277 = vld [vmem:[#allocation7 + $0x720] sm:$0xff]
    %v278 = vld [vmem:[#allocation7 + $0x728] sm:$0xff]
    %v279 = vld [vmem:[#allocation7 + $0x730] sm:$0xff]
    %v280 = vld [vmem:[#allocation7 + $0x738] sm:$0xff]
    %v281 = vld [vmem:[#allocation7 + $0x740] sm:$0xff]
    %v282 = vld [vmem:[#allocation7 + $0x748] sm:$0xff]
    %v283 = vld [vmem:[#allocation7 + $0x750] sm:$0xff]
    %v284 = vld [vmem:[#allocation7 + $0x758] sm:$0xff]
    %v285 = vld [vmem:[#allocation7 + $0x760] sm:$0xff]
    %v286 = vld [vmem:[#allocation7 + $0x768] sm:$0xff]
    %v287 = vld [vmem:[#allocation7 + $0x770] sm:$0xff]
    %v288 = vld [vmem:[#allocation7 + $0x778] sm:$0xff]
    %v289 = vld [vmem:[#allocation7 + $0x780] sm:$0xff]
    %v290 = vld [vmem:[#allocation7 + $0x788] sm:$0xff]
    %v291 = vld [vmem:[#allocation7 + $0x790] sm:$0xff]
    %v292 = vld [vmem:[#allocation7 + $0x798] sm:$0xff]
    %v293 = vld [vmem:[#allocation7 + $0x7a0] sm:$0xff]
    %v294 = vld [vmem:[#allocation7 + $0x7a8] sm:$0xff]
    %v295 = vld [vmem:[#allocation7 + $0x7b0] sm:$0xff]
    %v296 = vld [vmem:[#allocation7 + $0x7b8] sm:$0xff]
    %v297 = vld [vmem:[#allocation7 + $0x7c0] sm:$0xff]
    %v298 = vld [vmem:[#allocation7 + $0x7c8] sm:$0xff]
    %v299 = vld [vmem:[#allocation7 + $0x7d0] sm:$0xff]
    %v300 = vld [vmem:[#allocation7 + $0x7d8] sm:$0xff]
    %v301 = vld [vmem:[#allocation7 + $0x7e0] sm:$0xff]
    %v302 = vld [vmem:[#allocation7 + $0x7e8] sm:$0xff]
    %v303 = vld [vmem:[#allocation7 + $0x7f0] sm:$0xff]
    %v304 = vld [vmem:[#allocation7 + $0x7f8] sm:$0xff]
    %v305 = vld [vmem:[#allocation2] sm:$0xf]
    %v306 = vld [vmem:[#allocation3] sm:$0xf]
    %v307 = vld [vmem:[#allocation4] sm:$0xff]
    %v308 = vld [vmem:[#allocation4 + $0x8] sm:$0xff]
    %v311 = vunpack.c.l.s4 1983009808
    %v312 = vunpack.c.0.s8 %v311
    %v313 = vlaneseq
    %v314 = vshrl.u32 %v313, 7
    %v315 = vsub.s32 %v312, %v314
    %v316 = vrot.slane %v305, %v315
    %v317 = vcombine.high %v316, %v316
    %320 = vmatprep.subr.mxu0 %v170
    %321 = vmatpush1.msra.mxu0 %v169
    %322 = vmatprep.subr.mxu0 %v162
    %323 = vmatpush1.msra.mxu0 %v161
    %324 = vmatprep.subr.mxu0 %v154
    %325 = vmatpush1.msra.mxu0 %v153
    %326 = vmatprep.subr.mxu0 %v146
    %327 = vmatpush1.msra.mxu0 %v145
    %328 = vmatprep.subr.mxu0 %v138
    %329 = vmatpush1.msra.mxu0 %v137
    %330 = vmatprep.subr.mxu0 %v130
    %331 = vmatpush1.msra.mxu0 %v129
    %332 = vmatprep.subr.mxu0 %v122
    %333 = vmatpush1.msra.mxu0 %v121
    %334 = vmatprep.subr.mxu0 %v114
    %335 = vmatpush1.msra.mxu0 %v113
    %336 = vmatprep.subr.mxu0 %v106
    %337 = vmatpush1.msra.mxu0 %v105
    %338 = vmatprep.subr.mxu0 %v98
    %339 = vmatpush1.msra.mxu0 %v97
    %340 = vmatprep.subr.mxu0 %v90
    %341 = vmatpush1.msra.mxu0 %v89
    %342 = vmatprep.subr.mxu0 %v82
    %343 = vmatpush1.msra.mxu0 %v81
    %344 = vmatprep.subr.mxu0 %v74
    %345 = vmatpush1.msra.mxu0 %v73
    %346 = vmatprep.subr.mxu0 %v66
    %347 = vmatpush1.msra.mxu0 %v65
    %348 = vmatprep.subr.mxu0 %v58
    %349 = vmatpush1.msra.mxu0 %v57
    %350 = vmatprep.subr.mxu0 %v50
    %351 = vmatpush1.msra.mxu0 %v49
    %352 = vmatprep.subr.mxu0 %v298
    %353 = vmatpush2.msra.mxu0 %v297
    %354 = vmatprep.subr.mxu0 %v290
    %355 = vmatpush2.msra.mxu0 %v289
    %356 = vmatprep.subr.mxu0 %v282
    %357 = vmatpush2.msra.mxu0 %v281
    %358 = vmatprep.subr.mxu0 %v274
    %359 = vmatpush2.msra.mxu0 %v273
    %360 = vmatprep.subr.mxu0 %v266
    %361 = vmatpush2.msra.mxu0 %v265
    %362 = vmatprep.subr.mxu0 %v258
    %363 = vmatpush2.msra.mxu0 %v257
    %364 = vmatprep.subr.mxu0 %v250
    %365 = vmatpush2.msra.mxu0 %v249
    %366 = vmatprep.subr.mxu0 %v242
    %367 = vmatpush2.msra.mxu0 %v241
    %368 = vmatprep.subr.mxu0 %v234
    %369 = vmatpush2.msra.mxu0 %v233
    %370 = vmatprep.subr.mxu0 %v226
    %371 = vmatpush2.msra.mxu0 %v225
    %372 = vmatprep.subr.mxu0 %v218
    %373 = vmatpush2.msra.mxu0 %v217
    %374 = vmatprep.subr.mxu0 %v210
    %375 = vmatpush2.msra.mxu0 %v209
    %376 = vmatprep.subr.mxu0 %v202
    %377 = vmatpush2.msra.mxu0 %v201
    %378 = vmatprep.subr.mxu0 %v194
    %379 = vmatpush2.msra.mxu0 %v193
    %380 = vmatprep.subr.mxu0 %v186
    %381 = vmatpush2.msra.mxu0 %v185
    %382 = vmatprep.subr.mxu0 %v178
    %383 = vmatpush2.msra.mxu0 %v177
    %384 = vmatprep.mubr.f32.mxu0 %v317
    %385 = vmatmul.mubr.f32.gmra.mxu0 %v316
    %v386 = vpop.f32.mrf.mxu0
    %v387 = vadd.f32 0.0, %v386
    %v388 = vpop.f32.mrf.mxu0
    %v389 = vadd.f32 0.0, %v388
    %390 = vdwg.mxu0
    %391 = vmatprep.subr.mxu0 %v172
    %392 = vmatpush1.msra.mxu0 %v171
    %393 = vmatprep.subr.mxu0 %v164
    %394 = vmatpush1.msra.mxu0 %v163
    %395 = vmatprep.subr.mxu0 %v156
    %396 = vmatpush1.msra.mxu0 %v155
    %397 = vmatprep.subr.mxu0 %v148
    %398 = vmatpush1.msra.mxu0 %v147
    %399 = vmatprep.subr.mxu0 %v140
    %400 = vmatpush1.msra.mxu0 %v139
    %401 = vmatprep.subr.mxu0 %v132
    %402 = vmatpush1.msra.mxu0 %v131
    %403 = vmatprep.subr.mxu0 %v124
    %404 = vmatpush1.msra.mxu0 %v123
    %405 = vmatprep.subr.mxu0 %v116
    %406 = vmatpush1.msra.mxu0 %v115
    %407 = vmatprep.subr.mxu0 %v108
    %408 = vmatpush1.msra.mxu0 %v107
    %409 = vmatprep.subr.mxu0 %v100
    %410 = vmatpush1.msra.mxu0 %v99
    %411 = vmatprep.subr.mxu0 %v92
    %412 = vmatpush1.msra.mxu0 %v91
    %413 = vmatprep.subr.mxu0 %v84
    %414 = vmatpush1.msra.mxu0 %v83
    %415 = vmatprep.subr.mxu0 %v76
    %416 = vmatpush1.msra.mxu0 %v75
    %417 = vmatprep.subr.mxu0 %v68
    %418 = vmatpush1.msra.mxu0 %v67
    %419 = vmatprep.subr.mxu0 %v60
    %420 = vmatpush1.msra.mxu0 %v59
    %421 = vmatprep.subr.mxu0 %v52
    %422 = vmatpush1.msra.mxu0 %v51
    %423 = vmatprep.subr.mxu0 %v300
    %424 = vmatpush2.msra.mxu0 %v299
    %425 = vmatprep.subr.mxu0 %v292
    %426 = vmatpush2.msra.mxu0 %v291
    %427 = vmatprep.subr.mxu0 %v284
    %428 = vmatpush2.msra.mxu0 %v283
    %429 = vmatprep.subr.mxu0 %v276
    %430 = vmatpush2.msra.mxu0 %v275
    %431 = vmatprep.subr.mxu0 %v268
    %432 = vmatpush2.msra.mxu0 %v267
    %433 = vmatprep.subr.mxu0 %v260
    %434 = vmatpush2.msra.mxu0 %v259
    %435 = vmatprep.subr.mxu0 %v252
    %436 = vmatpush2.msra.mxu0 %v251
    %437 = vmatprep.subr.mxu0 %v244
    %438 = vmatpush2.msra.mxu0 %v243
    %439 = vmatprep.subr.mxu0 %v236
    %440 = vmatpush2.msra.mxu0 %v235
    %441 = vmatprep.subr.mxu0 %v228
    %442 = vmatpush2.msra.mxu0 %v227
    %443 = vmatprep.subr.mxu0 %v220
    %444 = vmatpush2.msra.mxu0 %v219
    %445 = vmatprep.subr.mxu0 %v212
    %446 = vmatpush2.msra.mxu0 %v211
    %447 = vmatprep.subr.mxu0 %v204
    %448 = vmatpush2.msra.mxu0 %v203
    %449 = vmatprep.subr.mxu0 %v196
    %450 = vmatpush2.msra.mxu0 %v195
    %451 = vmatprep.subr.mxu0 %v188
    %452 = vmatpush2.msra.mxu0 %v187
    %453 = vmatprep.subr.mxu0 %v180
    %454 = vmatpush2.msra.mxu0 %v179
    %455 = vmatprep.mubr.f32.mxu0 %v317
    %456 = vmatmul.mubr.f32.gmra.mxu0 %v316
    %v457 = vpop.f32.mrf.mxu0
    %v458 = vadd.f32 0.0, %v457
    %v459 = vpop.f32.mrf.mxu0
    %v460 = vadd.f32 0.0, %v459
    %461 = vdwg.mxu0
    %462 = vmatprep.subr.mxu0 %v174
    %463 = vmatpush1.msra.mxu0 %v173
    %464 = vmatprep.subr.mxu0 %v166
    %465 = vmatpush1.msra.mxu0 %v165
    %466 = vmatprep.subr.mxu0 %v158
    %467 = vmatpush1.msra.mxu0 %v157
    %468 = vmatprep.subr.mxu0 %v150
    %469 = vmatpush1.msra.mxu0 %v149
    %470 = vmatprep.subr.mxu0 %v142
    %471 = vmatpush1.msra.mxu0 %v141
    %472 = vmatprep.subr.mxu0 %v134
    %473 = vmatpush1.msra.mxu0 %v133
    %474 = vmatprep.subr.mxu0 %v126
    %475 = vmatpush1.msra.mxu0 %v125
    %476 = vmatprep.subr.mxu0 %v118
    %477 = vmatpush1.msra.mxu0 %v117
    %478 = vmatprep.subr.mxu0 %v110
    %479 = vmatpush1.msra.mxu0 %v109
    %480 = vmatprep.subr.mxu0 %v102
    %481 = vmatpush1.msra.mxu0 %v101
    %482 = vmatprep.subr.mxu0 %v94
    %483 = vmatpush1.msra.mxu0 %v93
    %484 = vmatprep.subr.mxu0 %v86
    %485 = vmatpush1.msra.mxu0 %v85
    %486 = vmatprep.subr.mxu0 %v78
    %487 = vmatpush1.msra.mxu0 %v77
    %488 = vmatprep.subr.mxu0 %v70
    %489 = vmatpush1.msra.mxu0 %v69
    %490 = vmatprep.subr.mxu0 %v62
    %491 = vmatpush1.msra.mxu0 %v61
    %492 = vmatprep.subr.mxu0 %v54
    %493 = vmatpush1.msra.mxu0 %v53
    %494 = vmatprep.subr.mxu0 %v302
    %495 = vmatpush2.msra.mxu0 %v301
    %496 = vmatprep.subr.mxu0 %v294
    %497 = vmatpush2.msra.mxu0 %v293
    %498 = vmatprep.subr.mxu0 %v286
    %499 = vmatpush2.msra.mxu0 %v285
    %500 = vmatprep.subr.mxu0 %v278
    %501 = vmatpush2.msra.mxu0 %v277
    %502 = vmatprep.subr.mxu0 %v270
    %503 = vmatpush2.msra.mxu0 %v269
    %504 = vmatprep.subr.mxu0 %v262
    %505 = vmatpush2.msra.mxu0 %v261
    %506 = vmatprep.subr.mxu0 %v254
    %507 = vmatpush2.msra.mxu0 %v253
    %508 = vmatprep.subr.mxu0 %v246
    %509 = vmatpush2.msra.mxu0 %v245
    %510 = vmatprep.subr.mxu0 %v238
    %511 = vmatpush2.msra.mxu0 %v237
    %512 = vmatprep.subr.mxu0 %v230
    %513 = vmatpush2.msra.mxu0 %v229
    %514 = vmatprep.subr.mxu0 %v222
    %515 = vmatpush2.msra.mxu0 %v221
    %516 = vmatprep.subr.mxu0 %v214
    %517 = vmatpush2.msra.mxu0 %v213
    %518 = vmatprep.subr.mxu0 %v206
    %519 = vmatpush2.msra.mxu0 %v205
    %520 = vmatprep.subr.mxu0 %v198
    %521 = vmatpush2.msra.mxu0 %v197
    %522 = vmatprep.subr.mxu0 %v190
    %523 = vmatpush2.msra.mxu0 %v189
    %524 = vmatprep.subr.mxu0 %v182
    %525 = vmatpush2.msra.mxu0 %v181
    %526 = vmatprep.mubr.f32.mxu0 %v317
    %527 = vmatmul.mubr.f32.gmra.mxu0 %v316
    %v528 = vpop.f32.mrf.mxu0
    %v529 = vadd.f32 0.0, %v528
    %v530 = vpop.f32.mrf.mxu0
    %v531 = vadd.f32 0.0, %v530
    %532 = vdwg.mxu0
    %533 = vmatprep.subr.mxu0 %v176
    %534 = vmatpush1.msra.mxu0 %v175
    %535 = vmatprep.subr.mxu0 %v168
    %536 = vmatpush1.msra.mxu0 %v167
    %537 = vmatprep.subr.mxu0 %v160
    %538 = vmatpush1.msra.mxu0 %v159
    %539 = vmatprep.subr.mxu0 %v152
    %540 = vmatpush1.msra.mxu0 %v151
    %541 = vmatprep.subr.mxu0 %v144
    %542 = vmatpush1.msra.mxu0 %v143
    %543 = vmatprep.subr.mxu0 %v136
    %544 = vmatpush1.msra.mxu0 %v135
    %545 = vmatprep.subr.mxu0 %v128
    %546 = vmatpush1.msra.mxu0 %v127
    %547 = vmatprep.subr.mxu0 %v120
    %548 = vmatpush1.msra.mxu0 %v119
    %549 = vmatprep.subr.mxu0 %v112
    %550 = vmatpush1.msra.mxu0 %v111
    %551 = vmatprep.subr.mxu0 %v104
    %552 = vmatpush1.msra.mxu0 %v103
    %553 = vmatprep.subr.mxu0 %v96
    %554 = vmatpush1.msra.mxu0 %v95
    %555 = vmatprep.subr.mxu0 %v88
    %556 = vmatpush1.msra.mxu0 %v87
    %557 = vmatprep.subr.mxu0 %v80
    %558 = vmatpush1.msra.mxu0 %v79
    %559 = vmatprep.subr.mxu0 %v72
    %560 = vmatpush1.msra.mxu0 %v71
    %561 = vmatprep.subr.mxu0 %v64
    %562 = vmatpush1.msra.mxu0 %v63
    %563 = vmatprep.subr.mxu0 %v56
    %564 = vmatpush1.msra.mxu0 %v55
    %565 = vmatprep.subr.mxu0 %v304
    %566 = vmatpush2.msra.mxu0 %v303
    %567 = vmatprep.subr.mxu0 %v296
    %568 = vmatpush2.msra.mxu0 %v295
    %569 = vmatprep.subr.mxu0 %v288
    %570 = vmatpush2.msra.mxu0 %v287
    %571 = vmatprep.subr.mxu0 %v280
    %572 = vmatpush2.msra.mxu0 %v279
    %573 = vmatprep.subr.mxu0 %v272
    %574 = vmatpush2.msra.mxu0 %v271
    %575 = vmatprep.subr.mxu0 %v264
    %576 = vmatpush2.msra.mxu0 %v263
    %577 = vmatprep.subr.mxu0 %v256
    %578 = vmatpush2.msra.mxu0 %v255
    %579 = vmatprep.subr.mxu0 %v248
    %580 = vmatpush2.msra.mxu0 %v247
    %581 = vmatprep.subr.mxu0 %v240
    %582 = vmatpush2.msra.mxu0 %v239
    %583 = vmatprep.subr.mxu0 %v232
    %584 = vmatpush2.msra.mxu0 %v231
    %585 = vmatprep.subr.mxu0 %v224
    %586 = vmatpush2.msra.mxu0 %v223
    %587 = vmatprep.subr.mxu0 %v216
    %588 = vmatpush2.msra.mxu0 %v215
    %589 = vmatprep.subr.mxu0 %v208
    %590 = vmatpush2.msra.mxu0 %v207
    %591 = vmatprep.subr.mxu0 %v200
    %592 = vmatpush2.msra.mxu0 %v199
    %593 = vmatprep.subr.mxu0 %v192
    %594 = vmatpush2.msra.mxu0 %v191
    %595 = vmatprep.subr.mxu0 %v184
    %596 = vmatpush2.msra.mxu0 %v183
    %597 = vmatprep.mubr.f32.mxu0 %v317
    %598 = vmatmul.mubr.f32.gmra.mxu0 %v316
    %v599 = vpop.f32.mrf.mxu0
    %v600 = vadd.f32 0.0, %v599
    %v601 = vpop.f32.mrf.mxu0
    %v602 = vadd.f32 0.0, %v601
    %603 = vdwg.mxu0
    %v612 = vcombine.low %v387, %v389
    %v613 = vcombine.low %v458, %v460
    %v615 = vunpack.c.l.s4 1983009808
    %v616 = vunpack.c.0.s8 %v615
    %v617 = vlaneseq
    %v618 = vshrl.u32 %v617, 7
    %v619 = vsub.s32 %v616, %v618
    %v620 = vrot.slane %v612, %v619
    %v622 = vunpack.c.l.s4 1983009808
    %v623 = vunpack.c.0.s8 %v622
    %v624 = vlaneseq
    %v625 = vshrl.u32 %v624, 7
    %v626 = vsub.s32 %v623, %v625
    %v627 = vrot.slane %v613, %v626
    %v628 = vcombine.low %v620, %v627
    %v629 = vcombine.low %v529, %v531
    %v630 = vcombine.low %v600, %v602
    %v632 = vunpack.c.l.s4 1983009808
    %v633 = vunpack.c.0.s8 %v632
    %v634 = vlaneseq
    %v635 = vshrl.u32 %v634, 7
    %v636 = vsub.s32 %v633, %v635
    %v637 = vrot.slane %v629, %v636
    %v639 = vunpack.c.l.s4 1983009808
    %v640 = vunpack.c.0.s8 %v639
    %v641 = vlaneseq
    %v642 = vshrl.u32 %v641, 7
    %v643 = vsub.s32 %v640, %v642
    %v644 = vrot.slane %v630, %v643
    %v645 = vcombine.low %v637, %v644
    %v648 = vadd.f32 %v307, %v628
    %v649 = vadd.f32 %v308, %v645
    %v650 = vxor.u32 %v648, 2147483648
    %v651 = vxor.u32 %v649, 2147483648
    %v652 = vmul.f32 %v650, 1.442695
    %v653 = vpow.pop %v652
    %v654 = vmul.f32 %v651, 1.442695
    %v655 = vpow.pop %v654
    %v656 = vadd.f32 %v653, 1.0
    %v657 = vadd.f32 %v655, 1.0
    %v658 = vrcp.pop %v656
    %v659 = vmul.f32 1.0, %v658
    %v660 = vrcp.pop %v657
    %v661 = vmul.f32 1.0, %v660
    %v663 = vrot.slane %v649, 4
    %v665 = vtanh.pop %v663
    %v667 = vrot.slane %v659, 4
    %v669 = vmul.f32 %v667, %v306
    %v670 = vmul.f32 %v659, %v665
    %v671 = vadd.f32 %v669, %v670
    %v672 = vtanh.pop %v671
    %v673 = vmul.f32 %v661, %v672
    %s674 = scalar_lea.vmem [#allocation4], 16
    %v675 = vld [vmem:[%s674] sm:$0xff]
    %v676 = vld [vmem:[%s674 + $0x8] sm:$0xff]
    %v679 = vunpack.c.l.s4 1983009808
    %v680 = vunpack.c.0.s8 %v679
    %v681 = vlaneseq
    %v682 = vshrl.u32 %v681, 7
    %v683 = vsub.s32 %v680, %v682
    %v684 = vrot.slane %v673, %v683
    %v685 = vcombine.high %v684, %v684
    %688 = vmatprep.subr.mxu0 %v170
    %689 = vmatpush1.msra.mxu0 %v169
    %690 = vmatprep.subr.mxu0 %v162
    %691 = vmatpush1.msra.mxu0 %v161
    %692 = vmatprep.subr.mxu0 %v154
    %693 = vmatpush1.msra.mxu0 %v153
    %694 = vmatprep.subr.mxu0 %v146
    %695 = vmatpush1.msra.mxu0 %v145
    %696 = vmatprep.subr.mxu0 %v138
    %697 = vmatpush1.msra.mxu0 %v137
    %698 = vmatprep.subr.mxu0 %v130
    %699 = vmatpush1.msra.mxu0 %v129
    %700 = vmatprep.subr.mxu0 %v122
    %701 = vmatpush1.msra.mxu0 %v121
    %702 = vmatprep.subr.mxu0 %v114
    %703 = vmatpush1.msra.mxu0 %v113
    %704 = vmatprep.subr.mxu0 %v106
    %705 = vmatpush1.msra.mxu0 %v105
    %706 = vmatprep.subr.mxu0 %v98
    %707 = vmatpush1.msra.mxu0 %v97
    %708 = vmatprep.subr.mxu0 %v90
    %709 = vmatpush1.msra.mxu0 %v89
    %710 = vmatprep.subr.mxu0 %v82
    %711 = vmatpush1.msra.mxu0 %v81
    %712 = vmatprep.subr.mxu0 %v74
    %713 = vmatpush1.msra.mxu0 %v73
    %714 = vmatprep.subr.mxu0 %v66
    %715 = vmatpush1.msra.mxu0 %v65
    %716 = vmatprep.subr.mxu0 %v58
    %717 = vmatpush1.msra.mxu0 %v57
    %718 = vmatprep.subr.mxu0 %v50
    %719 = vmatpush1.msra.mxu0 %v49
    %720 = vmatprep.subr.mxu0 %v298
    %721 = vmatpush2.msra.mxu0 %v297
    %722 = vmatprep.subr.mxu0 %v290
    %723 = vmatpush2.msra.mxu0 %v289
    %724 = vmatprep.subr.mxu0 %v282
    %725 = vmatpush2.msra.mxu0 %v281
    %726 = vmatprep.subr.mxu0 %v274
    %727 = vmatpush2.msra.mxu0 %v273
    %728 = vmatprep.subr.mxu0 %v266
    %729 = vmatpush2.msra.mxu0 %v265
    %730 = vmatprep.subr.mxu0 %v258
    %731 = vmatpush2.msra.mxu0 %v257
    %732 = vmatprep.subr.mxu0 %v250
    %733 = vmatpush2.msra.mxu0 %v249
    %734 = vmatprep.subr.mxu0 %v242
    %735 = vmatpush2.msra.mxu0 %v241
    %736 = vmatprep.subr.mxu0 %v234
    %737 = vmatpush2.msra.mxu0 %v233
    %738 = vmatprep.subr.mxu0 %v226
    %739 = vmatpush2.msra.mxu0 %v225
    %740 = vmatprep.subr.mxu0 %v218
    %741 = vmatpush2.msra.mxu0 %v217
    %742 = vmatprep.subr.mxu0 %v210
    %743 = vmatpush2.msra.mxu0 %v209
    %744 = vmatprep.subr.mxu0 %v202
    %745 = vmatpush2.msra.mxu0 %v201
    %746 = vmatprep.subr.mxu0 %v194
    %747 = vmatpush2.msra.mxu0 %v193
    %748 = vmatprep.subr.mxu0 %v186
    %749 = vmatpush2.msra.mxu0 %v185
    %750 = vmatprep.subr.mxu0 %v178
    %751 = vmatpush2.msra.mxu0 %v177
    %752 = vmatprep.mubr.f32.mxu0 %v685
    %753 = vmatmul.mubr.f32.gmra.mxu0 %v684
    %v754 = vpop.f32.mrf.mxu0
    %v755 = vadd.f32 0.0, %v754
    %v756 = vpop.f32.mrf.mxu0
    %v757 = vadd.f32 0.0, %v756
    %758 = vdwg.mxu0
    %759 = vmatprep.subr.mxu0 %v172
    %760 = vmatpush1.msra.mxu0 %v171
    %761 = vmatprep.subr.mxu0 %v164
    %762 = vmatpush1.msra.mxu0 %v163
    %763 = vmatprep.subr.mxu0 %v156
    %764 = vmatpush1.msra.mxu0 %v155
    %765 = vmatprep.subr.mxu0 %v148
    %766 = vmatpush1.msra.mxu0 %v147
    %767 = vmatprep.subr.mxu0 %v140
    %768 = vmatpush1.msra.mxu0 %v139
    %769 = vmatprep.subr.mxu0 %v132
    %770 = vmatpush1.msra.mxu0 %v131
    %771 = vmatprep.subr.mxu0 %v124
    %772 = vmatpush1.msra.mxu0 %v123
    %773 = vmatprep.subr.mxu0 %v116
    %774 = vmatpush1.msra.mxu0 %v115
    %775 = vmatprep.subr.mxu0 %v108
    %776 = vmatpush1.msra.mxu0 %v107
    %777 = vmatprep.subr.mxu0 %v100
    %778 = vmatpush1.msra.mxu0 %v99
    %779 = vmatprep.subr.mxu0 %v92
    %780 = vmatpush1.msra.mxu0 %v91
    %781 = vmatprep.subr.mxu0 %v84
    %782 = vmatpush1.msra.mxu0 %v83
    %783 = vmatprep.subr.mxu0 %v76
    %784 = vmatpush1.msra.mxu0 %v75
    %785 = vmatprep.subr.mxu0 %v68
    %786 = vmatpush1.msra.mxu0 %v67
    %787 = vmatprep.subr.mxu0 %v60
    %788 = vmatpush1.msra.mxu0 %v59
    %789 = vmatprep.subr.mxu0 %v52
    %790 = vmatpush1.msra.mxu0 %v51
    %791 = vmatprep.subr.mxu0 %v300
    %792 = vmatpush2.msra.mxu0 %v299
    %793 = vmatprep.subr.mxu0 %v292
    %794 = vmatpush2.msra.mxu0 %v291
    %795 = vmatprep.subr.mxu0 %v284
    %796 = vmatpush2.msra.mxu0 %v283
    %797 = vmatprep.subr.mxu0 %v276
    %798 = vmatpush2.msra.mxu0 %v275
    %799 = vmatprep.subr.mxu0 %v268
    %800 = vmatpush2.msra.mxu0 %v267
    %801 = vmatprep.subr.mxu0 %v260
    %802 = vmatpush2.msra.mxu0 %v259
    %803 = vmatprep.subr.mxu0 %v252
    %804 = vmatpush2.msra.mxu0 %v251
    %805 = vmatprep.subr.mxu0 %v244
    %806 = vmatpush2.msra.mxu0 %v243
    %807 = vmatprep.subr.mxu0 %v236
    %808 = vmatpush2.msra.mxu0 %v235
    %809 = vmatprep.subr.mxu0 %v228
    %810 = vmatpush2.msra.mxu0 %v227
    %811 = vmatprep.subr.mxu0 %v220
    %812 = vmatpush2.msra.mxu0 %v219
    %813 = vmatprep.subr.mxu0 %v212
    %814 = vmatpush2.msra.mxu0 %v211
    %815 = vmatprep.subr.mxu0 %v204
    %816 = vmatpush2.msra.mxu0 %v203
    %817 = vmatprep.subr.mxu0 %v196
    %818 = vmatpush2.msra.mxu0 %v195
    %819 = vmatprep.subr.mxu0 %v188
    %820 = vmatpush2.msra.mxu0 %v187
    %821 = vmatprep.subr.mxu0 %v180
    %822 = vmatpush2.msra.mxu0 %v179
    %823 = vmatprep.mubr.f32.mxu0 %v685
    %824 = vmatmul.mubr.f32.gmra.mxu0 %v684
    %v825 = vpop.f32.mrf.mxu0
    %v826 = vadd.f32 0.0, %v825
    %v827 = vpop.f32.mrf.mxu0
    %v828 = vadd.f32 0.0, %v827
    %829 = vdwg.mxu0
    %830 = vmatprep.subr.mxu0 %v174
    %831 = vmatpush1.msra.mxu0 %v173
    %832 = vmatprep.subr.mxu0 %v166
    %833 = vmatpush1.msra.mxu0 %v165
    %834 = vmatprep.subr.mxu0 %v158
    %835 = vmatpush1.msra.mxu0 %v157
    %836 = vmatprep.subr.mxu0 %v150
    %837 = vmatpush1.msra.mxu0 %v149
    %838 = vmatprep.subr.mxu0 %v142
    %839 = vmatpush1.msra.mxu0 %v141
    %840 = vmatprep.subr.mxu0 %v134
    %841 = vmatpush1.msra.mxu0 %v133
    %842 = vmatprep.subr.mxu0 %v126
    %843 = vmatpush1.msra.mxu0 %v125
    %844 = vmatprep.subr.mxu0 %v118
    %845 = vmatpush1.msra.mxu0 %v117
    %846 = vmatprep.subr.mxu0 %v110
    %847 = vmatpush1.msra.mxu0 %v109
    %848 = vmatprep.subr.mxu0 %v102
    %849 = vmatpush1.msra.mxu0 %v101
    %850 = vmatprep.subr.mxu0 %v94
    %851 = vmatpush1.msra.mxu0 %v93
    %852 = vmatprep.subr.mxu0 %v86
    %853 = vmatpush1.msra.mxu0 %v85
    %854 = vmatprep.subr.mxu0 %v78
    %855 = vmatpush1.msra.mxu0 %v77
    %856 = vmatprep.subr.mxu0 %v70
    %857 = vmatpush1.msra.mxu0 %v69
    %858 = vmatprep.subr.mxu0 %v62
    %859 = vmatpush1.msra.mxu0 %v61
    %860 = vmatprep.subr.mxu0 %v54
    %861 = vmatpush1.msra.mxu0 %v53
    %862 = vmatprep.subr.mxu0 %v302
    %863 = vmatpush2.msra.mxu0 %v301
    %864 = vmatprep.subr.mxu0 %v294
    %865 = vmatpush2.msra.mxu0 %v293
    %866 = vmatprep.subr.mxu0 %v286
    %867 = vmatpush2.msra.mxu0 %v285
    %868 = vmatprep.subr.mxu0 %v278
    %869 = vmatpush2.msra.mxu0 %v277
    %870 = vmatprep.subr.mxu0 %v270
    %871 = vmatpush2.msra.mxu0 %v269
    %872 = vmatprep.subr.mxu0 %v262
    %873 = vmatpush2.msra.mxu0 %v261
    %874 = vmatprep.subr.mxu0 %v254
    %875 = vmatpush2.msra.mxu0 %v253
    %876 = vmatprep.subr.mxu0 %v246
    %877 = vmatpush2.msra.mxu0 %v245
    %878 = vmatprep.subr.mxu0 %v238
    %879 = vmatpush2.msra.mxu0 %v237
    %880 = vmatprep.subr.mxu0 %v230
    %881 = vmatpush2.msra.mxu0 %v229
    %882 = vmatprep.subr.mxu0 %v222
    %883 = vmatpush2.msra.mxu0 %v221
    %884 = vmatprep.subr.mxu0 %v214
    %885 = vmatpush2.msra.mxu0 %v213
    %886 = vmatprep.subr.mxu0 %v206
    %887 = vmatpush2.msra.mxu0 %v205
    %888 = vmatprep.subr.mxu0 %v198
    %889 = vmatpush2.msra.mxu0 %v197
    %890 = vmatprep.subr.mxu0 %v190
    %891 = vmatpush2.msra.mxu0 %v189
    %892 = vmatprep.subr.mxu0 %v182
    %893 = vmatpush2.msra.mxu0 %v181
    %894 = vmatprep.mubr.f32.mxu0 %v685
    %895 = vmatmul.mubr.f32.gmra.mxu0 %v684
    %v896 = vpop.f32.mrf.mxu0
    %v897 = vadd.f32 0.0, %v896
    %v898 = vpop.f32.mrf.mxu0
    %v899 = vadd.f32 0.0, %v898
    %900 = vdwg.mxu0
    %901 = vmatprep.subr.mxu0 %v176
    %902 = vmatpush1.msra.mxu0 %v175
    %903 = vmatprep.subr.mxu0 %v168
    %904 = vmatpush1.msra.mxu0 %v167
    %905 = vmatprep.subr.mxu0 %v160
    %906 = vmatpush1.msra.mxu0 %v159
    %907 = vmatprep.subr.mxu0 %v152
    %908 = vmatpush1.msra.mxu0 %v151
    %909 = vmatprep.subr.mxu0 %v144
    %910 = vmatpush1.msra.mxu0 %v143
    %911 = vmatprep.subr.mxu0 %v136
    %912 = vmatpush1.msra.mxu0 %v135
    %913 = vmatprep.subr.mxu0 %v128
    %914 = vmatpush1.msra.mxu0 %v127
    %915 = vmatprep.subr.mxu0 %v120
    %916 = vmatpush1.msra.mxu0 %v119
    %917 = vmatprep.subr.mxu0 %v112
    %918 = vmatpush1.msra.mxu0 %v111
    %919 = vmatprep.subr.mxu0 %v104
    %920 = vmatpush1.msra.mxu0 %v103
    %921 = vmatprep.subr.mxu0 %v96
    %922 = vmatpush1.msra.mxu0 %v95
    %923 = vmatprep.subr.mxu0 %v88
    %924 = vmatpush1.msra.mxu0 %v87
    %925 = vmatprep.subr.mxu0 %v80
    %926 = vmatpush1.msra.mxu0 %v79
    %927 = vmatprep.subr.mxu0 %v72
    %928 = vmatpush1.msra.mxu0 %v71
    %929 = vmatprep.subr.mxu0 %v64
    %930 = vmatpush1.msra.mxu0 %v63
    %931 = vmatprep.subr.mxu0 %v56
    %932 = vmatpush1.msra.mxu0 %v55
    %933 = vmatprep.subr.mxu0 %v304
    %934 = vmatpush2.msra.mxu0 %v303
    %935 = vmatprep.subr.mxu0 %v296
    %936 = vmatpush2.msra.mxu0 %v295
    %937 = vmatprep.subr.mxu0 %v288
    %938 = vmatpush2.msra.mxu0 %v287
    %939 = vmatprep.subr.mxu0 %v280
    %940 = vmatpush2.msra.mxu0 %v279
    %941 = vmatprep.subr.mxu0 %v272
    %942 = vmatpush2.msra.mxu0 %v271
    %943 = vmatprep.subr.mxu0 %v264
    %944 = vmatpush2.msra.mxu0 %v263
    %945 = vmatprep.subr.mxu0 %v256
    %946 = vmatpush2.msra.mxu0 %v255
    %947 = vmatprep.subr.mxu0 %v248
    %948 = vmatpush2.msra.mxu0 %v247
    %949 = vmatprep.subr.mxu0 %v240
    %950 = vmatpush2.msra.mxu0 %v239
    %951 = vmatprep.subr.mxu0 %v232
    %952 = vmatpush2.msra.mxu0 %v231
    %953 = vmatprep.subr.mxu0 %v224
    %954 = vmatpush2.msra.mxu0 %v223
    %955 = vmatprep.subr.mxu0 %v216
    %956 = vmatpush2.msra.mxu0 %v215
    %957 = vmatprep.subr.mxu0 %v208
    %958 = vmatpush2.msra.mxu0 %v207
    %959 = vmatprep.subr.mxu0 %v200
    %960 = vmatpush2.msra.mxu0 %v199
    %961 = vmatprep.subr.mxu0 %v192
    %962 = vmatpush2.msra.mxu0 %v191
    %963 = vmatprep.subr.mxu0 %v184
    %964 = vmatpush2.msra.mxu0 %v183
    %965 = vmatprep.mubr.f32.mxu0 %v685
    %966 = vmatmul.mubr.f32.gmra.mxu0 %v684
    %v967 = vpop.f32.mrf.mxu0
    %v968 = vadd.f32 0.0, %v967
    %v969 = vpop.f32.mrf.mxu0
    %v970 = vadd.f32 0.0, %v969
    %971 = vdwg.mxu0
    %v980 = vcombine.low %v755, %v757
    %v981 = vcombine.low %v826, %v828
    %v983 = vunpack.c.l.s4 1983009808
    %v984 = vunpack.c.0.s8 %v983
    %v985 = vlaneseq
    %v986 = vshrl.u32 %v985, 7
    %v987 = vsub.s32 %v984, %v986
    %v988 = vrot.slane %v980, %v987
    %v990 = vunpack.c.l.s4 1983009808
    %v991 = vunpack.c.0.s8 %v990
    %v992 = vlaneseq
    %v993 = vshrl.u32 %v992, 7
    %v994 = vsub.s32 %v991, %v993
    %v995 = vrot.slane %v981, %v994
    %v996 = vcombine.low %v988, %v995
    %v997 = vcombine.low %v897, %v899
    %v998 = vcombine.low %v968, %v970
    %v1000 = vunpack.c.l.s4 1983009808
    %v1001 = vunpack.c.0.s8 %v1000
    %v1002 = vlaneseq
    %v1003 = vshrl.u32 %v1002, 7
    %v1004 = vsub.s32 %v1001, %v1003
    %v1005 = vrot.slane %v997, %v1004
    %v1007 = vunpack.c.l.s4 1983009808
    %v1008 = vunpack.c.0.s8 %v1007
    %v1009 = vlaneseq
    %v1010 = vshrl.u32 %v1009, 7
    %v1011 = vsub.s32 %v1008, %v1010
    %v1012 = vrot.slane %v998, %v1011
    %v1013 = vcombine.low %v1005, %v1012
    %v1016 = vadd.f32 %v675, %v996
    %v1017 = vadd.f32 %v676, %v1013
    %v1018 = vxor.u32 %v1016, 2147483648
    %v1019 = vxor.u32 %v1017, 2147483648
    %v1020 = vmul.f32 %v1018, 1.442695
    %v1021 = vpow.pop %v1020
    %v1022 = vmul.f32 %v1019, 1.442695
    %v1023 = vpow.pop %v1022
    %v1024 = vadd.f32 %v1021, 1.0
    %v1025 = vadd.f32 %v1023, 1.0
    %v1026 = vrcp.pop %v1024
    %v1027 = vmul.f32 1.0, %v1026
    %v1028 = vrcp.pop %v1025
    %v1029 = vmul.f32 1.0, %v1028
    %v1031 = vrot.slane %v1017, 4
    %v1033 = vtanh.pop %v1031
    %v1035 = vrot.slane %v1027, 4
    %v1037 = vmul.f32 %v1035, %v671
    %v1038 = vmul.f32 %v1027, %v1033
    %v1039 = vadd.f32 %v1037, %v1038
    %v1040 = vtanh.pop %v1039
    %v1041 = vmul.f32 %v1029, %v1040
    %s1042 = scalar_lea.vmem [#allocation4], 32
    %v1043 = vld [vmem:[%s1042] sm:$0xff]
    %v1044 = vld [vmem:[%s1042 + $0x8] sm:$0xff]
    %v1047 = vunpack.c.l.s4 1983009808
    %v1048 = vunpack.c.0.s8 %v1047
    %v1049 = vlaneseq
    %v1050 = vshrl.u32 %v1049, 7
    %v1051 = vsub.s32 %v1048, %v1050
    %v1052 = vrot.slane %v1041, %v1051
    %v1053 = vcombine.high %v1052, %v1052
    %1056 = vmatprep.subr.mxu0 %v170
    %1057 = vmatpush1.msra.mxu0 %v169
    %1058 = vmatprep.subr.mxu0 %v162
    %1059 = vmatpush1.msra.mxu0 %v161
    %1060 = vmatprep.subr.mxu0 %v154
    %1061 = vmatpush1.msra.mxu0 %v153
    %1062 = vmatprep.subr.mxu0 %v146
    %1063 = vmatpush1.msra.mxu0 %v145
    %1064 = vmatprep.subr.mxu0 %v138
    %1065 = vmatpush1.msra.mxu0 %v137
    %1066 = vmatprep.subr.mxu0 %v130
    %1067 = vmatpush1.msra.mxu0 %v129
    %1068 = vmatprep.subr.mxu0 %v122
    %1069 = vmatpush1.msra.mxu0 %v121
    %1070 = vmatprep.subr.mxu0 %v114
    %1071 = vmatpush1.msra.mxu0 %v113
    %1072 = vmatprep.subr.mxu0 %v106
    %1073 = vmatpush1.msra.mxu0 %v105
    %1074 = vmatprep.subr.mxu0 %v98
    %1075 = vmatpush1.msra.mxu0 %v97
    %1076 = vmatprep.subr.mxu0 %v90
    %1077 = vmatpush1.msra.mxu0 %v89
    %1078 = vmatprep.subr.mxu0 %v82
    %1079 = vmatpush1.msra.mxu0 %v81
    %1080 = vmatprep.subr.mxu0 %v74
    %1081 = vmatpush1.msra.mxu0 %v73
    %1082 = vmatprep.subr.mxu0 %v66
    %1083 = vmatpush1.msra.mxu0 %v65
    %1084 = vmatprep.subr.mxu0 %v58
    %1085 = vmatpush1.msra.mxu0 %v57
    %1086 = vmatprep.subr.mxu0 %v50
    %1087 = vmatpush1.msra.mxu0 %v49
    %1088 = vmatprep.subr.mxu0 %v298
    %1089 = vmatpush2.msra.mxu0 %v297
    %1090 = vmatprep.subr.mxu0 %v290
    %1091 = vmatpush2.msra.mxu0 %v289
    %1092 = vmatprep.subr.mxu0 %v282
    %1093 = vmatpush2.msra.mxu0 %v281
    %1094 = vmatprep.subr.mxu0 %v274
    %1095 = vmatpush2.msra.mxu0 %v273
    %1096 = vmatprep.subr.mxu0 %v266
    %1097 = vmatpush2.msra.mxu0 %v265
    %1098 = vmatprep.subr.mxu0 %v258
    %1099 = vmatpush2.msra.mxu0 %v257
    %1100 = vmatprep.subr.mxu0 %v250
    %1101 = vmatpush2.msra.mxu0 %v249
    %1102 = vmatprep.subr.mxu0 %v242
    %1103 = vmatpush2.msra.mxu0 %v241
    %1104 = vmatprep.subr.mxu0 %v234
    %1105 = vmatpush2.msra.mxu0 %v233
    %1106 = vmatprep.subr.mxu0 %v226
    %1107 = vmatpush2.msra.mxu0 %v225
    %1108 = vmatprep.subr.mxu0 %v218
    %1109 = vmatpush2.msra.mxu0 %v217
    %1110 = vmatprep.subr.mxu0 %v210
    %1111 = vmatpush2.msra.mxu0 %v209
    %1112 = vmatprep.subr.mxu0 %v202
    %1113 = vmatpush2.msra.mxu0 %v201
    %1114 = vmatprep.subr.mxu0 %v194
    %1115 = vmatpush2.msra.mxu0 %v193
    %1116 = vmatprep.subr.mxu0 %v186
    %1117 = vmatpush2.msra.mxu0 %v185
    %1118 = vmatprep.subr.mxu0 %v178
    %1119 = vmatpush2.msra.mxu0 %v177
    %1120 = vmatprep.mubr.f32.mxu0 %v1053
    %1121 = vmatmul.mubr.f32.gmra.mxu0 %v1052
    %v1122 = vpop.f32.mrf.mxu0
    %v1123 = vadd.f32 0.0, %v1122
    %v1124 = vpop.f32.mrf.mxu0
    %v1125 = vadd.f32 0.0, %v1124
    %1126 = vdwg.mxu0
    %1127 = vmatprep.subr.mxu0 %v172
    %1128 = vmatpush1.msra.mxu0 %v171
    %1129 = vmatprep.subr.mxu0 %v164
    %1130 = vmatpush1.msra.mxu0 %v163
    %1131 = vmatprep.subr.mxu0 %v156
    %1132 = vmatpush1.msra.mxu0 %v155
    %1133 = vmatprep.subr.mxu0 %v148
    %1134 = vmatpush1.msra.mxu0 %v147
    %1135 = vmatprep.subr.mxu0 %v140
    %1136 = vmatpush1.msra.mxu0 %v139
    %1137 = vmatprep.subr.mxu0 %v132
    %1138 = vmatpush1.msra.mxu0 %v131
    %1139 = vmatprep.subr.mxu0 %v124
    %1140 = vmatpush1.msra.mxu0 %v123
    %1141 = vmatprep.subr.mxu0 %v116
    %1142 = vmatpush1.msra.mxu0 %v115
    %1143 = vmatprep.subr.mxu0 %v108
    %1144 = vmatpush1.msra.mxu0 %v107
    %1145 = vmatprep.subr.mxu0 %v100
    %1146 = vmatpush1.msra.mxu0 %v99
    %1147 = vmatprep.subr.mxu0 %v92
    %1148 = vmatpush1.msra.mxu0 %v91
    %1149 = vmatprep.subr.mxu0 %v84
    %1150 = vmatpush1.msra.mxu0 %v83
    %1151 = vmatprep.subr.mxu0 %v76
    %1152 = vmatpush1.msra.mxu0 %v75
    %1153 = vmatprep.subr.mxu0 %v68
    %1154 = vmatpush1.msra.mxu0 %v67
    %1155 = vmatprep.subr.mxu0 %v60
    %1156 = vmatpush1.msra.mxu0 %v59
    %1157 = vmatprep.subr.mxu0 %v52
    %1158 = vmatpush1.msra.mxu0 %v51
    %1159 = vmatprep.subr.mxu0 %v300
    %1160 = vmatpush2.msra.mxu0 %v299
    %1161 = vmatprep.subr.mxu0 %v292
    %1162 = vmatpush2.msra.mxu0 %v291
    %1163 = vmatprep.subr.mxu0 %v284
    %1164 = vmatpush2.msra.mxu0 %v283
    %1165 = vmatprep.subr.mxu0 %v276
    %1166 = vmatpush2.msra.mxu0 %v275
    %1167 = vmatprep.subr.mxu0 %v268
    %1168 = vmatpush2.msra.mxu0 %v267
    %1169 = vmatprep.subr.mxu0 %v260
    %1170 = vmatpush2.msra.mxu0 %v259
    %1171 = vmatprep.subr.mxu0 %v252
    %1172 = vmatpush2.msra.mxu0 %v251
    %1173 = vmatprep.subr.mxu0 %v244
    %1174 = vmatpush2.msra.mxu0 %v243
    %1175 = vmatprep.subr.mxu0 %v236
    %1176 = vmatpush2.msra.mxu0 %v235
    %1177 = vmatprep.subr.mxu0 %v228
    %1178 = vmatpush2.msra.mxu0 %v227
    %1179 = vmatprep.subr.mxu0 %v220
    %1180 = vmatpush2.msra.mxu0 %v219
    %1181 = vmatprep.subr.mxu0 %v212
    %1182 = vmatpush2.msra.mxu0 %v211
    %1183 = vmatprep.subr.mxu0 %v204
    %1184 = vmatpush2.msra.mxu0 %v203
    %1185 = vmatprep.subr.mxu0 %v196
    %1186 = vmatpush2.msra.mxu0 %v195
    %1187 = vmatprep.subr.mxu0 %v188
    %1188 = vmatpush2.msra.mxu0 %v187
    %1189 = vmatprep.subr.mxu0 %v180
    %1190 = vmatpush2.msra.mxu0 %v179
    %1191 = vmatprep.mubr.f32.mxu0 %v1053
    %1192 = vmatmul.mubr.f32.gmra.mxu0 %v1052
    %v1193 = vpop.f32.mrf.mxu0
    %v1194 = vadd.f32 0.0, %v1193
    %v1195 = vpop.f32.mrf.mxu0
    %v1196 = vadd.f32 0.0, %v1195
    %1197 = vdwg.mxu0
    %1198 = vmatprep.subr.mxu0 %v174
    %1199 = vmatpush1.msra.mxu0 %v173
    %1200 = vmatprep.subr.mxu0 %v166
    %1201 = vmatpush1.msra.mxu0 %v165
    %1202 = vmatprep.subr.mxu0 %v158
    %1203 = vmatpush1.msra.mxu0 %v157
    %1204 = vmatprep.subr.mxu0 %v150
    %1205 = vmatpush1.msra.mxu0 %v149
    %1206 = vmatprep.subr.mxu0 %v142
    %1207 = vmatpush1.msra.mxu0 %v141
    %1208 = vmatprep.subr.mxu0 %v134
    %1209 = vmatpush1.msra.mxu0 %v133
    %1210 = vmatprep.subr.mxu0 %v126
    %1211 = vmatpush1.msra.mxu0 %v125
    %1212 = vmatprep.subr.mxu0 %v118
    %1213 = vmatpush1.msra.mxu0 %v117
    %1214 = vmatprep.subr.mxu0 %v110
    %1215 = vmatpush1.msra.mxu0 %v109
    %1216 = vmatprep.subr.mxu0 %v102
    %1217 = vmatpush1.msra.mxu0 %v101
    %1218 = vmatprep.subr.mxu0 %v94
    %1219 = vmatpush1.msra.mxu0 %v93
    %1220 = vmatprep.subr.mxu0 %v86
    %1221 = vmatpush1.msra.mxu0 %v85
    %1222 = vmatprep.subr.mxu0 %v78
    %1223 = vmatpush1.msra.mxu0 %v77
    %1224 = vmatprep.subr.mxu0 %v70
    %1225 = vmatpush1.msra.mxu0 %v69
    %1226 = vmatprep.subr.mxu0 %v62
    %1227 = vmatpush1.msra.mxu0 %v61
    %1228 = vmatprep.subr.mxu0 %v54
    %1229 = vmatpush1.msra.mxu0 %v53
    %1230 = vmatprep.subr.mxu0 %v302
    %1231 = vmatpush2.msra.mxu0 %v301
    %1232 = vmatprep.subr.mxu0 %v294
    %1233 = vmatpush2.msra.mxu0 %v293
    %1234 = vmatprep.subr.mxu0 %v286
    %1235 = vmatpush2.msra.mxu0 %v285
    %1236 = vmatprep.subr.mxu0 %v278
    %1237 = vmatpush2.msra.mxu0 %v277
    %1238 = vmatprep.subr.mxu0 %v270
    %1239 = vmatpush2.msra.mxu0 %v269
    %1240 = vmatprep.subr.mxu0 %v262
    %1241 = vmatpush2.msra.mxu0 %v261
    %1242 = vmatprep.subr.mxu0 %v254
    %1243 = vmatpush2.msra.mxu0 %v253
    %1244 = vmatprep.subr.mxu0 %v246
    %1245 = vmatpush2.msra.mxu0 %v245
    %1246 = vmatprep.subr.mxu0 %v238
    %1247 = vmatpush2.msra.mxu0 %v237
    %1248 = vmatprep.subr.mxu0 %v230
    %1249 = vmatpush2.msra.mxu0 %v229
    %1250 = vmatprep.subr.mxu0 %v222
    %1251 = vmatpush2.msra.mxu0 %v221
    %1252 = vmatprep.subr.mxu0 %v214
    %1253 = vmatpush2.msra.mxu0 %v213
    %1254 = vmatprep.subr.mxu0 %v206
    %1255 = vmatpush2.msra.mxu0 %v205
    %1256 = vmatprep.subr.mxu0 %v198
    %1257 = vmatpush2.msra.mxu0 %v197
    %1258 = vmatprep.subr.mxu0 %v190
    %1259 = vmatpush2.msra.mxu0 %v189
    %1260 = vmatprep.subr.mxu0 %v182
    %1261 = vmatpush2.msra.mxu0 %v181
    %1262 = vmatprep.mubr.f32.mxu0 %v1053
    %1263 = vmatmul.mubr.f32.gmra.mxu0 %v1052
    %v1264 = vpop.f32.mrf.mxu0
    %v1265 = vadd.f32 0.0, %v1264
    %v1266 = vpop.f32.mrf.mxu0
    %v1267 = vadd.f32 0.0, %v1266
    %1268 = vdwg.mxu0
    %1269 = vmatprep.subr.mxu0 %v176
    %1270 = vmatpush1.msra.mxu0 %v175
    %1271 = vmatprep.subr.mxu0 %v168
    %1272 = vmatpush1.msra.mxu0 %v167
    %1273 = vmatprep.subr.mxu0 %v160
    %1274 = vmatpush1.msra.mxu0 %v159
    %1275 = vmatprep.subr.mxu0 %v152
    %1276 = vmatpush1.msra.mxu0 %v151
    %1277 = vmatprep.subr.mxu0 %v144
    %1278 = vmatpush1.msra.mxu0 %v143
    %1279 = vmatprep.subr.mxu0 %v136
    %1280 = vmatpush1.msra.mxu0 %v135
    %1281 = vmatprep.subr.mxu0 %v128
    %1282 = vmatpush1.msra.mxu0 %v127
    %1283 = vmatprep.subr.mxu0 %v120
    %1284 = vmatpush1.msra.mxu0 %v119
    %1285 = vmatprep.subr.mxu0 %v112
    %1286 = vmatpush1.msra.mxu0 %v111
    %1287 = vmatprep.subr.mxu0 %v104
    %1288 = vmatpush1.msra.mxu0 %v103
    %1289 = vmatprep.subr.mxu0 %v96
    %1290 = vmatpush1.msra.mxu0 %v95
    %1291 = vmatprep.subr.mxu0 %v88
    %1292 = vmatpush1.msra.mxu0 %v87
    %1293 = vmatprep.subr.mxu0 %v80
    %1294 = vmatpush1.msra.mxu0 %v79
    %1295 = vmatprep.subr.mxu0 %v72
    %1296 = vmatpush1.msra.mxu0 %v71
    %1297 = vmatprep.subr.mxu0 %v64
    %1298 = vmatpush1.msra.mxu0 %v63
    %1299 = vmatprep.subr.mxu0 %v56
    %1300 = vmatpush1.msra.mxu0 %v55
    %1301 = vmatprep.subr.mxu0 %v304
    %1302 = vmatpush2.msra.mxu0 %v303
    %1303 = vmatprep.subr.mxu0 %v296
    %1304 = vmatpush2.msra.mxu0 %v295
    %1305 = vmatprep.subr.mxu0 %v288
    %1306 = vmatpush2.msra.mxu0 %v287
    %1307 = vmatprep.subr.mxu0 %v280
    %1308 = vmatpush2.msra.mxu0 %v279
    %1309 = vmatprep.subr.mxu0 %v272
    %1310 = vmatpush2.msra.mxu0 %v271
    %1311 = vmatprep.subr.mxu0 %v264
    %1312 = vmatpush2.msra.mxu0 %v263
    %1313 = vmatprep.subr.mxu0 %v256
    %1314 = vmatpush2.msra.mxu0 %v255
    %1315 = vmatprep.subr.mxu0 %v248
    %1316 = vmatpush2.msra.mxu0 %v247
    %1317 = vmatprep.subr.mxu0 %v240
    %1318 = vmatpush2.msra.mxu0 %v239
    %1319 = vmatprep.subr.mxu0 %v232
    %1320 = vmatpush2.msra.mxu0 %v231
    %1321 = vmatprep.subr.mxu0 %v224
    %1322 = vmatpush2.msra.mxu0 %v223
    %1323 = vmatprep.subr.mxu0 %v216
    %1324 = vmatpush2.msra.mxu0 %v215
    %1325 = vmatprep.subr.mxu0 %v208
    %1326 = vmatpush2.msra.mxu0 %v207
    %1327 = vmatprep.subr.mxu0 %v200
    %1328 = vmatpush2.msra.mxu0 %v199
    %1329 = vmatprep.subr.mxu0 %v192
    %1330 = vmatpush2.msra.mxu0 %v191
    %1331 = vmatprep.subr.mxu0 %v184
    %1332 = vmatpush2.msra.mxu0 %v183
    %1333 = vmatprep.mubr.f32.mxu0 %v1053
    %1334 = vmatmul.mubr.f32.gmra.mxu0 %v1052
    %v1335 = vpop.f32.mrf.mxu0
    %v1336 = vadd.f32 0.0, %v1335
    %v1337 = vpop.f32.mrf.mxu0
    %v1338 = vadd.f32 0.0, %v1337
    %1339 = vdwg.mxu0
    %v1348 = vcombine.low %v1123, %v1125
    %v1349 = vcombine.low %v1194, %v1196
    %v1351 = vunpack.c.l.s4 1983009808
    %v1352 = vunpack.c.0.s8 %v1351
    %v1353 = vlaneseq
    %v1354 = vshrl.u32 %v1353, 7
    %v1355 = vsub.s32 %v1352, %v1354
    %v1356 = vrot.slane %v1348, %v1355
    %v1358 = vunpack.c.l.s4 1983009808
    %v1359 = vunpack.c.0.s8 %v1358
    %v1360 = vlaneseq
    %v1361 = vshrl.u32 %v1360, 7
    %v1362 = vsub.s32 %v1359, %v1361
    %v1363 = vrot.slane %v1349, %v1362
    %v1364 = vcombine.low %v1356, %v1363
    %v1365 = vcombine.low %v1265, %v1267
    %v1366 = vcombine.low %v1336, %v1338
    %v1368 = vunpack.c.l.s4 1983009808
    %v1369 = vunpack.c.0.s8 %v1368
    %v1370 = vlaneseq
    %v1371 = vshrl.u32 %v1370, 7
    %v1372 = vsub.s32 %v1369, %v1371
    %v1373 = vrot.slane %v1365, %v1372
    %v1375 = vunpack.c.l.s4 1983009808
    %v1376 = vunpack.c.0.s8 %v1375
    %v1377 = vlaneseq
    %v1378 = vshrl.u32 %v1377, 7
    %v1379 = vsub.s32 %v1376, %v1378
    %v1380 = vrot.slane %v1366, %v1379
    %v1381 = vcombine.low %v1373, %v1380
    %v1384 = vadd.f32 %v1043, %v1364
    %v1385 = vadd.f32 %v1044, %v1381
    %v1386 = vxor.u32 %v1384, 2147483648
    %v1387 = vxor.u32 %v1385, 2147483648
    %v1388 = vmul.f32 %v1386, 1.442695
    %v1389 = vpow.pop %v1388
    %v1390 = vmul.f32 %v1387, 1.442695
    %v1391 = vpow.pop %v1390
    %v1392 = vadd.f32 %v1389, 1.0
    %v1393 = vadd.f32 %v1391, 1.0
    %v1394 = vrcp.pop %v1392
    %v1395 = vmul.f32 1.0, %v1394
    %v1396 = vrcp.pop %v1393
    %v1397 = vmul.f32 1.0, %v1396
    %v1399 = vrot.slane %v1385, 4
    %v1401 = vtanh.pop %v1399
    %v1403 = vrot.slane %v1395, 4
    %v1405 = vmul.f32 %v1403, %v1039
    %v1406 = vmul.f32 %v1395, %v1401
    %v1407 = vadd.f32 %v1405, %v1406
    %v1408 = vtanh.pop %v1407
    %v1409 = vmul.f32 %v1397, %v1408
    %s1410 = scalar_lea.vmem [#allocation4], 48
    %v1411 = vld [vmem:[%s1410] sm:$0xff]
    %v1412 = vld [vmem:[%s1410 + $0x8] sm:$0xff]
    %v1415 = vunpack.c.l.s4 1983009808
    %v1416 = vunpack.c.0.s8 %v1415
    %v1417 = vlaneseq
    %v1418 = vshrl.u32 %v1417, 7
    %v1419 = vsub.s32 %v1416, %v1418
    %v1420 = vrot.slane %v1409, %v1419
    %v1421 = vcombine.high %v1420, %v1420
    %1424 = vmatprep.subr.mxu0 %v170
    %1425 = vmatpush1.msra.mxu0 %v169
    %1426 = vmatprep.subr.mxu0 %v162
    %1427 = vmatpush1.msra.mxu0 %v161
    %1428 = vmatprep.subr.mxu0 %v154
    %1429 = vmatpush1.msra.mxu0 %v153
    %1430 = vmatprep.subr.mxu0 %v146
    %1431 = vmatpush1.msra.mxu0 %v145
    %1432 = vmatprep.subr.mxu0 %v138
    %1433 = vmatpush1.msra.mxu0 %v137
    %1434 = vmatprep.subr.mxu0 %v130
    %1435 = vmatpush1.msra.mxu0 %v129
    %1436 = vmatprep.subr.mxu0 %v122
    %1437 = vmatpush1.msra.mxu0 %v121
    %1438 = vmatprep.subr.mxu0 %v114
    %1439 = vmatpush1.msra.mxu0 %v113
    %1440 = vmatprep.subr.mxu0 %v106
    %1441 = vmatpush1.msra.mxu0 %v105
    %1442 = vmatprep.subr.mxu0 %v98
    %1443 = vmatpush1.msra.mxu0 %v97
    %1444 = vmatprep.subr.mxu0 %v90
    %1445 = vmatpush1.msra.mxu0 %v89
    %1446 = vmatprep.subr.mxu0 %v82
    %1447 = vmatpush1.msra.mxu0 %v81
    %1448 = vmatprep.subr.mxu0 %v74
    %1449 = vmatpush1.msra.mxu0 %v73
    %1450 = vmatprep.subr.mxu0 %v66
    %1451 = vmatpush1.msra.mxu0 %v65
    %1452 = vmatprep.subr.mxu0 %v58
    %1453 = vmatpush1.msra.mxu0 %v57
    %1454 = vmatprep.subr.mxu0 %v50
    %1455 = vmatpush1.msra.mxu0 %v49
    %1456 = vmatprep.subr.mxu0 %v298
    %1457 = vmatpush2.msra.mxu0 %v297
    %1458 = vmatprep.subr.mxu0 %v290
    %1459 = vmatpush2.msra.mxu0 %v289
    %1460 = vmatprep.subr.mxu0 %v282
    %1461 = vmatpush2.msra.mxu0 %v281
    %1462 = vmatprep.subr.mxu0 %v274
    %1463 = vmatpush2.msra.mxu0 %v273
    %1464 = vmatprep.subr.mxu0 %v266
    %1465 = vmatpush2.msra.mxu0 %v265
    %1466 = vmatprep.subr.mxu0 %v258
    %1467 = vmatpush2.msra.mxu0 %v257
    %1468 = vmatprep.subr.mxu0 %v250
    %1469 = vmatpush2.msra.mxu0 %v249
    %1470 = vmatprep.subr.mxu0 %v242
    %1471 = vmatpush2.msra.mxu0 %v241
    %1472 = vmatprep.subr.mxu0 %v234
    %1473 = vmatpush2.msra.mxu0 %v233
    %1474 = vmatprep.subr.mxu0 %v226
    %1475 = vmatpush2.msra.mxu0 %v225
    %1476 = vmatprep.subr.mxu0 %v218
    %1477 = vmatpush2.msra.mxu0 %v217
    %1478 = vmatprep.subr.mxu0 %v210
    %1479 = vmatpush2.msra.mxu0 %v209
    %1480 = vmatprep.subr.mxu0 %v202
    %1481 = vmatpush2.msra.mxu0 %v201
    %1482 = vmatprep.subr.mxu0 %v194
    %1483 = vmatpush2.msra.mxu0 %v193
    %1484 = vmatprep.subr.mxu0 %v186
    %1485 = vmatpush2.msra.mxu0 %v185
    %1486 = vmatprep.subr.mxu0 %v178
    %1487 = vmatpush2.msra.mxu0 %v177
    %1488 = vmatprep.mubr.f32.mxu0 %v1421
    %1489 = vmatmul.mubr.f32.gmra.mxu0 %v1420
    %v1490 = vpop.f32.mrf.mxu0
    %v1491 = vadd.f32 0.0, %v1490
    %v1492 = vpop.f32.mrf.mxu0
    %v1493 = vadd.f32 0.0, %v1492
    %1494 = vdwg.mxu0
    %1495 = vmatprep.subr.mxu0 %v172
    %1496 = vmatpush1.msra.mxu0 %v171
    %1497 = vmatprep.subr.mxu0 %v164
    %1498 = vmatpush1.msra.mxu0 %v163
    %1499 = vmatprep.subr.mxu0 %v156
    %1500 = vmatpush1.msra.mxu0 %v155
    %1501 = vmatprep.subr.mxu0 %v148
    %1502 = vmatpush1.msra.mxu0 %v147
    %1503 = vmatprep.subr.mxu0 %v140
    %1504 = vmatpush1.msra.mxu0 %v139
    %1505 = vmatprep.subr.mxu0 %v132
    %1506 = vmatpush1.msra.mxu0 %v131
    %1507 = vmatprep.subr.mxu0 %v124
    %1508 = vmatpush1.msra.mxu0 %v123
    %1509 = vmatprep.subr.mxu0 %v116
    %1510 = vmatpush1.msra.mxu0 %v115
    %1511 = vmatprep.subr.mxu0 %v108
    %1512 = vmatpush1.msra.mxu0 %v107
    %1513 = vmatprep.subr.mxu0 %v100
    %1514 = vmatpush1.msra.mxu0 %v99
    %1515 = vmatprep.subr.mxu0 %v92
    %1516 = vmatpush1.msra.mxu0 %v91
    %1517 = vmatprep.subr.mxu0 %v84
    %1518 = vmatpush1.msra.mxu0 %v83
    %1519 = vmatprep.subr.mxu0 %v76
    %1520 = vmatpush1.msra.mxu0 %v75
    %1521 = vmatprep.subr.mxu0 %v68
    %1522 = vmatpush1.msra.mxu0 %v67
    %1523 = vmatprep.subr.mxu0 %v60
    %1524 = vmatpush1.msra.mxu0 %v59
    %1525 = vmatprep.subr.mxu0 %v52
    %1526 = vmatpush1.msra.mxu0 %v51
    %1527 = vmatprep.subr.mxu0 %v300
    %1528 = vmatpush2.msra.mxu0 %v299
    %1529 = vmatprep.subr.mxu0 %v292
    %1530 = vmatpush2.msra.mxu0 %v291
    %1531 = vmatprep.subr.mxu0 %v284
    %1532 = vmatpush2.msra.mxu0 %v283
    %1533 = vmatprep.subr.mxu0 %v276
    %1534 = vmatpush2.msra.mxu0 %v275
    %1535 = vmatprep.subr.mxu0 %v268
    %1536 = vmatpush2.msra.mxu0 %v267
    %1537 = vmatprep.subr.mxu0 %v260
    %1538 = vmatpush2.msra.mxu0 %v259
    %1539 = vmatprep.subr.mxu0 %v252
    %1540 = vmatpush2.msra.mxu0 %v251
    %1541 = vmatprep.subr.mxu0 %v244
    %1542 = vmatpush2.msra.mxu0 %v243
    %1543 = vmatprep.subr.mxu0 %v236
    %1544 = vmatpush2.msra.mxu0 %v235
    %1545 = vmatprep.subr.mxu0 %v228
    %1546 = vmatpush2.msra.mxu0 %v227
    %1547 = vmatprep.subr.mxu0 %v220
    %1548 = vmatpush2.msra.mxu0 %v219
    %1549 = vmatprep.subr.mxu0 %v212
    %1550 = vmatpush2.msra.mxu0 %v211
    %1551 = vmatprep.subr.mxu0 %v204
    %1552 = vmatpush2.msra.mxu0 %v203
    %1553 = vmatprep.subr.mxu0 %v196
    %1554 = vmatpush2.msra.mxu0 %v195
    %1555 = vmatprep.subr.mxu0 %v188
    %1556 = vmatpush2.msra.mxu0 %v187
    %1557 = vmatprep.subr.mxu0 %v180
    %1558 = vmatpush2.msra.mxu0 %v179
    %1559 = vmatprep.mubr.f32.mxu0 %v1421
    %1560 = vmatmul.mubr.f32.gmra.mxu0 %v1420
    %v1561 = vpop.f32.mrf.mxu0
    %v1562 = vadd.f32 0.0, %v1561
    %v1563 = vpop.f32.mrf.mxu0
    %v1564 = vadd.f32 0.0, %v1563
    %1565 = vdwg.mxu0
    %1566 = vmatprep.subr.mxu0 %v174
    %1567 = vmatpush1.msra.mxu0 %v173
    %1568 = vmatprep.subr.mxu0 %v166
    %1569 = vmatpush1.msra.mxu0 %v165
    %1570 = vmatprep.subr.mxu0 %v158
    %1571 = vmatpush1.msra.mxu0 %v157
    %1572 = vmatprep.subr.mxu0 %v150
    %1573 = vmatpush1.msra.mxu0 %v149
    %1574 = vmatprep.subr.mxu0 %v142
    %1575 = vmatpush1.msra.mxu0 %v141
    %1576 = vmatprep.subr.mxu0 %v134
    %1577 = vmatpush1.msra.mxu0 %v133
    %1578 = vmatprep.subr.mxu0 %v126
    %1579 = vmatpush1.msra.mxu0 %v125
    %1580 = vmatprep.subr.mxu0 %v118
    %1581 = vmatpush1.msra.mxu0 %v117
    %1582 = vmatprep.subr.mxu0 %v110
    %1583 = vmatpush1.msra.mxu0 %v109
    %1584 = vmatprep.subr.mxu0 %v102
    %1585 = vmatpush1.msra.mxu0 %v101
    %1586 = vmatprep.subr.mxu0 %v94
    %1587 = vmatpush1.msra.mxu0 %v93
    %1588 = vmatprep.subr.mxu0 %v86
    %1589 = vmatpush1.msra.mxu0 %v85
    %1590 = vmatprep.subr.mxu0 %v78
    %1591 = vmatpush1.msra.mxu0 %v77
    %1592 = vmatprep.subr.mxu0 %v70
    %1593 = vmatpush1.msra.mxu0 %v69
    %1594 = vmatprep.subr.mxu0 %v62
    %1595 = vmatpush1.msra.mxu0 %v61
    %1596 = vmatprep.subr.mxu0 %v54
    %1597 = vmatpush1.msra.mxu0 %v53
    %1598 = vmatprep.subr.mxu0 %v302
    %1599 = vmatpush2.msra.mxu0 %v301
    %1600 = vmatprep.subr.mxu0 %v294
    %1601 = vmatpush2.msra.mxu0 %v293
    %1602 = vmatprep.subr.mxu0 %v286
    %1603 = vmatpush2.msra.mxu0 %v285
    %1604 = vmatprep.subr.mxu0 %v278
    %1605 = vmatpush2.msra.mxu0 %v277
    %1606 = vmatprep.subr.mxu0 %v270
    %1607 = vmatpush2.msra.mxu0 %v269
    %1608 = vmatprep.subr.mxu0 %v262
    %1609 = vmatpush2.msra.mxu0 %v261
    %1610 = vmatprep.subr.mxu0 %v254
    %1611 = vmatpush2.msra.mxu0 %v253
    %1612 = vmatprep.subr.mxu0 %v246
    %1613 = vmatpush2.msra.mxu0 %v245
    %1614 = vmatprep.subr.mxu0 %v238
    %1615 = vmatpush2.msra.mxu0 %v237
    %1616 = vmatprep.subr.mxu0 %v230
    %1617 = vmatpush2.msra.mxu0 %v229
    %1618 = vmatprep.subr.mxu0 %v222
    %1619 = vmatpush2.msra.mxu0 %v221
    %1620 = vmatprep.subr.mxu0 %v214
    %1621 = vmatpush2.msra.mxu0 %v213
    %1622 = vmatprep.subr.mxu0 %v206
    %1623 = vmatpush2.msra.mxu0 %v205
    %1624 = vmatprep.subr.mxu0 %v198
    %1625 = vmatpush2.msra.mxu0 %v197
    %1626 = vmatprep.subr.mxu0 %v190
    %1627 = vmatpush2.msra.mxu0 %v189
    %1628 = vmatprep.subr.mxu0 %v182
    %1629 = vmatpush2.msra.mxu0 %v181
    %1630 = vmatprep.mubr.f32.mxu0 %v1421
    %1631 = vmatmul.mubr.f32.gmra.mxu0 %v1420
    %v1632 = vpop.f32.mrf.mxu0
    %v1633 = vadd.f32 0.0, %v1632
    %v1634 = vpop.f32.mrf.mxu0
    %v1635 = vadd.f32 0.0, %v1634
    %1636 = vdwg.mxu0
    %1637 = vmatprep.subr.mxu0 %v176
    %1638 = vmatpush1.msra.mxu0 %v175
    %1639 = vmatprep.subr.mxu0 %v168
    %1640 = vmatpush1.msra.mxu0 %v167
    %1641 = vmatprep.subr.mxu0 %v160
    %1642 = vmatpush1.msra.mxu0 %v159
    %1643 = vmatprep.subr.mxu0 %v152
    %1644 = vmatpush1.msra.mxu0 %v151
    %1645 = vmatprep.subr.mxu0 %v144
    %1646 = vmatpush1.msra.mxu0 %v143
    %1647 = vmatprep.subr.mxu0 %v136
    %1648 = vmatpush1.msra.mxu0 %v135
    %1649 = vmatprep.subr.mxu0 %v128
    %1650 = vmatpush1.msra.mxu0 %v127
    %1651 = vmatprep.subr.mxu0 %v120
    %1652 = vmatpush1.msra.mxu0 %v119
    %1653 = vmatprep.subr.mxu0 %v112
    %1654 = vmatpush1.msra.mxu0 %v111
    %1655 = vmatprep.subr.mxu0 %v104
    %1656 = vmatpush1.msra.mxu0 %v103
    %1657 = vmatprep.subr.mxu0 %v96
    %1658 = vmatpush1.msra.mxu0 %v95
    %1659 = vmatprep.subr.mxu0 %v88
    %1660 = vmatpush1.msra.mxu0 %v87
    %1661 = vmatprep.subr.mxu0 %v80
    %1662 = vmatpush1.msra.mxu0 %v79
    %1663 = vmatprep.subr.mxu0 %v72
    %1664 = vmatpush1.msra.mxu0 %v71
    %1665 = vmatprep.subr.mxu0 %v64
    %1666 = vmatpush1.msra.mxu0 %v63
    %1667 = vmatprep.subr.mxu0 %v56
    %1668 = vmatpush1.msra.mxu0 %v55
    %1669 = vmatprep.subr.mxu0 %v304
    %1670 = vmatpush2.msra.mxu0 %v303
    %1671 = vmatprep.subr.mxu0 %v296
    %1672 = vmatpush2.msra.mxu0 %v295
    %1673 = vmatprep.subr.mxu0 %v288
    %1674 = vmatpush2.msra.mxu0 %v287
    %1675 = vmatprep.subr.mxu0 %v280
    %1676 = vmatpush2.msra.mxu0 %v279
    %1677 = vmatprep.subr.mxu0 %v272
    %1678 = vmatpush2.msra.mxu0 %v271
    %1679 = vmatprep.subr.mxu0 %v264
    %1680 = vmatpush2.msra.mxu0 %v263
    %1681 = vmatprep.subr.mxu0 %v256
    %1682 = vmatpush2.msra.mxu0 %v255
    %1683 = vmatprep.subr.mxu0 %v248
    %1684 = vmatpush2.msra.mxu0 %v247
    %1685 = vmatprep.subr.mxu0 %v240
    %1686 = vmatpush2.msra.mxu0 %v239
    %1687 = vmatprep.subr.mxu0 %v232
    %1688 = vmatpush2.msra.mxu0 %v231
    %1689 = vmatprep.subr.mxu0 %v224
    %1690 = vmatpush2.msra.mxu0 %v223
    %1691 = vmatprep.subr.mxu0 %v216
    %1692 = vmatpush2.msra.mxu0 %v215
    %1693 = vmatprep.subr.mxu0 %v208
    %1694 = vmatpush2.msra.mxu0 %v207
    %1695 = vmatprep.subr.mxu0 %v200
    %1696 = vmatpush2.msra.mxu0 %v199
    %1697 = vmatprep.subr.mxu0 %v192
    %1698 = vmatpush2.msra.mxu0 %v191
    %1699 = vmatprep.subr.mxu0 %v184
    %1700 = vmatpush2.msra.mxu0 %v183
    %1701 = vmatprep.mubr.f32.mxu0 %v1421
    %1702 = vmatmul.mubr.f32.gmra.mxu0 %v1420
    %v1703 = vpop.f32.mrf.mxu0
    %v1704 = vadd.f32 0.0, %v1703
    %v1705 = vpop.f32.mrf.mxu0
    %v1706 = vadd.f32 0.0, %v1705
    %1707 = vdwg.mxu0
    %v1716 = vcombine.low %v1491, %v1493
    %v1717 = vcombine.low %v1562, %v1564
    %v1719 = vunpack.c.l.s4 1983009808
    %v1720 = vunpack.c.0.s8 %v1719
    %v1721 = vlaneseq
    %v1722 = vshrl.u32 %v1721, 7
    %v1723 = vsub.s32 %v1720, %v1722
    %v1724 = vrot.slane %v1716, %v1723
    %v1726 = vunpack.c.l.s4 1983009808
    %v1727 = vunpack.c.0.s8 %v1726
    %v1728 = vlaneseq
    %v1729 = vshrl.u32 %v1728, 7
    %v1730 = vsub.s32 %v1727, %v1729
    %v1731 = vrot.slane %v1717, %v1730
    %v1732 = vcombine.low %v1724, %v1731
    %v1733 = vcombine.low %v1633, %v1635
    %v1734 = vcombine.low %v1704, %v1706
    %v1736 = vunpack.c.l.s4 1983009808
    %v1737 = vunpack.c.0.s8 %v1736
    %v1738 = vlaneseq
    %v1739 = vshrl.u32 %v1738, 7
    %v1740 = vsub.s32 %v1737, %v1739
    %v1741 = vrot.slane %v1733, %v1740
    %v1743 = vunpack.c.l.s4 1983009808
    %v1744 = vunpack.c.0.s8 %v1743
    %v1745 = vlaneseq
    %v1746 = vshrl.u32 %v1745, 7
    %v1747 = vsub.s32 %v1744, %v1746
    %v1748 = vrot.slane %v1734, %v1747
    %v1749 = vcombine.low %v1741, %v1748
    %v1752 = vadd.f32 %v1411, %v1732
    %v1753 = vadd.f32 %v1412, %v1749
    %v1754 = vxor.u32 %v1752, 2147483648
    %v1755 = vxor.u32 %v1753, 2147483648
    %v1756 = vmul.f32 %v1754, 1.442695
    %v1757 = vpow.pop %v1756
    %v1758 = vmul.f32 %v1755, 1.442695
    %v1759 = vpow.pop %v1758
    %v1760 = vadd.f32 %v1757, 1.0
    %v1761 = vadd.f32 %v1759, 1.0
    %v1762 = vrcp.pop %v1760
    %v1763 = vmul.f32 1.0, %v1762
    %v1764 = vrcp.pop %v1761
    %v1765 = vmul.f32 1.0, %v1764
    %v1767 = vrot.slane %v1753, 4
    %v1769 = vtanh.pop %v1767
    %v1771 = vrot.slane %v1763, 4
    %v1773 = vmul.f32 %v1771, %v1407
    %v1774 = vmul.f32 %v1763, %v1769
    %v1775 = vadd.f32 %v1773, %v1774
    %v1776 = vtanh.pop %v1775
    %v1777 = vmul.f32 %v1765, %v1776
    %s1778 = scalar_lea.vmem [#allocation4], 64
    %v1779 = vld [vmem:[%s1778] sm:$0xff]
    %v1780 = vld [vmem:[%s1778 + $0x8] sm:$0xff]
    %v1783 = vunpack.c.l.s4 1983009808
    %v1784 = vunpack.c.0.s8 %v1783
    %v1785 = vlaneseq
    %v1786 = vshrl.u32 %v1785, 7
    %v1787 = vsub.s32 %v1784, %v1786
    %v1788 = vrot.slane %v1777, %v1787
    %v1789 = vcombine.high %v1788, %v1788
    %1792 = vmatprep.subr.mxu0 %v170
    %1793 = vmatpush1.msra.mxu0 %v169
    %1794 = vmatprep.subr.mxu0 %v162
    %1795 = vmatpush1.msra.mxu0 %v161
    %1796 = vmatprep.subr.mxu0 %v154
    %1797 = vmatpush1.msra.mxu0 %v153
    %1798 = vmatprep.subr.mxu0 %v146
    %1799 = vmatpush1.msra.mxu0 %v145
    %1800 = vmatprep.subr.mxu0 %v138
    %1801 = vmatpush1.msra.mxu0 %v137
    %1802 = vmatprep.subr.mxu0 %v130
    %1803 = vmatpush1.msra.mxu0 %v129
    %1804 = vmatprep.subr.mxu0 %v122
    %1805 = vmatpush1.msra.mxu0 %v121
    %1806 = vmatprep.subr.mxu0 %v114
    %1807 = vmatpush1.msra.mxu0 %v113
    %1808 = vmatprep.subr.mxu0 %v106
    %1809 = vmatpush1.msra.mxu0 %v105
    %1810 = vmatprep.subr.mxu0 %v98
    %1811 = vmatpush1.msra.mxu0 %v97
    %1812 = vmatprep.subr.mxu0 %v90
    %1813 = vmatpush1.msra.mxu0 %v89
    %1814 = vmatprep.subr.mxu0 %v82
    %1815 = vmatpush1.msra.mxu0 %v81
    %1816 = vmatprep.subr.mxu0 %v74
    %1817 = vmatpush1.msra.mxu0 %v73
    %1818 = vmatprep.subr.mxu0 %v66
    %1819 = vmatpush1.msra.mxu0 %v65
    %1820 = vmatprep.subr.mxu0 %v58
    %1821 = vmatpush1.msra.mxu0 %v57
    %1822 = vmatprep.subr.mxu0 %v50
    %1823 = vmatpush1.msra.mxu0 %v49
    %1824 = vmatprep.subr.mxu0 %v298
    %1825 = vmatpush2.msra.mxu0 %v297
    %1826 = vmatprep.subr.mxu0 %v290
    %1827 = vmatpush2.msra.mxu0 %v289
    %1828 = vmatprep.subr.mxu0 %v282
    %1829 = vmatpush2.msra.mxu0 %v281
    %1830 = vmatprep.subr.mxu0 %v274
    %1831 = vmatpush2.msra.mxu0 %v273
    %1832 = vmatprep.subr.mxu0 %v266
    %1833 = vmatpush2.msra.mxu0 %v265
    %1834 = vmatprep.subr.mxu0 %v258
    %1835 = vmatpush2.msra.mxu0 %v257
    %1836 = vmatprep.subr.mxu0 %v250
    %1837 = vmatpush2.msra.mxu0 %v249
    %1838 = vmatprep.subr.mxu0 %v242
    %1839 = vmatpush2.msra.mxu0 %v241
    %1840 = vmatprep.subr.mxu0 %v234
    %1841 = vmatpush2.msra.mxu0 %v233
    %1842 = vmatprep.subr.mxu0 %v226
    %1843 = vmatpush2.msra.mxu0 %v225
    %1844 = vmatprep.subr.mxu0 %v218
    %1845 = vmatpush2.msra.mxu0 %v217
    %1846 = vmatprep.subr.mxu0 %v210
    %1847 = vmatpush2.msra.mxu0 %v209
    %1848 = vmatprep.subr.mxu0 %v202
    %1849 = vmatpush2.msra.mxu0 %v201
    %1850 = vmatprep.subr.mxu0 %v194
    %1851 = vmatpush2.msra.mxu0 %v193
    %1852 = vmatprep.subr.mxu0 %v186
    %1853 = vmatpush2.msra.mxu0 %v185
    %1854 = vmatprep.subr.mxu0 %v178
    %1855 = vmatpush2.msra.mxu0 %v177
    %1856 = vmatprep.mubr.f32.mxu0 %v1789
    %1857 = vmatmul.mubr.f32.gmra.mxu0 %v1788
    %v1858 = vpop.f32.mrf.mxu0
    %v1859 = vadd.f32 0.0, %v1858
    %v1860 = vpop.f32.mrf.mxu0
    %v1861 = vadd.f32 0.0, %v1860
    %1862 = vdwg.mxu0
    %1863 = vmatprep.subr.mxu0 %v172
    %1864 = vmatpush1.msra.mxu0 %v171
    %1865 = vmatprep.subr.mxu0 %v164
    %1866 = vmatpush1.msra.mxu0 %v163
    %1867 = vmatprep.subr.mxu0 %v156
    %1868 = vmatpush1.msra.mxu0 %v155
    %1869 = vmatprep.subr.mxu0 %v148
    %1870 = vmatpush1.msra.mxu0 %v147
    %1871 = vmatprep.subr.mxu0 %v140
    %1872 = vmatpush1.msra.mxu0 %v139
    %1873 = vmatprep.subr.mxu0 %v132
    %1874 = vmatpush1.msra.mxu0 %v131
    %1875 = vmatprep.subr.mxu0 %v124
    %1876 = vmatpush1.msra.mxu0 %v123
    %1877 = vmatprep.subr.mxu0 %v116
    %1878 = vmatpush1.msra.mxu0 %v115
    %1879 = vmatprep.subr.mxu0 %v108
    %1880 = vmatpush1.msra.mxu0 %v107
    %1881 = vmatprep.subr.mxu0 %v100
    %1882 = vmatpush1.msra.mxu0 %v99
    %1883 = vmatprep.subr.mxu0 %v92
    %1884 = vmatpush1.msra.mxu0 %v91
    %1885 = vmatprep.subr.mxu0 %v84
    %1886 = vmatpush1.msra.mxu0 %v83
    %1887 = vmatprep.subr.mxu0 %v76
    %1888 = vmatpush1.msra.mxu0 %v75
    %1889 = vmatprep.subr.mxu0 %v68
    %1890 = vmatpush1.msra.mxu0 %v67
    %1891 = vmatprep.subr.mxu0 %v60
    %1892 = vmatpush1.msra.mxu0 %v59
    %1893 = vmatprep.subr.mxu0 %v52
    %1894 = vmatpush1.msra.mxu0 %v51
    %1895 = vmatprep.subr.mxu0 %v300
    %1896 = vmatpush2.msra.mxu0 %v299
    %1897 = vmatprep.subr.mxu0 %v292
    %1898 = vmatpush2.msra.mxu0 %v291
    %1899 = vmatprep.subr.mxu0 %v284
    %1900 = vmatpush2.msra.mxu0 %v283
    %1901 = vmatprep.subr.mxu0 %v276
    %1902 = vmatpush2.msra.mxu0 %v275
    %1903 = vmatprep.subr.mxu0 %v268
    %1904 = vmatpush2.msra.mxu0 %v267
    %1905 = vmatprep.subr.mxu0 %v260
    %1906 = vmatpush2.msra.mxu0 %v259
    %1907 = vmatprep.subr.mxu0 %v252
    %1908 = vmatpush2.msra.mxu0 %v251
    %1909 = vmatprep.subr.mxu0 %v244
    %1910 = vmatpush2.msra.mxu0 %v243
    %1911 = vmatprep.subr.mxu0 %v236
    %1912 = vmatpush2.msra.mxu0 %v235
    %1913 = vmatprep.subr.mxu0 %v228
    %1914 = vmatpush2.msra.mxu0 %v227
    %1915 = vmatprep.subr.mxu0 %v220
    %1916 = vmatpush2.msra.mxu0 %v219
    %1917 = vmatprep.subr.mxu0 %v212
    %1918 = vmatpush2.msra.mxu0 %v211
    %1919 = vmatprep.subr.mxu0 %v204
    %1920 = vmatpush2.msra.mxu0 %v203
    %1921 = vmatprep.subr.mxu0 %v196
    %1922 = vmatpush2.msra.mxu0 %v195
    %1923 = vmatprep.subr.mxu0 %v188
    %1924 = vmatpush2.msra.mxu0 %v187
    %1925 = vmatprep.subr.mxu0 %v180
    %1926 = vmatpush2.msra.mxu0 %v179
    %1927 = vmatprep.mubr.f32.mxu0 %v1789
    %1928 = vmatmul.mubr.f32.gmra.mxu0 %v1788
    %v1929 = vpop.f32.mrf.mxu0
    %v1930 = vadd.f32 0.0, %v1929
    %v1931 = vpop.f32.mrf.mxu0
    %v1932 = vadd.f32 0.0, %v1931
    %1933 = vdwg.mxu0
    %1934 = vmatprep.subr.mxu0 %v174
    %1935 = vmatpush1.msra.mxu0 %v173
    %1936 = vmatprep.subr.mxu0 %v166
    %1937 = vmatpush1.msra.mxu0 %v165
    %1938 = vmatprep.subr.mxu0 %v158
    %1939 = vmatpush1.msra.mxu0 %v157
    %1940 = vmatprep.subr.mxu0 %v150
    %1941 = vmatpush1.msra.mxu0 %v149
    %1942 = vmatprep.subr.mxu0 %v142
    %1943 = vmatpush1.msra.mxu0 %v141
    %1944 = vmatprep.subr.mxu0 %v134
    %1945 = vmatpush1.msra.mxu0 %v133
    %1946 = vmatprep.subr.mxu0 %v126
    %1947 = vmatpush1.msra.mxu0 %v125
    %1948 = vmatprep.subr.mxu0 %v118
    %1949 = vmatpush1.msra.mxu0 %v117
    %1950 = vmatprep.subr.mxu0 %v110
    %1951 = vmatpush1.msra.mxu0 %v109
    %1952 = vmatprep.subr.mxu0 %v102
    %1953 = vmatpush1.msra.mxu0 %v101
    %1954 = vmatprep.subr.mxu0 %v94
    %1955 = vmatpush1.msra.mxu0 %v93
    %1956 = vmatprep.subr.mxu0 %v86
    %1957 = vmatpush1.msra.mxu0 %v85
    %1958 = vmatprep.subr.mxu0 %v78
    %1959 = vmatpush1.msra.mxu0 %v77
    %1960 = vmatprep.subr.mxu0 %v70
    %1961 = vmatpush1.msra.mxu0 %v69
    %1962 = vmatprep.subr.mxu0 %v62
    %1963 = vmatpush1.msra.mxu0 %v61
    %1964 = vmatprep.subr.mxu0 %v54
    %1965 = vmatpush1.msra.mxu0 %v53
    %1966 = vmatprep.subr.mxu0 %v302
    %1967 = vmatpush2.msra.mxu0 %v301
    %1968 = vmatprep.subr.mxu0 %v294
    %1969 = vmatpush2.msra.mxu0 %v293
    %1970 = vmatprep.subr.mxu0 %v286
    %1971 = vmatpush2.msra.mxu0 %v285
    %1972 = vmatprep.subr.mxu0 %v278
    %1973 = vmatpush2.msra.mxu0 %v277
    %1974 = vmatprep.subr.mxu0 %v270
    %1975 = vmatpush2.msra.mxu0 %v269
    %1976 = vmatprep.subr.mxu0 %v262
    %1977 = vmatpush2.msra.mxu0 %v261
    %1978 = vmatprep.subr.mxu0 %v254
    %1979 = vmatpush2.msra.mxu0 %v253
    %1980 = vmatprep.subr.mxu0 %v246
    %1981 = vmatpush2.msra.mxu0 %v245
    %1982 = vmatprep.subr.mxu0 %v238
    %1983 = vmatpush2.msra.mxu0 %v237
    %1984 = vmatprep.subr.mxu0 %v230
    %1985 = vmatpush2.msra.mxu0 %v229
    %1986 = vmatprep.subr.mxu0 %v222
    %1987 = vmatpush2.msra.mxu0 %v221
    %1988 = vmatprep.subr.mxu0 %v214
    %1989 = vmatpush2.msra.mxu0 %v213
    %1990 = vmatprep.subr.mxu0 %v206
    %1991 = vmatpush2.msra.mxu0 %v205
    %1992 = vmatprep.subr.mxu0 %v198
    %1993 = vmatpush2.msra.mxu0 %v197
    %1994 = vmatprep.subr.mxu0 %v190
    %1995 = vmatpush2.msra.mxu0 %v189
    %1996 = vmatprep.subr.mxu0 %v182
    %1997 = vmatpush2.msra.mxu0 %v181
    %1998 = vmatprep.mubr.f32.mxu0 %v1789
    %1999 = vmatmul.mubr.f32.gmra.mxu0 %v1788
    %v2000 = vpop.f32.mrf.mxu0
    %v2001 = vadd.f32 0.0, %v2000
    %v2002 = vpop.f32.mrf.mxu0
    %v2003 = vadd.f32 0.0, %v2002
    %2004 = vdwg.mxu0
    %2005 = vmatprep.subr.mxu0 %v176
    %2006 = vmatpush1.msra.mxu0 %v175
    %2007 = vmatprep.subr.mxu0 %v168
    %2008 = vmatpush1.msra.mxu0 %v167
    %2009 = vmatprep.subr.mxu0 %v160
    %2010 = vmatpush1.msra.mxu0 %v159
    %2011 = vmatprep.subr.mxu0 %v152
    %2012 = vmatpush1.msra.mxu0 %v151
    %2013 = vmatprep.subr.mxu0 %v144
    %2014 = vmatpush1.msra.mxu0 %v143
    %2015 = vmatprep.subr.mxu0 %v136
    %2016 = vmatpush1.msra.mxu0 %v135
    %2017 = vmatprep.subr.mxu0 %v128
    %2018 = vmatpush1.msra.mxu0 %v127
    %2019 = vmatprep.subr.mxu0 %v120
    %2020 = vmatpush1.msra.mxu0 %v119
    %2021 = vmatprep.subr.mxu0 %v112
    %2022 = vmatpush1.msra.mxu0 %v111
    %2023 = vmatprep.subr.mxu0 %v104
    %2024 = vmatpush1.msra.mxu0 %v103
    %2025 = vmatprep.subr.mxu0 %v96
    %2026 = vmatpush1.msra.mxu0 %v95
    %2027 = vmatprep.subr.mxu0 %v88
    %2028 = vmatpush1.msra.mxu0 %v87
    %2029 = vmatprep.subr.mxu0 %v80
    %2030 = vmatpush1.msra.mxu0 %v79
    %2031 = vmatprep.subr.mxu0 %v72
    %2032 = vmatpush1.msra.mxu0 %v71
    %2033 = vmatprep.subr.mxu0 %v64
    %2034 = vmatpush1.msra.mxu0 %v63
    %2035 = vmatprep.subr.mxu0 %v56
    %2036 = vmatpush1.msra.mxu0 %v55
    %2037 = vmatprep.subr.mxu0 %v304
    %2038 = vmatpush2.msra.mxu0 %v303
    %2039 = vmatprep.subr.mxu0 %v296
    %2040 = vmatpush2.msra.mxu0 %v295
    %2041 = vmatprep.subr.mxu0 %v288
    %2042 = vmatpush2.msra.mxu0 %v287
    %2043 = vmatprep.subr.mxu0 %v280
    %2044 = vmatpush2.msra.mxu0 %v279
    %2045 = vmatprep.subr.mxu0 %v272
    %2046 = vmatpush2.msra.mxu0 %v271
    %2047 = vmatprep.subr.mxu0 %v264
    %2048 = vmatpush2.msra.mxu0 %v263
    %2049 = vmatprep.subr.mxu0 %v256
    %2050 = vmatpush2.msra.mxu0 %v255
    %2051 = vmatprep.subr.mxu0 %v248
    %2052 = vmatpush2.msra.mxu0 %v247
    %2053 = vmatprep.subr.mxu0 %v240
    %2054 = vmatpush2.msra.mxu0 %v239
    %2055 = vmatprep.subr.mxu0 %v232
    %2056 = vmatpush2.msra.mxu0 %v231
    %2057 = vmatprep.subr.mxu0 %v224
    %2058 = vmatpush2.msra.mxu0 %v223
    %2059 = vmatprep.subr.mxu0 %v216
    %2060 = vmatpush2.msra.mxu0 %v215
    %2061 = vmatprep.subr.mxu0 %v208
    %2062 = vmatpush2.msra.mxu0 %v207
    %2063 = vmatprep.subr.mxu0 %v200
    %2064 = vmatpush2.msra.mxu0 %v199
    %2065 = vmatprep.subr.mxu0 %v192
    %2066 = vmatpush2.msra.mxu0 %v191
    %2067 = vmatprep.subr.mxu0 %v184
    %2068 = vmatpush2.msra.mxu0 %v183
    %2069 = vmatprep.mubr.f32.mxu0 %v1789
    %2070 = vmatmul.mubr.f32.gmra.mxu0 %v1788
    %v2071 = vpop.f32.mrf.mxu0
    %v2072 = vadd.f32 0.0, %v2071
    %v2073 = vpop.f32.mrf.mxu0
    %v2074 = vadd.f32 0.0, %v2073
    %2075 = vdwg.mxu0
    %v2084 = vcombine.low %v1859, %v1861
    %v2085 = vcombine.low %v1930, %v1932
    %v2087 = vunpack.c.l.s4 1983009808
    %v2088 = vunpack.c.0.s8 %v2087
    %v2089 = vlaneseq
    %v2090 = vshrl.u32 %v2089, 7
    %v2091 = vsub.s32 %v2088, %v2090
    %v2092 = vrot.slane %v2084, %v2091
    %v2094 = vunpack.c.l.s4 1983009808
    %v2095 = vunpack.c.0.s8 %v2094
    %v2096 = vlaneseq
    %v2097 = vshrl.u32 %v2096, 7
    %v2098 = vsub.s32 %v2095, %v2097
    %v2099 = vrot.slane %v2085, %v2098
    %v2100 = vcombine.low %v2092, %v2099
    %v2101 = vcombine.low %v2001, %v2003
    %v2102 = vcombine.low %v2072, %v2074
    %v2104 = vunpack.c.l.s4 1983009808
    %v2105 = vunpack.c.0.s8 %v2104
    %v2106 = vlaneseq
    %v2107 = vshrl.u32 %v2106, 7
    %v2108 = vsub.s32 %v2105, %v2107
    %v2109 = vrot.slane %v2101, %v2108
    %v2111 = vunpack.c.l.s4 1983009808
    %v2112 = vunpack.c.0.s8 %v2111
    %v2113 = vlaneseq
    %v2114 = vshrl.u32 %v2113, 7
    %v2115 = vsub.s32 %v2112, %v2114
    %v2116 = vrot.slane %v2102, %v2115
    %v2117 = vcombine.low %v2109, %v2116
    %v2120 = vadd.f32 %v1779, %v2100
    %v2121 = vadd.f32 %v1780, %v2117
    %v2122 = vxor.u32 %v2120, 2147483648
    %v2123 = vxor.u32 %v2121, 2147483648
    %v2124 = vmul.f32 %v2122, 1.442695
    %v2125 = vpow.pop %v2124
    %v2126 = vmul.f32 %v2123, 1.442695
    %v2127 = vpow.pop %v2126
    %v2128 = vadd.f32 %v2125, 1.0
    %v2129 = vadd.f32 %v2127, 1.0
    %v2130 = vrcp.pop %v2128
    %v2131 = vmul.f32 1.0, %v2130
    %v2132 = vrcp.pop %v2129
    %v2133 = vmul.f32 1.0, %v2132
    %v2135 = vrot.slane %v2121, 4
    %v2137 = vtanh.pop %v2135
    %v2139 = vrot.slane %v2131, 4
    %v2141 = vmul.f32 %v2139, %v1775
    %v2142 = vmul.f32 %v2131, %v2137
    %v2143 = vadd.f32 %v2141, %v2142
    %v2144 = vtanh.pop %v2143
    %v2145 = vmul.f32 %v2133, %v2144
    %s2146 = scalar_lea.vmem [#allocation4], 80
    %v2147 = vld [vmem:[%s2146] sm:$0xff]
    %v2148 = vld [vmem:[%s2146 + $0x8] sm:$0xff]
    %v2151 = vunpack.c.l.s4 1983009808
    %v2152 = vunpack.c.0.s8 %v2151
    %v2153 = vlaneseq
    %v2154 = vshrl.u32 %v2153, 7
    %v2155 = vsub.s32 %v2152, %v2154
    %v2156 = vrot.slane %v2145, %v2155
    %v2157 = vcombine.high %v2156, %v2156
    %2160 = vmatprep.subr.mxu0 %v170
    %2161 = vmatpush1.msra.mxu0 %v169
    %2162 = vmatprep.subr.mxu0 %v162
    %2163 = vmatpush1.msra.mxu0 %v161
    %2164 = vmatprep.subr.mxu0 %v154
    %2165 = vmatpush1.msra.mxu0 %v153
    %2166 = vmatprep.subr.mxu0 %v146
    %2167 = vmatpush1.msra.mxu0 %v145
    %2168 = vmatprep.subr.mxu0 %v138
    %2169 = vmatpush1.msra.mxu0 %v137
    %2170 = vmatprep.subr.mxu0 %v130
    %2171 = vmatpush1.msra.mxu0 %v129
    %2172 = vmatprep.subr.mxu0 %v122
    %2173 = vmatpush1.msra.mxu0 %v121
    %2174 = vmatprep.subr.mxu0 %v114
    %2175 = vmatpush1.msra.mxu0 %v113
    %2176 = vmatprep.subr.mxu0 %v106
    %2177 = vmatpush1.msra.mxu0 %v105
    %2178 = vmatprep.subr.mxu0 %v98
    %2179 = vmatpush1.msra.mxu0 %v97
    %2180 = vmatprep.subr.mxu0 %v90
    %2181 = vmatpush1.msra.mxu0 %v89
    %2182 = vmatprep.subr.mxu0 %v82
    %2183 = vmatpush1.msra.mxu0 %v81
    %2184 = vmatprep.subr.mxu0 %v74
    %2185 = vmatpush1.msra.mxu0 %v73
    %2186 = vmatprep.subr.mxu0 %v66
    %2187 = vmatpush1.msra.mxu0 %v65
    %2188 = vmatprep.subr.mxu0 %v58
    %2189 = vmatpush1.msra.mxu0 %v57
    %2190 = vmatprep.subr.mxu0 %v50
    %2191 = vmatpush1.msra.mxu0 %v49
    %2192 = vmatprep.subr.mxu0 %v298
    %2193 = vmatpush2.msra.mxu0 %v297
    %2194 = vmatprep.subr.mxu0 %v290
    %2195 = vmatpush2.msra.mxu0 %v289
    %2196 = vmatprep.subr.mxu0 %v282
    %2197 = vmatpush2.msra.mxu0 %v281
    %2198 = vmatprep.subr.mxu0 %v274
    %2199 = vmatpush2.msra.mxu0 %v273
    %2200 = vmatprep.subr.mxu0 %v266
    %2201 = vmatpush2.msra.mxu0 %v265
    %2202 = vmatprep.subr.mxu0 %v258
    %2203 = vmatpush2.msra.mxu0 %v257
    %2204 = vmatprep.subr.mxu0 %v250
    %2205 = vmatpush2.msra.mxu0 %v249
    %2206 = vmatprep.subr.mxu0 %v242
    %2207 = vmatpush2.msra.mxu0 %v241
    %2208 = vmatprep.subr.mxu0 %v234
    %2209 = vmatpush2.msra.mxu0 %v233
    %2210 = vmatprep.subr.mxu0 %v226
    %2211 = vmatpush2.msra.mxu0 %v225
    %2212 = vmatprep.subr.mxu0 %v218
    %2213 = vmatpush2.msra.mxu0 %v217
    %2214 = vmatprep.subr.mxu0 %v210
    %2215 = vmatpush2.msra.mxu0 %v209
    %2216 = vmatprep.subr.mxu0 %v202
    %2217 = vmatpush2.msra.mxu0 %v201
    %2218 = vmatprep.subr.mxu0 %v194
    %2219 = vmatpush2.msra.mxu0 %v193
    %2220 = vmatprep.subr.mxu0 %v186
    %2221 = vmatpush2.msra.mxu0 %v185
    %2222 = vmatprep.subr.mxu0 %v178
    %2223 = vmatpush2.msra.mxu0 %v177
    %2224 = vmatprep.mubr.f32.mxu0 %v2157
    %2225 = vmatmul.mubr.f32.gmra.mxu0 %v2156
    %v2226 = vpop.f32.mrf.mxu0
    %v2227 = vadd.f32 0.0, %v2226
    %v2228 = vpop.f32.mrf.mxu0
    %v2229 = vadd.f32 0.0, %v2228
    %2230 = vdwg.mxu0
    %2231 = vmatprep.subr.mxu0 %v172
    %2232 = vmatpush1.msra.mxu0 %v171
    %2233 = vmatprep.subr.mxu0 %v164
    %2234 = vmatpush1.msra.mxu0 %v163
    %2235 = vmatprep.subr.mxu0 %v156
    %2236 = vmatpush1.msra.mxu0 %v155
    %2237 = vmatprep.subr.mxu0 %v148
    %2238 = vmatpush1.msra.mxu0 %v147
    %2239 = vmatprep.subr.mxu0 %v140
    %2240 = vmatpush1.msra.mxu0 %v139
    %2241 = vmatprep.subr.mxu0 %v132
    %2242 = vmatpush1.msra.mxu0 %v131
    %2243 = vmatprep.subr.mxu0 %v124
    %2244 = vmatpush1.msra.mxu0 %v123
    %2245 = vmatprep.subr.mxu0 %v116
    %2246 = vmatpush1.msra.mxu0 %v115
    %2247 = vmatprep.subr.mxu0 %v108
    %2248 = vmatpush1.msra.mxu0 %v107
    %2249 = vmatprep.subr.mxu0 %v100
    %2250 = vmatpush1.msra.mxu0 %v99
    %2251 = vmatprep.subr.mxu0 %v92
    %2252 = vmatpush1.msra.mxu0 %v91
    %2253 = vmatprep.subr.mxu0 %v84
    %2254 = vmatpush1.msra.mxu0 %v83
    %2255 = vmatprep.subr.mxu0 %v76
    %2256 = vmatpush1.msra.mxu0 %v75
    %2257 = vmatprep.subr.mxu0 %v68
    %2258 = vmatpush1.msra.mxu0 %v67
    %2259 = vmatprep.subr.mxu0 %v60
    %2260 = vmatpush1.msra.mxu0 %v59
    %2261 = vmatprep.subr.mxu0 %v52
    %2262 = vmatpush1.msra.mxu0 %v51
    %2263 = vmatprep.subr.mxu0 %v300
    %2264 = vmatpush2.msra.mxu0 %v299
    %2265 = vmatprep.subr.mxu0 %v292
    %2266 = vmatpush2.msra.mxu0 %v291
    %2267 = vmatprep.subr.mxu0 %v284
    %2268 = vmatpush2.msra.mxu0 %v283
    %2269 = vmatprep.subr.mxu0 %v276
    %2270 = vmatpush2.msra.mxu0 %v275
    %2271 = vmatprep.subr.mxu0 %v268
    %2272 = vmatpush2.msra.mxu0 %v267
    %2273 = vmatprep.subr.mxu0 %v260
    %2274 = vmatpush2.msra.mxu0 %v259
    %2275 = vmatprep.subr.mxu0 %v252
    %2276 = vmatpush2.msra.mxu0 %v251
    %2277 = vmatprep.subr.mxu0 %v244
    %2278 = vmatpush2.msra.mxu0 %v243
    %2279 = vmatprep.subr.mxu0 %v236
    %2280 = vmatpush2.msra.mxu0 %v235
    %2281 = vmatprep.subr.mxu0 %v228
    %2282 = vmatpush2.msra.mxu0 %v227
    %2283 = vmatprep.subr.mxu0 %v220
    %2284 = vmatpush2.msra.mxu0 %v219
    %2285 = vmatprep.subr.mxu0 %v212
    %2286 = vmatpush2.msra.mxu0 %v211
    %2287 = vmatprep.subr.mxu0 %v204
    %2288 = vmatpush2.msra.mxu0 %v203
    %2289 = vmatprep.subr.mxu0 %v196
    %2290 = vmatpush2.msra.mxu0 %v195
    %2291 = vmatprep.subr.mxu0 %v188
    %2292 = vmatpush2.msra.mxu0 %v187
    %2293 = vmatprep.subr.mxu0 %v180
    %2294 = vmatpush2.msra.mxu0 %v179
    %2295 = vmatprep.mubr.f32.mxu0 %v2157
    %2296 = vmatmul.mubr.f32.gmra.mxu0 %v2156
    %v2297 = vpop.f32.mrf.mxu0
    %v2298 = vadd.f32 0.0, %v2297
    %v2299 = vpop.f32.mrf.mxu0
    %v2300 = vadd.f32 0.0, %v2299
    %2301 = vdwg.mxu0
    %2302 = vmatprep.subr.mxu0 %v174
    %2303 = vmatpush1.msra.mxu0 %v173
    %2304 = vmatprep.subr.mxu0 %v166
    %2305 = vmatpush1.msra.mxu0 %v165
    %2306 = vmatprep.subr.mxu0 %v158
    %2307 = vmatpush1.msra.mxu0 %v157
    %2308 = vmatprep.subr.mxu0 %v150
    %2309 = vmatpush1.msra.mxu0 %v149
    %2310 = vmatprep.subr.mxu0 %v142
    %2311 = vmatpush1.msra.mxu0 %v141
    %2312 = vmatprep.subr.mxu0 %v134
    %2313 = vmatpush1.msra.mxu0 %v133
    %2314 = vmatprep.subr.mxu0 %v126
    %2315 = vmatpush1.msra.mxu0 %v125
    %2316 = vmatprep.subr.mxu0 %v118
    %2317 = vmatpush1.msra.mxu0 %v117
    %2318 = vmatprep.subr.mxu0 %v110
    %2319 = vmatpush1.msra.mxu0 %v109
    %2320 = vmatprep.subr.mxu0 %v102
    %2321 = vmatpush1.msra.mxu0 %v101
    %2322 = vmatprep.subr.mxu0 %v94
    %2323 = vmatpush1.msra.mxu0 %v93
    %2324 = vmatprep.subr.mxu0 %v86
    %2325 = vmatpush1.msra.mxu0 %v85
    %2326 = vmatprep.subr.mxu0 %v78
    %2327 = vmatpush1.msra.mxu0 %v77
    %2328 = vmatprep.subr.mxu0 %v70
    %2329 = vmatpush1.msra.mxu0 %v69
    %2330 = vmatprep.subr.mxu0 %v62
    %2331 = vmatpush1.msra.mxu0 %v61
    %2332 = vmatprep.subr.mxu0 %v54
    %2333 = vmatpush1.msra.mxu0 %v53
    %2334 = vmatprep.subr.mxu0 %v302
    %2335 = vmatpush2.msra.mxu0 %v301
    %2336 = vmatprep.subr.mxu0 %v294
    %2337 = vmatpush2.msra.mxu0 %v293
    %2338 = vmatprep.subr.mxu0 %v286
    %2339 = vmatpush2.msra.mxu0 %v285
    %2340 = vmatprep.subr.mxu0 %v278
    %2341 = vmatpush2.msra.mxu0 %v277
    %2342 = vmatprep.subr.mxu0 %v270
    %2343 = vmatpush2.msra.mxu0 %v269
    %2344 = vmatprep.subr.mxu0 %v262
    %2345 = vmatpush2.msra.mxu0 %v261
    %2346 = vmatprep.subr.mxu0 %v254
    %2347 = vmatpush2.msra.mxu0 %v253
    %2348 = vmatprep.subr.mxu0 %v246
    %2349 = vmatpush2.msra.mxu0 %v245
    %2350 = vmatprep.subr.mxu0 %v238
    %2351 = vmatpush2.msra.mxu0 %v237
    %2352 = vmatprep.subr.mxu0 %v230
    %2353 = vmatpush2.msra.mxu0 %v229
    %2354 = vmatprep.subr.mxu0 %v222
    %2355 = vmatpush2.msra.mxu0 %v221
    %2356 = vmatprep.subr.mxu0 %v214
    %2357 = vmatpush2.msra.mxu0 %v213
    %2358 = vmatprep.subr.mxu0 %v206
    %2359 = vmatpush2.msra.mxu0 %v205
    %2360 = vmatprep.subr.mxu0 %v198
    %2361 = vmatpush2.msra.mxu0 %v197
    %2362 = vmatprep.subr.mxu0 %v190
    %2363 = vmatpush2.msra.mxu0 %v189
    %2364 = vmatprep.subr.mxu0 %v182
    %2365 = vmatpush2.msra.mxu0 %v181
    %2366 = vmatprep.mubr.f32.mxu0 %v2157
    %2367 = vmatmul.mubr.f32.gmra.mxu0 %v2156
    %v2368 = vpop.f32.mrf.mxu0
    %v2369 = vadd.f32 0.0, %v2368
    %v2370 = vpop.f32.mrf.mxu0
    %v2371 = vadd.f32 0.0, %v2370
    %2372 = vdwg.mxu0
    %2373 = vmatprep.subr.mxu0 %v176
    %2374 = vmatpush1.msra.mxu0 %v175
    %2375 = vmatprep.subr.mxu0 %v168
    %2376 = vmatpush1.msra.mxu0 %v167
    %2377 = vmatprep.subr.mxu0 %v160
    %2378 = vmatpush1.msra.mxu0 %v159
    %2379 = vmatprep.subr.mxu0 %v152
    %2380 = vmatpush1.msra.mxu0 %v151
    %2381 = vmatprep.subr.mxu0 %v144
    %2382 = vmatpush1.msra.mxu0 %v143
    %2383 = vmatprep.subr.mxu0 %v136
    %2384 = vmatpush1.msra.mxu0 %v135
    %2385 = vmatprep.subr.mxu0 %v128
    %2386 = vmatpush1.msra.mxu0 %v127
    %2387 = vmatprep.subr.mxu0 %v120
    %2388 = vmatpush1.msra.mxu0 %v119
    %2389 = vmatprep.subr.mxu0 %v112
    %2390 = vmatpush1.msra.mxu0 %v111
    %2391 = vmatprep.subr.mxu0 %v104
    %2392 = vmatpush1.msra.mxu0 %v103
    %2393 = vmatprep.subr.mxu0 %v96
    %2394 = vmatpush1.msra.mxu0 %v95
    %2395 = vmatprep.subr.mxu0 %v88
    %2396 = vmatpush1.msra.mxu0 %v87
    %2397 = vmatprep.subr.mxu0 %v80
    %2398 = vmatpush1.msra.mxu0 %v79
    %2399 = vmatprep.subr.mxu0 %v72
    %2400 = vmatpush1.msra.mxu0 %v71
    %2401 = vmatprep.subr.mxu0 %v64
    %2402 = vmatpush1.msra.mxu0 %v63
    %2403 = vmatprep.subr.mxu0 %v56
    %2404 = vmatpush1.msra.mxu0 %v55
    %2405 = vmatprep.subr.mxu0 %v304
    %2406 = vmatpush2.msra.mxu0 %v303
    %2407 = vmatprep.subr.mxu0 %v296
    %2408 = vmatpush2.msra.mxu0 %v295
    %2409 = vmatprep.subr.mxu0 %v288
    %2410 = vmatpush2.msra.mxu0 %v287
    %2411 = vmatprep.subr.mxu0 %v280
    %2412 = vmatpush2.msra.mxu0 %v279
    %2413 = vmatprep.subr.mxu0 %v272
    %2414 = vmatpush2.msra.mxu0 %v271
    %2415 = vmatprep.subr.mxu0 %v264
    %2416 = vmatpush2.msra.mxu0 %v263
    %2417 = vmatprep.subr.mxu0 %v256
    %2418 = vmatpush2.msra.mxu0 %v255
    %2419 = vmatprep.subr.mxu0 %v248
    %2420 = vmatpush2.msra.mxu0 %v247
    %2421 = vmatprep.subr.mxu0 %v240
    %2422 = vmatpush2.msra.mxu0 %v239
    %2423 = vmatprep.subr.mxu0 %v232
    %2424 = vmatpush2.msra.mxu0 %v231
    %2425 = vmatprep.subr.mxu0 %v224
    %2426 = vmatpush2.msra.mxu0 %v223
    %2427 = vmatprep.subr.mxu0 %v216
    %2428 = vmatpush2.msra.mxu0 %v215
    %2429 = vmatprep.subr.mxu0 %v208
    %2430 = vmatpush2.msra.mxu0 %v207
    %2431 = vmatprep.subr.mxu0 %v200
    %2432 = vmatpush2.msra.mxu0 %v199
    %2433 = vmatprep.subr.mxu0 %v192
    %2434 = vmatpush2.msra.mxu0 %v191
    %2435 = vmatprep.subr.mxu0 %v184
    %2436 = vmatpush2.msra.mxu0 %v183
    %2437 = vmatprep.mubr.f32.mxu0 %v2157
    %2438 = vmatmul.mubr.f32.gmra.mxu0 %v2156
    %v2439 = vpop.f32.mrf.mxu0
    %v2440 = vadd.f32 0.0, %v2439
    %v2441 = vpop.f32.mrf.mxu0
    %v2442 = vadd.f32 0.0, %v2441
    %2443 = vdwg.mxu0
    %v2452 = vcombine.low %v2227, %v2229
    %v2453 = vcombine.low %v2298, %v2300
    %v2455 = vunpack.c.l.s4 1983009808
    %v2456 = vunpack.c.0.s8 %v2455
    %v2457 = vlaneseq
    %v2458 = vshrl.u32 %v2457, 7
    %v2459 = vsub.s32 %v2456, %v2458
    %v2460 = vrot.slane %v2452, %v2459
    %v2462 = vunpack.c.l.s4 1983009808
    %v2463 = vunpack.c.0.s8 %v2462
    %v2464 = vlaneseq
    %v2465 = vshrl.u32 %v2464, 7
    %v2466 = vsub.s32 %v2463, %v2465
    %v2467 = vrot.slane %v2453, %v2466
    %v2468 = vcombine.low %v2460, %v2467
    %v2469 = vcombine.low %v2369, %v2371
    %v2470 = vcombine.low %v2440, %v2442
    %v2472 = vunpack.c.l.s4 1983009808
    %v2473 = vunpack.c.0.s8 %v2472
    %v2474 = vlaneseq
    %v2475 = vshrl.u32 %v2474, 7
    %v2476 = vsub.s32 %v2473, %v2475
    %v2477 = vrot.slane %v2469, %v2476
    %v2479 = vunpack.c.l.s4 1983009808
    %v2480 = vunpack.c.0.s8 %v2479
    %v2481 = vlaneseq
    %v2482 = vshrl.u32 %v2481, 7
    %v2483 = vsub.s32 %v2480, %v2482
    %v2484 = vrot.slane %v2470, %v2483
    %v2485 = vcombine.low %v2477, %v2484
    %v2488 = vadd.f32 %v2147, %v2468
    %v2489 = vadd.f32 %v2148, %v2485
    %v2490 = vxor.u32 %v2488, 2147483648
    %v2491 = vxor.u32 %v2489, 2147483648
    %v2492 = vmul.f32 %v2490, 1.442695
    %v2493 = vpow.pop %v2492
    %v2494 = vmul.f32 %v2491, 1.442695
    %v2495 = vpow.pop %v2494
    %v2496 = vadd.f32 %v2493, 1.0
    %v2497 = vadd.f32 %v2495, 1.0
    %v2498 = vrcp.pop %v2496
    %v2499 = vmul.f32 1.0, %v2498
    %v2500 = vrcp.pop %v2497
    %v2501 = vmul.f32 1.0, %v2500
    %v2503 = vrot.slane %v2489, 4
    %v2505 = vtanh.pop %v2503
    %v2507 = vrot.slane %v2499, 4
    %v2509 = vmul.f32 %v2507, %v2143
    %v2510 = vmul.f32 %v2499, %v2505
    %v2511 = vadd.f32 %v2509, %v2510
    %v2512 = vtanh.pop %v2511
    %v2513 = vmul.f32 %v2501, %v2512
    %s2514 = scalar_lea.vmem [#allocation4], 96
    %v2515 = vld [vmem:[%s2514] sm:$0xff]
    %v2516 = vld [vmem:[%s2514 + $0x8] sm:$0xff]
    %v2519 = vunpack.c.l.s4 1983009808
    %v2520 = vunpack.c.0.s8 %v2519
    %v2521 = vlaneseq
    %v2522 = vshrl.u32 %v2521, 7
    %v2523 = vsub.s32 %v2520, %v2522
    %v2524 = vrot.slane %v2513, %v2523
    %v2525 = vcombine.high %v2524, %v2524
    %2528 = vmatprep.subr.mxu0 %v170
    %2529 = vmatpush1.msra.mxu0 %v169
    %2530 = vmatprep.subr.mxu0 %v162
    %2531 = vmatpush1.msra.mxu0 %v161
    %2532 = vmatprep.subr.mxu0 %v154
    %2533 = vmatpush1.msra.mxu0 %v153
    %2534 = vmatprep.subr.mxu0 %v146
    %2535 = vmatpush1.msra.mxu0 %v145
    %2536 = vmatprep.subr.mxu0 %v138
    %2537 = vmatpush1.msra.mxu0 %v137
    %2538 = vmatprep.subr.mxu0 %v130
    %2539 = vmatpush1.msra.mxu0 %v129
    %2540 = vmatprep.subr.mxu0 %v122
    %2541 = vmatpush1.msra.mxu0 %v121
    %2542 = vmatprep.subr.mxu0 %v114
    %2543 = vmatpush1.msra.mxu0 %v113
    %2544 = vmatprep.subr.mxu0 %v106
    %2545 = vmatpush1.msra.mxu0 %v105
    %2546 = vmatprep.subr.mxu0 %v98
    %2547 = vmatpush1.msra.mxu0 %v97
    %2548 = vmatprep.subr.mxu0 %v90
    %2549 = vmatpush1.msra.mxu0 %v89
    %2550 = vmatprep.subr.mxu0 %v82
    %2551 = vmatpush1.msra.mxu0 %v81
    %2552 = vmatprep.subr.mxu0 %v74
    %2553 = vmatpush1.msra.mxu0 %v73
    %2554 = vmatprep.subr.mxu0 %v66
    %2555 = vmatpush1.msra.mxu0 %v65
    %2556 = vmatprep.subr.mxu0 %v58
    %2557 = vmatpush1.msra.mxu0 %v57
    %2558 = vmatprep.subr.mxu0 %v50
    %2559 = vmatpush1.msra.mxu0 %v49
    %2560 = vmatprep.subr.mxu0 %v298
    %2561 = vmatpush2.msra.mxu0 %v297
    %2562 = vmatprep.subr.mxu0 %v290
    %2563 = vmatpush2.msra.mxu0 %v289
    %2564 = vmatprep.subr.mxu0 %v282
    %2565 = vmatpush2.msra.mxu0 %v281
    %2566 = vmatprep.subr.mxu0 %v274
    %2567 = vmatpush2.msra.mxu0 %v273
    %2568 = vmatprep.subr.mxu0 %v266
    %2569 = vmatpush2.msra.mxu0 %v265
    %2570 = vmatprep.subr.mxu0 %v258
    %2571 = vmatpush2.msra.mxu0 %v257
    %2572 = vmatprep.subr.mxu0 %v250
    %2573 = vmatpush2.msra.mxu0 %v249
    %2574 = vmatprep.subr.mxu0 %v242
    %2575 = vmatpush2.msra.mxu0 %v241
    %2576 = vmatprep.subr.mxu0 %v234
    %2577 = vmatpush2.msra.mxu0 %v233
    %2578 = vmatprep.subr.mxu0 %v226
    %2579 = vmatpush2.msra.mxu0 %v225
    %2580 = vmatprep.subr.mxu0 %v218
    %2581 = vmatpush2.msra.mxu0 %v217
    %2582 = vmatprep.subr.mxu0 %v210
    %2583 = vmatpush2.msra.mxu0 %v209
    %2584 = vmatprep.subr.mxu0 %v202
    %2585 = vmatpush2.msra.mxu0 %v201
    %2586 = vmatprep.subr.mxu0 %v194
    %2587 = vmatpush2.msra.mxu0 %v193
    %2588 = vmatprep.subr.mxu0 %v186
    %2589 = vmatpush2.msra.mxu0 %v185
    %2590 = vmatprep.subr.mxu0 %v178
    %2591 = vmatpush2.msra.mxu0 %v177
    %2592 = vmatprep.mubr.f32.mxu0 %v2525
    %2593 = vmatmul.mubr.f32.gmra.mxu0 %v2524
    %v2594 = vpop.f32.mrf.mxu0
    %v2595 = vadd.f32 0.0, %v2594
    %v2596 = vpop.f32.mrf.mxu0
    %v2597 = vadd.f32 0.0, %v2596
    %2598 = vdwg.mxu0
    %2599 = vmatprep.subr.mxu0 %v172
    %2600 = vmatpush1.msra.mxu0 %v171
    %2601 = vmatprep.subr.mxu0 %v164
    %2602 = vmatpush1.msra.mxu0 %v163
    %2603 = vmatprep.subr.mxu0 %v156
    %2604 = vmatpush1.msra.mxu0 %v155
    %2605 = vmatprep.subr.mxu0 %v148
    %2606 = vmatpush1.msra.mxu0 %v147
    %2607 = vmatprep.subr.mxu0 %v140
    %2608 = vmatpush1.msra.mxu0 %v139
    %2609 = vmatprep.subr.mxu0 %v132
    %2610 = vmatpush1.msra.mxu0 %v131
    %2611 = vmatprep.subr.mxu0 %v124
    %2612 = vmatpush1.msra.mxu0 %v123
    %2613 = vmatprep.subr.mxu0 %v116
    %2614 = vmatpush1.msra.mxu0 %v115
    %2615 = vmatprep.subr.mxu0 %v108
    %2616 = vmatpush1.msra.mxu0 %v107
    %2617 = vmatprep.subr.mxu0 %v100
    %2618 = vmatpush1.msra.mxu0 %v99
    %2619 = vmatprep.subr.mxu0 %v92
    %2620 = vmatpush1.msra.mxu0 %v91
    %2621 = vmatprep.subr.mxu0 %v84
    %2622 = vmatpush1.msra.mxu0 %v83
    %2623 = vmatprep.subr.mxu0 %v76
    %2624 = vmatpush1.msra.mxu0 %v75
    %2625 = vmatprep.subr.mxu0 %v68
    %2626 = vmatpush1.msra.mxu0 %v67
    %2627 = vmatprep.subr.mxu0 %v60
    %2628 = vmatpush1.msra.mxu0 %v59
    %2629 = vmatprep.subr.mxu0 %v52
    %2630 = vmatpush1.msra.mxu0 %v51
    %2631 = vmatprep.subr.mxu0 %v300
    %2632 = vmatpush2.msra.mxu0 %v299
    %2633 = vmatprep.subr.mxu0 %v292
    %2634 = vmatpush2.msra.mxu0 %v291
    %2635 = vmatprep.subr.mxu0 %v284
    %2636 = vmatpush2.msra.mxu0 %v283
    %2637 = vmatprep.subr.mxu0 %v276
    %2638 = vmatpush2.msra.mxu0 %v275
    %2639 = vmatprep.subr.mxu0 %v268
    %2640 = vmatpush2.msra.mxu0 %v267
    %2641 = vmatprep.subr.mxu0 %v260
    %2642 = vmatpush2.msra.mxu0 %v259
    %2643 = vmatprep.subr.mxu0 %v252
    %2644 = vmatpush2.msra.mxu0 %v251
    %2645 = vmatprep.subr.mxu0 %v244
    %2646 = vmatpush2.msra.mxu0 %v243
    %2647 = vmatprep.subr.mxu0 %v236
    %2648 = vmatpush2.msra.mxu0 %v235
    %2649 = vmatprep.subr.mxu0 %v228
    %2650 = vmatpush2.msra.mxu0 %v227
    %2651 = vmatprep.subr.mxu0 %v220
    %2652 = vmatpush2.msra.mxu0 %v219
    %2653 = vmatprep.subr.mxu0 %v212
    %2654 = vmatpush2.msra.mxu0 %v211
    %2655 = vmatprep.subr.mxu0 %v204
    %2656 = vmatpush2.msra.mxu0 %v203
    %2657 = vmatprep.subr.mxu0 %v196
    %2658 = vmatpush2.msra.mxu0 %v195
    %2659 = vmatprep.subr.mxu0 %v188
    %2660 = vmatpush2.msra.mxu0 %v187
    %2661 = vmatprep.subr.mxu0 %v180
    %2662 = vmatpush2.msra.mxu0 %v179
    %2663 = vmatprep.mubr.f32.mxu0 %v2525
    %2664 = vmatmul.mubr.f32.gmra.mxu0 %v2524
    %v2665 = vpop.f32.mrf.mxu0
    %v2666 = vadd.f32 0.0, %v2665
    %v2667 = vpop.f32.mrf.mxu0
    %v2668 = vadd.f32 0.0, %v2667
    %2669 = vdwg.mxu0
    %2670 = vmatprep.subr.mxu0 %v174
    %2671 = vmatpush1.msra.mxu0 %v173
    %2672 = vmatprep.subr.mxu0 %v166
    %2673 = vmatpush1.msra.mxu0 %v165
    %2674 = vmatprep.subr.mxu0 %v158
    %2675 = vmatpush1.msra.mxu0 %v157
    %2676 = vmatprep.subr.mxu0 %v150
    %2677 = vmatpush1.msra.mxu0 %v149
    %2678 = vmatprep.subr.mxu0 %v142
    %2679 = vmatpush1.msra.mxu0 %v141
    %2680 = vmatprep.subr.mxu0 %v134
    %2681 = vmatpush1.msra.mxu0 %v133
    %2682 = vmatprep.subr.mxu0 %v126
    %2683 = vmatpush1.msra.mxu0 %v125
    %2684 = vmatprep.subr.mxu0 %v118
    %2685 = vmatpush1.msra.mxu0 %v117
    %2686 = vmatprep.subr.mxu0 %v110
    %2687 = vmatpush1.msra.mxu0 %v109
    %2688 = vmatprep.subr.mxu0 %v102
    %2689 = vmatpush1.msra.mxu0 %v101
    %2690 = vmatprep.subr.mxu0 %v94
    %2691 = vmatpush1.msra.mxu0 %v93
    %2692 = vmatprep.subr.mxu0 %v86
    %2693 = vmatpush1.msra.mxu0 %v85
    %2694 = vmatprep.subr.mxu0 %v78
    %2695 = vmatpush1.msra.mxu0 %v77
    %2696 = vmatprep.subr.mxu0 %v70
    %2697 = vmatpush1.msra.mxu0 %v69
    %2698 = vmatprep.subr.mxu0 %v62
    %2699 = vmatpush1.msra.mxu0 %v61
    %2700 = vmatprep.subr.mxu0 %v54
    %2701 = vmatpush1.msra.mxu0 %v53
    %2702 = vmatprep.subr.mxu0 %v302
    %2703 = vmatpush2.msra.mxu0 %v301
    %2704 = vmatprep.subr.mxu0 %v294
    %2705 = vmatpush2.msra.mxu0 %v293
    %2706 = vmatprep.subr.mxu0 %v286
    %2707 = vmatpush2.msra.mxu0 %v285
    %2708 = vmatprep.subr.mxu0 %v278
    %2709 = vmatpush2.msra.mxu0 %v277
    %2710 = vmatprep.subr.mxu0 %v270
    %2711 = vmatpush2.msra.mxu0 %v269
    %2712 = vmatprep.subr.mxu0 %v262
    %2713 = vmatpush2.msra.mxu0 %v261
    %2714 = vmatprep.subr.mxu0 %v254
    %2715 = vmatpush2.msra.mxu0 %v253
    %2716 = vmatprep.subr.mxu0 %v246
    %2717 = vmatpush2.msra.mxu0 %v245
    %2718 = vmatprep.subr.mxu0 %v238
    %2719 = vmatpush2.msra.mxu0 %v237
    %2720 = vmatprep.subr.mxu0 %v230
    %2721 = vmatpush2.msra.mxu0 %v229
    %2722 = vmatprep.subr.mxu0 %v222
    %2723 = vmatpush2.msra.mxu0 %v221
    %2724 = vmatprep.subr.mxu0 %v214
    %2725 = vmatpush2.msra.mxu0 %v213
    %2726 = vmatprep.subr.mxu0 %v206
    %2727 = vmatpush2.msra.mxu0 %v205
    %2728 = vmatprep.subr.mxu0 %v198
    %2729 = vmatpush2.msra.mxu0 %v197
    %2730 = vmatprep.subr.mxu0 %v190
    %2731 = vmatpush2.msra.mxu0 %v189
    %2732 = vmatprep.subr.mxu0 %v182
    %2733 = vmatpush2.msra.mxu0 %v181
    %2734 = vmatprep.mubr.f32.mxu0 %v2525
    %2735 = vmatmul.mubr.f32.gmra.mxu0 %v2524
    %v2736 = vpop.f32.mrf.mxu0
    %v2737 = vadd.f32 0.0, %v2736
    %v2738 = vpop.f32.mrf.mxu0
    %v2739 = vadd.f32 0.0, %v2738
    %2740 = vdwg.mxu0
    %2741 = vmatprep.subr.mxu0 %v176
    %2742 = vmatpush1.msra.mxu0 %v175
    %2743 = vmatprep.subr.mxu0 %v168
    %2744 = vmatpush1.msra.mxu0 %v167
    %2745 = vmatprep.subr.mxu0 %v160
    %2746 = vmatpush1.msra.mxu0 %v159
    %2747 = vmatprep.subr.mxu0 %v152
    %2748 = vmatpush1.msra.mxu0 %v151
    %2749 = vmatprep.subr.mxu0 %v144
    %2750 = vmatpush1.msra.mxu0 %v143
    %2751 = vmatprep.subr.mxu0 %v136
    %2752 = vmatpush1.msra.mxu0 %v135
    %2753 = vmatprep.subr.mxu0 %v128
    %2754 = vmatpush1.msra.mxu0 %v127
    %2755 = vmatprep.subr.mxu0 %v120
    %2756 = vmatpush1.msra.mxu0 %v119
    %2757 = vmatprep.subr.mxu0 %v112
    %2758 = vmatpush1.msra.mxu0 %v111
    %2759 = vmatprep.subr.mxu0 %v104
    %2760 = vmatpush1.msra.mxu0 %v103
    %2761 = vmatprep.subr.mxu0 %v96
    %2762 = vmatpush1.msra.mxu0 %v95
    %2763 = vmatprep.subr.mxu0 %v88
    %2764 = vmatpush1.msra.mxu0 %v87
    %2765 = vmatprep.subr.mxu0 %v80
    %2766 = vmatpush1.msra.mxu0 %v79
    %2767 = vmatprep.subr.mxu0 %v72
    %2768 = vmatpush1.msra.mxu0 %v71
    %2769 = vmatprep.subr.mxu0 %v64
    %2770 = vmatpush1.msra.mxu0 %v63
    %2771 = vmatprep.subr.mxu0 %v56
    %2772 = vmatpush1.msra.mxu0 %v55
    %2773 = vmatprep.subr.mxu0 %v304
    %2774 = vmatpush2.msra.mxu0 %v303
    %2775 = vmatprep.subr.mxu0 %v296
    %2776 = vmatpush2.msra.mxu0 %v295
    %2777 = vmatprep.subr.mxu0 %v288
    %2778 = vmatpush2.msra.mxu0 %v287
    %2779 = vmatprep.subr.mxu0 %v280
    %2780 = vmatpush2.msra.mxu0 %v279
    %2781 = vmatprep.subr.mxu0 %v272
    %2782 = vmatpush2.msra.mxu0 %v271
    %2783 = vmatprep.subr.mxu0 %v264
    %2784 = vmatpush2.msra.mxu0 %v263
    %2785 = vmatprep.subr.mxu0 %v256
    %2786 = vmatpush2.msra.mxu0 %v255
    %2787 = vmatprep.subr.mxu0 %v248
    %2788 = vmatpush2.msra.mxu0 %v247
    %2789 = vmatprep.subr.mxu0 %v240
    %2790 = vmatpush2.msra.mxu0 %v239
    %2791 = vmatprep.subr.mxu0 %v232
    %2792 = vmatpush2.msra.mxu0 %v231
    %2793 = vmatprep.subr.mxu0 %v224
    %2794 = vmatpush2.msra.mxu0 %v223
    %2795 = vmatprep.subr.mxu0 %v216
    %2796 = vmatpush2.msra.mxu0 %v215
    %2797 = vmatprep.subr.mxu0 %v208
    %2798 = vmatpush2.msra.mxu0 %v207
    %2799 = vmatprep.subr.mxu0 %v200
    %2800 = vmatpush2.msra.mxu0 %v199
    %2801 = vmatprep.subr.mxu0 %v192
    %2802 = vmatpush2.msra.mxu0 %v191
    %2803 = vmatprep.subr.mxu0 %v184
    %2804 = vmatpush2.msra.mxu0 %v183
    %2805 = vmatprep.mubr.f32.mxu0 %v2525
    %2806 = vmatmul.mubr.f32.gmra.mxu0 %v2524
    %v2807 = vpop.f32.mrf.mxu0
    %v2808 = vadd.f32 0.0, %v2807
    %v2809 = vpop.f32.mrf.mxu0
    %v2810 = vadd.f32 0.0, %v2809
    %2811 = vdwg.mxu0
    %v2820 = vcombine.low %v2595, %v2597
    %v2821 = vcombine.low %v2666, %v2668
    %v2823 = vunpack.c.l.s4 1983009808
    %v2824 = vunpack.c.0.s8 %v2823
    %v2825 = vlaneseq
    %v2826 = vshrl.u32 %v2825, 7
    %v2827 = vsub.s32 %v2824, %v2826
    %v2828 = vrot.slane %v2820, %v2827
    %v2830 = vunpack.c.l.s4 1983009808
    %v2831 = vunpack.c.0.s8 %v2830
    %v2832 = vlaneseq
    %v2833 = vshrl.u32 %v2832, 7
    %v2834 = vsub.s32 %v2831, %v2833
    %v2835 = vrot.slane %v2821, %v2834
    %v2836 = vcombine.low %v2828, %v2835
    %v2837 = vcombine.low %v2737, %v2739
    %v2838 = vcombine.low %v2808, %v2810
    %v2840 = vunpack.c.l.s4 1983009808
    %v2841 = vunpack.c.0.s8 %v2840
    %v2842 = vlaneseq
    %v2843 = vshrl.u32 %v2842, 7
    %v2844 = vsub.s32 %v2841, %v2843
    %v2845 = vrot.slane %v2837, %v2844
    %v2847 = vunpack.c.l.s4 1983009808
    %v2848 = vunpack.c.0.s8 %v2847
    %v2849 = vlaneseq
    %v2850 = vshrl.u32 %v2849, 7
    %v2851 = vsub.s32 %v2848, %v2850
    %v2852 = vrot.slane %v2838, %v2851
    %v2853 = vcombine.low %v2845, %v2852
    %v2856 = vadd.f32 %v2515, %v2836
    %v2857 = vadd.f32 %v2516, %v2853
    %v2858 = vxor.u32 %v2856, 2147483648
    %v2859 = vxor.u32 %v2857, 2147483648
    %v2860 = vmul.f32 %v2858, 1.442695
    %v2861 = vpow.pop %v2860
    %v2862 = vmul.f32 %v2859, 1.442695
    %v2863 = vpow.pop %v2862
    %v2864 = vadd.f32 %v2861, 1.0
    %v2865 = vadd.f32 %v2863, 1.0
    %v2866 = vrcp.pop %v2864
    %v2867 = vmul.f32 1.0, %v2866
    %v2868 = vrcp.pop %v2865
    %v2869 = vmul.f32 1.0, %v2868
    %v2871 = vrot.slane %v2857, 4
    %v2873 = vtanh.pop %v2871
    %v2875 = vrot.slane %v2867, 4
    %v2877 = vmul.f32 %v2875, %v2511
    %v2878 = vmul.f32 %v2867, %v2873
    %v2879 = vadd.f32 %v2877, %v2878
    %v2880 = vtanh.pop %v2879
    %v2881 = vmul.f32 %v2869, %v2880
    %s2882 = scalar_lea.vmem [#allocation4], 112
    %v2883 = vld [vmem:[%s2882] sm:$0xff]
    %v2884 = vld [vmem:[%s2882 + $0x8] sm:$0xff]
    %v2887 = vunpack.c.l.s4 1983009808
    %v2888 = vunpack.c.0.s8 %v2887
    %v2889 = vlaneseq
    %v2890 = vshrl.u32 %v2889, 7
    %v2891 = vsub.s32 %v2888, %v2890
    %v2892 = vrot.slane %v2881, %v2891
    %v2893 = vcombine.high %v2892, %v2892
    %2896 = vmatprep.subr.mxu0 %v170
    %2897 = vmatpush1.msra.mxu0 %v169
    %2898 = vmatprep.subr.mxu0 %v162
    %2899 = vmatpush1.msra.mxu0 %v161
    %2900 = vmatprep.subr.mxu0 %v154
    %2901 = vmatpush1.msra.mxu0 %v153
    %2902 = vmatprep.subr.mxu0 %v146
    %2903 = vmatpush1.msra.mxu0 %v145
    %2904 = vmatprep.subr.mxu0 %v138
    %2905 = vmatpush1.msra.mxu0 %v137
    %2906 = vmatprep.subr.mxu0 %v130
    %2907 = vmatpush1.msra.mxu0 %v129
    %2908 = vmatprep.subr.mxu0 %v122
    %2909 = vmatpush1.msra.mxu0 %v121
    %2910 = vmatprep.subr.mxu0 %v114
    %2911 = vmatpush1.msra.mxu0 %v113
    %2912 = vmatprep.subr.mxu0 %v106
    %2913 = vmatpush1.msra.mxu0 %v105
    %2914 = vmatprep.subr.mxu0 %v98
    %2915 = vmatpush1.msra.mxu0 %v97
    %2916 = vmatprep.subr.mxu0 %v90
    %2917 = vmatpush1.msra.mxu0 %v89
    %2918 = vmatprep.subr.mxu0 %v82
    %2919 = vmatpush1.msra.mxu0 %v81
    %2920 = vmatprep.subr.mxu0 %v74
    %2921 = vmatpush1.msra.mxu0 %v73
    %2922 = vmatprep.subr.mxu0 %v66
    %2923 = vmatpush1.msra.mxu0 %v65
    %2924 = vmatprep.subr.mxu0 %v58
    %2925 = vmatpush1.msra.mxu0 %v57
    %2926 = vmatprep.subr.mxu0 %v50
    %2927 = vmatpush1.msra.mxu0 %v49
    %2928 = vmatprep.subr.mxu0 %v298
    %2929 = vmatpush2.msra.mxu0 %v297
    %2930 = vmatprep.subr.mxu0 %v290
    %2931 = vmatpush2.msra.mxu0 %v289
    %2932 = vmatprep.subr.mxu0 %v282
    %2933 = vmatpush2.msra.mxu0 %v281
    %2934 = vmatprep.subr.mxu0 %v274
    %2935 = vmatpush2.msra.mxu0 %v273
    %2936 = vmatprep.subr.mxu0 %v266
    %2937 = vmatpush2.msra.mxu0 %v265
    %2938 = vmatprep.subr.mxu0 %v258
    %2939 = vmatpush2.msra.mxu0 %v257
    %2940 = vmatprep.subr.mxu0 %v250
    %2941 = vmatpush2.msra.mxu0 %v249
    %2942 = vmatprep.subr.mxu0 %v242
    %2943 = vmatpush2.msra.mxu0 %v241
    %2944 = vmatprep.subr.mxu0 %v234
    %2945 = vmatpush2.msra.mxu0 %v233
    %2946 = vmatprep.subr.mxu0 %v226
    %2947 = vmatpush2.msra.mxu0 %v225
    %2948 = vmatprep.subr.mxu0 %v218
    %2949 = vmatpush2.msra.mxu0 %v217
    %2950 = vmatprep.subr.mxu0 %v210
    %2951 = vmatpush2.msra.mxu0 %v209
    %2952 = vmatprep.subr.mxu0 %v202
    %2953 = vmatpush2.msra.mxu0 %v201
    %2954 = vmatprep.subr.mxu0 %v194
    %2955 = vmatpush2.msra.mxu0 %v193
    %2956 = vmatprep.subr.mxu0 %v186
    %2957 = vmatpush2.msra.mxu0 %v185
    %2958 = vmatprep.subr.mxu0 %v178
    %2959 = vmatpush2.msra.mxu0 %v177
    %2960 = vmatprep.mubr.f32.mxu0 %v2893
    %2961 = vmatmul.mubr.f32.gmra.mxu0 %v2892
    %v2962 = vpop.f32.mrf.mxu0
    %v2963 = vadd.f32 0.0, %v2962
    %v2964 = vpop.f32.mrf.mxu0
    %v2965 = vadd.f32 0.0, %v2964
    %2966 = vdwg.mxu0
    %2967 = vmatprep.subr.mxu0 %v172
    %2968 = vmatpush1.msra.mxu0 %v171
    %2969 = vmatprep.subr.mxu0 %v164
    %2970 = vmatpush1.msra.mxu0 %v163
    %2971 = vmatprep.subr.mxu0 %v156
    %2972 = vmatpush1.msra.mxu0 %v155
    %2973 = vmatprep.subr.mxu0 %v148
    %2974 = vmatpush1.msra.mxu0 %v147
    %2975 = vmatprep.subr.mxu0 %v140
    %2976 = vmatpush1.msra.mxu0 %v139
    %2977 = vmatprep.subr.mxu0 %v132
    %2978 = vmatpush1.msra.mxu0 %v131
    %2979 = vmatprep.subr.mxu0 %v124
    %2980 = vmatpush1.msra.mxu0 %v123
    %2981 = vmatprep.subr.mxu0 %v116
    %2982 = vmatpush1.msra.mxu0 %v115
    %2983 = vmatprep.subr.mxu0 %v108
    %2984 = vmatpush1.msra.mxu0 %v107
    %2985 = vmatprep.subr.mxu0 %v100
    %2986 = vmatpush1.msra.mxu0 %v99
    %2987 = vmatprep.subr.mxu0 %v92
    %2988 = vmatpush1.msra.mxu0 %v91
    %2989 = vmatprep.subr.mxu0 %v84
    %2990 = vmatpush1.msra.mxu0 %v83
    %2991 = vmatprep.subr.mxu0 %v76
    %2992 = vmatpush1.msra.mxu0 %v75
    %2993 = vmatprep.subr.mxu0 %v68
    %2994 = vmatpush1.msra.mxu0 %v67
    %2995 = vmatprep.subr.mxu0 %v60
    %2996 = vmatpush1.msra.mxu0 %v59
    %2997 = vmatprep.subr.mxu0 %v52
    %2998 = vmatpush1.msra.mxu0 %v51
    %2999 = vmatprep.subr.mxu0 %v300
    %3000 = vmatpush2.msra.mxu0 %v299
    %3001 = vmatprep.subr.mxu0 %v292
    %3002 = vmatpush2.msra.mxu0 %v291
    %3003 = vmatprep.subr.mxu0 %v284
    %3004 = vmatpush2.msra.mxu0 %v283
    %3005 = vmatprep.subr.mxu0 %v276
    %3006 = vmatpush2.msra.mxu0 %v275
    %3007 = vmatprep.subr.mxu0 %v268
    %3008 = vmatpush2.msra.mxu0 %v267
    %3009 = vmatprep.subr.mxu0 %v260
    %3010 = vmatpush2.msra.mxu0 %v259
    %3011 = vmatprep.subr.mxu0 %v252
    %3012 = vmatpush2.msra.mxu0 %v251
    %3013 = vmatprep.subr.mxu0 %v244
    %3014 = vmatpush2.msra.mxu0 %v243
    %3015 = vmatprep.subr.mxu0 %v236
    %3016 = vmatpush2.msra.mxu0 %v235
    %3017 = vmatprep.subr.mxu0 %v228
    %3018 = vmatpush2.msra.mxu0 %v227
    %3019 = vmatprep.subr.mxu0 %v220
    %3020 = vmatpush2.msra.mxu0 %v219
    %3021 = vmatprep.subr.mxu0 %v212
    %3022 = vmatpush2.msra.mxu0 %v211
    %3023 = vmatprep.subr.mxu0 %v204
    %3024 = vmatpush2.msra.mxu0 %v203
    %3025 = vmatprep.subr.mxu0 %v196
    %3026 = vmatpush2.msra.mxu0 %v195
    %3027 = vmatprep.subr.mxu0 %v188
    %3028 = vmatpush2.msra.mxu0 %v187
    %3029 = vmatprep.subr.mxu0 %v180
    %3030 = vmatpush2.msra.mxu0 %v179
    %3031 = vmatprep.mubr.f32.mxu0 %v2893
    %3032 = vmatmul.mubr.f32.gmra.mxu0 %v2892
    %v3033 = vpop.f32.mrf.mxu0
    %v3034 = vadd.f32 0.0, %v3033
    %v3035 = vpop.f32.mrf.mxu0
    %v3036 = vadd.f32 0.0, %v3035
    %3037 = vdwg.mxu0
    %3038 = vmatprep.subr.mxu0 %v174
    %3039 = vmatpush1.msra.mxu0 %v173
    %3040 = vmatprep.subr.mxu0 %v166
    %3041 = vmatpush1.msra.mxu0 %v165
    %3042 = vmatprep.subr.mxu0 %v158
    %3043 = vmatpush1.msra.mxu0 %v157
    %3044 = vmatprep.subr.mxu0 %v150
    %3045 = vmatpush1.msra.mxu0 %v149
    %3046 = vmatprep.subr.mxu0 %v142
    %3047 = vmatpush1.msra.mxu0 %v141
    %3048 = vmatprep.subr.mxu0 %v134
    %3049 = vmatpush1.msra.mxu0 %v133
    %3050 = vmatprep.subr.mxu0 %v126
    %3051 = vmatpush1.msra.mxu0 %v125
    %3052 = vmatprep.subr.mxu0 %v118
    %3053 = vmatpush1.msra.mxu0 %v117
    %3054 = vmatprep.subr.mxu0 %v110
    %3055 = vmatpush1.msra.mxu0 %v109
    %3056 = vmatprep.subr.mxu0 %v102
    %3057 = vmatpush1.msra.mxu0 %v101
    %3058 = vmatprep.subr.mxu0 %v94
    %3059 = vmatpush1.msra.mxu0 %v93
    %3060 = vmatprep.subr.mxu0 %v86
    %3061 = vmatpush1.msra.mxu0 %v85
    %3062 = vmatprep.subr.mxu0 %v78
    %3063 = vmatpush1.msra.mxu0 %v77
    %3064 = vmatprep.subr.mxu0 %v70
    %3065 = vmatpush1.msra.mxu0 %v69
    %3066 = vmatprep.subr.mxu0 %v62
    %3067 = vmatpush1.msra.mxu0 %v61
    %3068 = vmatprep.subr.mxu0 %v54
    %3069 = vmatpush1.msra.mxu0 %v53
    %3070 = vmatprep.subr.mxu0 %v302
    %3071 = vmatpush2.msra.mxu0 %v301
    %3072 = vmatprep.subr.mxu0 %v294
    %3073 = vmatpush2.msra.mxu0 %v293
    %3074 = vmatprep.subr.mxu0 %v286
    %3075 = vmatpush2.msra.mxu0 %v285
    %3076 = vmatprep.subr.mxu0 %v278
    %3077 = vmatpush2.msra.mxu0 %v277
    %3078 = vmatprep.subr.mxu0 %v270
    %3079 = vmatpush2.msra.mxu0 %v269
    %3080 = vmatprep.subr.mxu0 %v262
    %3081 = vmatpush2.msra.mxu0 %v261
    %3082 = vmatprep.subr.mxu0 %v254
    %3083 = vmatpush2.msra.mxu0 %v253
    %3084 = vmatprep.subr.mxu0 %v246
    %3085 = vmatpush2.msra.mxu0 %v245
    %3086 = vmatprep.subr.mxu0 %v238
    %3087 = vmatpush2.msra.mxu0 %v237
    %3088 = vmatprep.subr.mxu0 %v230
    %3089 = vmatpush2.msra.mxu0 %v229
    %3090 = vmatprep.subr.mxu0 %v222
    %3091 = vmatpush2.msra.mxu0 %v221
    %3092 = vmatprep.subr.mxu0 %v214
    %3093 = vmatpush2.msra.mxu0 %v213
    %3094 = vmatprep.subr.mxu0 %v206
    %3095 = vmatpush2.msra.mxu0 %v205
    %3096 = vmatprep.subr.mxu0 %v198
    %3097 = vmatpush2.msra.mxu0 %v197
    %3098 = vmatprep.subr.mxu0 %v190
    %3099 = vmatpush2.msra.mxu0 %v189
    %3100 = vmatprep.subr.mxu0 %v182
    %3101 = vmatpush2.msra.mxu0 %v181
    %3102 = vmatprep.mubr.f32.mxu0 %v2893
    %3103 = vmatmul.mubr.f32.gmra.mxu0 %v2892
    %v3104 = vpop.f32.mrf.mxu0
    %v3105 = vadd.f32 0.0, %v3104
    %v3106 = vpop.f32.mrf.mxu0
    %v3107 = vadd.f32 0.0, %v3106
    %3108 = vdwg.mxu0
    %3109 = vmatprep.subr.mxu0 %v176
    %3110 = vmatpush1.msra.mxu0 %v175
    %3111 = vmatprep.subr.mxu0 %v168
    %3112 = vmatpush1.msra.mxu0 %v167
    %3113 = vmatprep.subr.mxu0 %v160
    %3114 = vmatpush1.msra.mxu0 %v159
    %3115 = vmatprep.subr.mxu0 %v152
    %3116 = vmatpush1.msra.mxu0 %v151
    %3117 = vmatprep.subr.mxu0 %v144
    %3118 = vmatpush1.msra.mxu0 %v143
    %3119 = vmatprep.subr.mxu0 %v136
    %3120 = vmatpush1.msra.mxu0 %v135
    %3121 = vmatprep.subr.mxu0 %v128
    %3122 = vmatpush1.msra.mxu0 %v127
    %3123 = vmatprep.subr.mxu0 %v120
    %3124 = vmatpush1.msra.mxu0 %v119
    %3125 = vmatprep.subr.mxu0 %v112
    %3126 = vmatpush1.msra.mxu0 %v111
    %3127 = vmatprep.subr.mxu0 %v104
    %3128 = vmatpush1.msra.mxu0 %v103
    %3129 = vmatprep.subr.mxu0 %v96
    %3130 = vmatpush1.msra.mxu0 %v95
    %3131 = vmatprep.subr.mxu0 %v88
    %3132 = vmatpush1.msra.mxu0 %v87
    %3133 = vmatprep.subr.mxu0 %v80
    %3134 = vmatpush1.msra.mxu0 %v79
    %3135 = vmatprep.subr.mxu0 %v72
    %3136 = vmatpush1.msra.mxu0 %v71
    %3137 = vmatprep.subr.mxu0 %v64
    %3138 = vmatpush1.msra.mxu0 %v63
    %3139 = vmatprep.subr.mxu0 %v56
    %3140 = vmatpush1.msra.mxu0 %v55
    %3141 = vmatprep.subr.mxu0 %v304
    %3142 = vmatpush2.msra.mxu0 %v303
    %3143 = vmatprep.subr.mxu0 %v296
    %3144 = vmatpush2.msra.mxu0 %v295
    %3145 = vmatprep.subr.mxu0 %v288
    %3146 = vmatpush2.msra.mxu0 %v287
    %3147 = vmatprep.subr.mxu0 %v280
    %3148 = vmatpush2.msra.mxu0 %v279
    %3149 = vmatprep.subr.mxu0 %v272
    %3150 = vmatpush2.msra.mxu0 %v271
    %3151 = vmatprep.subr.mxu0 %v264
    %3152 = vmatpush2.msra.mxu0 %v263
    %3153 = vmatprep.subr.mxu0 %v256
    %3154 = vmatpush2.msra.mxu0 %v255
    %3155 = vmatprep.subr.mxu0 %v248
    %3156 = vmatpush2.msra.mxu0 %v247
    %3157 = vmatprep.subr.mxu0 %v240
    %3158 = vmatpush2.msra.mxu0 %v239
    %3159 = vmatprep.subr.mxu0 %v232
    %3160 = vmatpush2.msra.mxu0 %v231
    %3161 = vmatprep.subr.mxu0 %v224
    %3162 = vmatpush2.msra.mxu0 %v223
    %3163 = vmatprep.subr.mxu0 %v216
    %3164 = vmatpush2.msra.mxu0 %v215
    %3165 = vmatprep.subr.mxu0 %v208
    %3166 = vmatpush2.msra.mxu0 %v207
    %3167 = vmatprep.subr.mxu0 %v200
    %3168 = vmatpush2.msra.mxu0 %v199
    %3169 = vmatprep.subr.mxu0 %v192
    %3170 = vmatpush2.msra.mxu0 %v191
    %3171 = vmatprep.subr.mxu0 %v184
    %3172 = vmatpush2.msra.mxu0 %v183
    %3173 = vmatprep.mubr.f32.mxu0 %v2893
    %3174 = vmatmul.mubr.f32.gmra.mxu0 %v2892
    %v3175 = vpop.f32.mrf.mxu0
    %v3176 = vadd.f32 0.0, %v3175
    %v3177 = vpop.f32.mrf.mxu0
    %v3178 = vadd.f32 0.0, %v3177
    %3179 = vdwg.mxu0
    %v3188 = vcombine.low %v2963, %v2965
    %v3189 = vcombine.low %v3034, %v3036
    %v3191 = vunpack.c.l.s4 1983009808
    %v3192 = vunpack.c.0.s8 %v3191
    %v3193 = vlaneseq
    %v3194 = vshrl.u32 %v3193, 7
    %v3195 = vsub.s32 %v3192, %v3194
    %v3196 = vrot.slane %v3188, %v3195
    %v3198 = vunpack.c.l.s4 1983009808
    %v3199 = vunpack.c.0.s8 %v3198
    %v3200 = vlaneseq
    %v3201 = vshrl.u32 %v3200, 7
    %v3202 = vsub.s32 %v3199, %v3201
    %v3203 = vrot.slane %v3189, %v3202
    %v3204 = vcombine.low %v3196, %v3203
    %v3205 = vcombine.low %v3105, %v3107
    %v3206 = vcombine.low %v3176, %v3178
    %v3208 = vunpack.c.l.s4 1983009808
    %v3209 = vunpack.c.0.s8 %v3208
    %v3210 = vlaneseq
    %v3211 = vshrl.u32 %v3210, 7
    %v3212 = vsub.s32 %v3209, %v3211
    %v3213 = vrot.slane %v3205, %v3212
    %v3215 = vunpack.c.l.s4 1983009808
    %v3216 = vunpack.c.0.s8 %v3215
    %v3217 = vlaneseq
    %v3218 = vshrl.u32 %v3217, 7
    %v3219 = vsub.s32 %v3216, %v3218
    %v3220 = vrot.slane %v3206, %v3219
    %v3221 = vcombine.low %v3213, %v3220
    %v3224 = vadd.f32 %v2883, %v3204
    %v3225 = vadd.f32 %v2884, %v3221
    %v3226 = vxor.u32 %v3224, 2147483648
    %v3227 = vxor.u32 %v3225, 2147483648
    %v3228 = vmul.f32 %v3226, 1.442695
    %v3229 = vpow.pop %v3228
    %v3230 = vmul.f32 %v3227, 1.442695
    %v3231 = vpow.pop %v3230
    %v3232 = vadd.f32 %v3229, 1.0
    %v3233 = vadd.f32 %v3231, 1.0
    %v3234 = vrcp.pop %v3232
    %v3235 = vmul.f32 1.0, %v3234
    %v3236 = vrcp.pop %v3233
    %v3237 = vmul.f32 1.0, %v3236
    %v3239 = vrot.slane %v3225, 4
    %v3241 = vtanh.pop %v3239
    %v3243 = vrot.slane %v3235, 4
    %v3245 = vmul.f32 %v3243, %v2879
    %v3246 = vmul.f32 %v3235, %v3241
    %v3247 = vadd.f32 %v3245, %v3246
    %v3248 = vtanh.pop %v3247
    %v3249 = vmul.f32 %v3237, %v3248
    %3250 = vst [vmem:[#allocation2] sm:$0xf] %v3249
    %3251 = vst [vmem:[#allocation3] sm:$0xf] %v3247
    // Predicated region
    $region22: #{tpu_custom_call.1} parent=1 // pred_check
      %p3252 = pneg %p43
    $region23: #{tpu_custom_call.1} parent=1 // pred_check_branch
      %3254 = sbr.rel (%p3252) target = $region25
    $region24: #{tpu_custom_call.1} parent=1 // pred_region
      %3255 = vst [vmem:[#allocation9] sm:$0xf] %v3249
      %3256 = vst [vmem:[#allocation10] sm:$0xf] %v3247
    $region25: #{tpu_custom_call.1} parent=1 // pred_fallthru
      _
    // Predicated region
    $region26: #{tpu_custom_call.1} parent=1 // pred_check
      _
    $region27: #{tpu_custom_call.1} parent=1 // pred_check_branch
      %3258 = sbr.rel (0) target = $region29
    $region28: #{tpu_custom_call.1} parent=1 // pred_region
      %s3260 = ssub.s32 64, 64
      %3261 = vsyncadd [#allocation6], %s3260
      %s3263 = sshll.u32 [#allocation9], 4
      %s3264 = int_to_ptr.vmem [resolvable:$true] %s3263
      %3266 = dma.vmem_to_hbm [thread:$0]  %s3264, 64, %s2, [#allocation6]
    $region29: #{tpu_custom_call.1} parent=1 // pred_fallthru
      _
    // Predicated region
    $region30: #{tpu_custom_call.1} parent=1 // pred_check
      _
    $region31: #{tpu_custom_call.1} parent=1 // pred_check_branch
      %3268 = sbr.rel (0) target = $region33
    $region32: #{tpu_custom_call.1} parent=1 // pred_region
      %s3270 = ssub.s32 64, 64
      %3271 = vsyncadd [#allocation11], %s3270
      %s3273 = sshll.u32 [#allocation10], 4
      %s3274 = int_to_ptr.vmem [resolvable:$true] %s3273
      %3276 = dma.vmem_to_hbm [thread:$0]  %s3274, 64, %s3, [#allocation11]
    $region33: #{tpu_custom_call.1} parent=1 // pred_fallthru
      _
    // Predicated region
    $region34: #{tpu_custom_call.1} parent=1 // pred_check
      _
    $region35: #{tpu_custom_call.1} parent=1 // pred_check_branch
      %3278 = sbr.rel (0) target = $region37
    $region36: #{tpu_custom_call.1} parent=1 // pred_region
      %3279 = dma.done [#allocation6], 64
    $region37: #{tpu_custom_call.1} parent=1 // pred_fallthru
      _
    // Predicated region
    $region38: #{tpu_custom_call.1} parent=1 // pred_check
      _
    $region39: #{tpu_custom_call.1} parent=1 // pred_check_branch
      %3281 = sbr.rel (0) target = $region41
    $region40: #{tpu_custom_call.1} parent=1 // pred_region
      %3282 = dma.done [#allocation11], 64
    $region41: #{tpu_custom_call.1} parent=1 // pred_fallthru
      _
    %3283 = vsyncpa [#allocation5], 1
    %3284 = vsyncpa [#allocation8], 1
    %3285 = vsyncpa [#allocation6], 1
    %3286 = vsyncpa [#allocation11], 1

</llo_original>
